<compile_context>
chip_gen: v7x
topology: tpu7x:2x2x1
jax: 0.10.0
libtpu: 0.0.40
codegen_flags: <defaults>
</compile_context>

<pallas_src>
import math
import functools

import jax
import jax.numpy as jnp
import numpy as np
from jax import lax
from jax.experimental import pallas as pl
from jax.experimental.pallas import tpu as pltpu


# Indices into the stacked (5, H, H) weight tensor.
_WQ2, _WO1, _WO2, _WF1, _WF2 = range(5)


def _make_kernel(num_heads: int):

    def kernel(vl_ref,                       # scalar-prefetch: (B,) int32 in SMEM
               x_ref, enc_ref,               # (S, H) per-batch activation tiles
               wqkv1_ref,                    # (H, 3H)  self-attn  Wq|Wk|Wv fused (Wq pre-scaled)
               wkv2_ref,                     # (H, 2H)  cross-attn Wk|Wv fused
               wstk_ref,                     # (5, H, H) [Wq2(pre-scaled), Wo1, Wo2, Wf1, Wf2]
               ln_ref,                       # (6, H)    [g1,b1,g2,b2,g3,b3]
               out_ref):                     # (S, H)
        S, H = x_ref.shape
        dh = H // num_heads
        NEG = jnp.float32(-1e30)             # finite mask value (no NaN hazard)

        b = pl.program_id(0)

        x = x_ref[...]
        enc = enc_ref[...]
        ln = ln_ref[...]

        # ---- additive mask biases, built once per grid step from (S,S) iotas -
        row = lax.broadcasted_iota(jnp.int32, (S, S), 0)
        col = lax.broadcasted_iota(jnp.int32, (S, S), 1)
        causal_bias = jnp.where(col <= row, 0.0, NEG)        # decoder self-attn
        vl = vl_ref[b]                                        # SMEM scalar
        cross_bias = jnp.where(col < vl, 0.0, NEG)            # encoder valid len

        def layernorm(z, g, beta, eps=1e-5):
            mu = jnp.mean(z, axis=-1, keepdims=True)
            var = jnp.mean(z * z, axis=-1, keepdims=True) - mu * mu  # one pass
            return (z - mu) * lax.rsqrt(var + eps) * g + beta

        def attend(q, k, v, wo, bias):
            # q, k, v: (S, H); wo: (H, H); bias: (S, S) additive mask.
            # 1/sqrt(dh) is already folded into the Q projection weights.
            out = jnp.zeros((S, H), jnp.float32)
            for h in range(num_heads):       # static unroll over heads
                sl = slice(h * dh, (h + 1) * dh)
                qh, kh, vh = q[:, sl], k[:, sl], v[:, sl]
                # q @ k^T without materialising a transpose: contract dh of both.
                s = lax.dot_general(qh, kh, (((1,), (1,)), ((), ())),
                                    preferred_element_type=jnp.float32) + bias
                m = jnp.max(s, axis=-1, keepdims=True)
                e = jnp.exp(s - m)
                denom = jnp.sum(e, axis=-1, keepdims=True)
                # approx=False keeps the 1e-4 accuracy check meaningful.
                w = e * pl.reciprocal(denom, approx=False)
                ctx = jnp.dot(w, vh, preferred_element_type=jnp.float32)
                out = out + jnp.dot(ctx, wo[sl, :],
                                    preferred_element_type=jnp.float32)
            return out

        # ---- 1) causal multi-head self-attention + Add&Norm -----------------
        qkv = jnp.dot(x, wqkv1_ref[...], preferred_element_type=jnp.float32)
        y1 = attend(qkv[:, :H], qkv[:, H:2 * H], qkv[:, 2 * H:],
                    wstk_ref[_WO1], causal_bias)
        x1 = layernorm(x + y1, ln[0:1, :], ln[1:2, :])

        # ---- 2) cross multi-head attention over encoder output + Add&Norm ---
        q2 = jnp.dot(x1, wstk_ref[_WQ2], preferred_element_type=jnp.float32)
        kv2 = jnp.dot(enc, wkv2_ref[...], preferred_element_type=jnp.float32)
        y2 = attend(q2, kv2[:, :H], kv2[:, H:], wstk_ref[_WO2], cross_bias)
        x2 = layernorm(x1 + y2, ln[2:3, :], ln[3:4, :])

        # ---- 3) position-wise FFN (Linear -> ReLU -> Linear) + Add&Norm -----
        hdn = jnp.maximum(
            jnp.dot(x2, wstk_ref[_WF1], preferred_element_type=jnp.float32), 0.0)
        y3 = jnp.dot(hdn, wstk_ref[_WF2], preferred_element_type=jnp.float32)
        x3 = layernorm(x2 + y3, ln[4:5, :], ln[5:6, :])

        out_ref[...] = x3

    return kernel


@functools.partial(jax.jit, static_argnums=(4,))
def decoder_block_pallas(x, enc, valid_lens, params, num_heads):
    B, S, H = x.shape
    N = B * S
    dh = H // num_heads
    scale = 1.0 / math.sqrt(dh)

    # Wrapper-side weight fusion / stacking / scale folding (free w.r.t. kernel).
    wqkv1 = jnp.concatenate(
        [params["wq1"] * scale, params["wk1"], params["wv1"]], axis=1)
    wkv2 = jnp.concatenate([params["wk2"], params["wv2"]], axis=1)
    wstk = jnp.stack([params["wq2"] * scale, params["wo1"], params["wo2"],
                      params["wf1"], params["wf2"]], axis=0)
    lnp = jnp.concatenate([params["ln1g"], params["ln1b"],
                           params["ln2g"], params["ln2b"],
                           params["ln3g"], params["ln3b"]], axis=0)

    kernel = _make_kernel(num_heads)

    act_map = lambda b, vl: (b, 0)            # per-batch (S, H) tile
    const2 = lambda b, vl: (0, 0)             # weights resident across steps
    const3 = lambda b, vl: (0, 0, 0)

    grid_spec = pltpu.PrefetchScalarGridSpec(
        num_scalar_prefetch=1,
        grid=(B,),                            # one step per batch element
        in_specs=[
            pl.BlockSpec((S, H), act_map),        # x   (flattened to (B*S, H))
            pl.BlockSpec((S, H), act_map),        # enc (flattened to (B*S, H))
            pl.BlockSpec((H, 3 * H), const2),     # fused Wq|Wk|Wv (self-attn)
            pl.BlockSpec((H, 2 * H), const2),     # fused Wk|Wv    (cross-attn)
            pl.BlockSpec((5, H, H), const3),      # stacked Wq2, Wo1, Wo2, Wf1, Wf2
            pl.BlockSpec((6, H), const2),         # stacked LayerNorm params
        ],
        out_specs=pl.BlockSpec((S, H), act_map),
    )

    fn = pl.pallas_call(
        kernel,
        out_shape=jax.ShapeDtypeStruct((N, H), jnp.float32),
        grid_spec=grid_spec,
        compiler_params=pltpu.CompilerParams(
            # Batch axis is independent -> shard across TensorCores on v7x.
            dimension_semantics=("parallel",),
        ),
    )
    out2d = fn(valid_lens.astype(jnp.int32),
               x.reshape(N, H), enc.reshape(N, H), wqkv1, wkv2, wstk, lnp)
    return out2d.reshape(B, S, H)


# ----------------------------- pure-JAX reference -----------------------------

def _layernorm_ref(z, g, b, eps=1e-5):
    mu = jnp.mean(z, axis=-1, keepdims=True)
    var = jnp.mean((z - mu) ** 2, axis=-1, keepdims=True)
    return (z - mu) / jnp.sqrt(var + eps) * g + b


def _mha_ref(q_in, kv_in, wq, wk, wv, wo, mask, num_heads):
    B, Sq, H = q_in.shape
    Sk = kv_in.shape[1]
    dh = H // num_heads
    q = (q_in @ wq).reshape(B, Sq, num_heads, dh)
    k = (kv_in @ wk).reshape(B, Sk, num_heads, dh)
    v = (kv_in @ wv).reshape(B, Sk, num_heads, dh)
    s = jnp.einsum("bqhd,bkhd->bhqk", q, k) / math.sqrt(dh)
    s = jnp.where(mask, s, -jnp.inf)
    w = jax.nn.softmax(s, axis=-1)
    ctx = jnp.einsum("bhqk,bkhd->bqhd", w, v).reshape(B, Sq, H)
    return ctx @ wo


def decoder_block_ref(x, enc, valid_lens, params, num_heads):
    B, S, H = x.shape
    row = jnp.arange(S)[:, None]
    col = jnp.arange(S)[None, :]
    causal_mask = (col <= row)[None, None, :, :]                        # (1,1,S,S)
    cross_mask = (col[None, :, :] < valid_lens[:, None, None])[:, None, :, :]

    y1 = _mha_ref(x, x, params["wq1"], params["wk1"], params["wv1"],
                  params["wo1"], causal_mask, num_heads)
    x1 = _layernorm_ref(x + y1, params["ln1g"][0], params["ln1b"][0])

    y2 = _mha_ref(x1, enc, params["wq2"], params["wk2"], params["wv2"],
                  params["wo2"], cross_mask, num_heads)
    x2 = _layernorm_ref(x1 + y2, params["ln2g"][0], params["ln2b"][0])

    y3 = jnp.maximum(x2 @ params["wf1"], 0.0) @ params["wf2"]
    x3 = _layernorm_ref(x2 + y3, params["ln3g"][0], params["ln3b"][0])
    return x3


# ----------------------------------- main -----------------------------------

if __name__ == "__main__":
    B, S, H, NUM_HEADS = 2, 8, 32, 4

    key = jax.random.PRNGKey(0)
    keys = jax.random.split(key, 16)

    def w(k):
        # (in_features, out_features), i.e. torch Linear weight already transposed
        return (jax.random.normal(k, (H, H), jnp.float32) / math.sqrt(H))

    params = {
        "wq1": w(keys[0]), "wk1": w(keys[1]), "wv1": w(keys[2]), "wo1": w(keys[3]),
        "ln1g": jnp.ones((1, H), jnp.float32), "ln1b": jnp.zeros((1, H), jnp.float32),
        "wq2": w(keys[4]), "wk2": w(keys[5]), "wv2": w(keys[6]), "wo2": w(keys[7]),
        "ln2g": jnp.ones((1, H), jnp.float32), "ln2b": jnp.zeros((1, H), jnp.float32),
        "wf1": w(keys[8]), "wf2": w(keys[9]),
        "ln3g": jnp.ones((1, H), jnp.float32), "ln3b": jnp.zeros((1, H), jnp.float32),
    }

    x = jax.random.normal(keys[10], (B, S, H), jnp.float32)
    enc = jax.random.normal(keys[11], (B, S, H), jnp.float32)
    valid_lens = jnp.array([5, 8], dtype=jnp.int32)   # encoder valid lengths

    out = decoder_block_pallas(x, enc, valid_lens, params, NUM_HEADS)
    out = jax.block_until_ready(out)

    ref = decoder_block_ref(x, enc, valid_lens, params, NUM_HEADS)
    np.testing.assert_allclose(np.asarray(out), np.asarray(ref),
                               rtol=1e-4, atol=1e-4)
    print("KERNEL_OK")
</pallas_src>

<mosaic_0001>
module attributes {stable_mosaic.version = 11 : i64} {
  func.func @kernel(%arg0: i32, %arg1: memref<2xi32, #tpu.memory_space<smem>>, %arg2: memref<8x32xf32, #tpu.memory_space<vmem>>, %arg3: memref<8x32xf32, #tpu.memory_space<vmem>>, %arg4: memref<32x96xf32, #tpu.memory_space<vmem>>, %arg5: memref<32x64xf32, #tpu.memory_space<vmem>>, %arg6: memref<5x32x32xf32, #tpu.memory_space<vmem>>, %arg7: memref<6x32xf32, #tpu.memory_space<vmem>>, %arg8: memref<8x32xf32, #tpu.memory_space<vmem>>) attributes {dimension_semantics = [#tpu.dimension_semantics<parallel>], iteration_bounds = array<i64: 2>, scalar_prefetch = 1 : i64, scratch_operands = 0 : i64, tpu.core_type = #tpu.core_type<tc>, window_params = [{transform_indices = @transform_0, window_bounds = array<i64: 8, 32>}, {transform_indices = @transform_1, window_bounds = array<i64: 8, 32>}, {pipeline_mode = #tpu.pipeline_mode<synchronous>, transform_indices = @transform_2, window_bounds = array<i64: 32, 96>}, {pipeline_mode = #tpu.pipeline_mode<synchronous>, transform_indices = @transform_3, window_bounds = array<i64: 32, 64>}, {pipeline_mode = #tpu.pipeline_mode<synchronous>, transform_indices = @transform_4, window_bounds = array<i64: 5, 32, 32>}, {pipeline_mode = #tpu.pipeline_mode<synchronous>, transform_indices = @transform_5, window_bounds = array<i64: 6, 32>}, {transform_indices = @transform_6, window_bounds = array<i64: 8, 32>}]} {
    %c0 = arith.constant 0 : index
    %c0_0 = arith.constant 0 : index
    %0 = vector.load %arg2[%c0, %c0_0] : memref<8x32xf32, #tpu.memory_space<vmem>>, vector<8x32xf32>
    %c0_1 = arith.constant 0 : index
    %c0_2 = arith.constant 0 : index
    %1 = vector.load %arg3[%c0_1, %c0_2] : memref<8x32xf32, #tpu.memory_space<vmem>>, vector<8x32xf32>
    %c0_3 = arith.constant 0 : index
    %c0_4 = arith.constant 0 : index
    %2 = vector.load %arg7[%c0_3, %c0_4] : memref<6x32xf32, #tpu.memory_space<vmem>>, vector<6x32xf32>
    %3 = tpu.iota {dimensions = array<i32: 0>} : vector<8x8xi32>
    %4 = tpu.iota {dimensions = array<i32: 1>} : vector<8x8xi32>
    %5 = arith.cmpi sle, %4, %3 : vector<8x8xi32>
    %cst = arith.constant 0.000000e+00 : f32
    %cst_5 = arith.constant -1.000000e+30 : f32
    %6 = vector.broadcast %cst : f32 to vector<8x8xf32>
    %7 = vector.broadcast %cst_5 : f32 to vector<8x8xf32>
    %8 = arith.select %5, %6, %7 : vector<8x8xi1>, vector<8x8xf32>
    %9 = arith.index_cast %arg0 : i32 to index
    %10 = memref.load %arg1[%9] : memref<2xi32, #tpu.memory_space<smem>>
    %11 = vector.broadcast %10 : i32 to vector<8x8xi32>
    %12 = arith.cmpi slt, %4, %11 : vector<8x8xi32>
    %cst_6 = arith.constant 0.000000e+00 : f32
    %cst_7 = arith.constant -1.000000e+30 : f32
    %13 = vector.broadcast %cst_6 : f32 to vector<8x8xf32>
    %14 = vector.broadcast %cst_7 : f32 to vector<8x8xf32>
    %15 = arith.select %12, %13, %14 : vector<8x8xi1>, vector<8x8xf32>
    %c0_8 = arith.constant 0 : index
    %c0_9 = arith.constant 0 : index
    %16 = vector.load %arg4[%c0_8, %c0_9] : memref<32x96xf32, #tpu.memory_space<vmem>>, vector<32x96xf32>
    %cst_10 = arith.constant dense<0.000000e+00> : vector<8x96xf32>
    %17 = tpu.matmul %0, %16, %cst_10 {dimension_numbers = #tpu.dot_dimension_numbers<[1], [0], [0], [1], [0, 0, 1, 1], [], []>} : vector<8x32xf32>, vector<32x96xf32>, vector<8x96xf32> -> vector<8x96xf32>
    %18 = vector.extract_strided_slice %17 {offsets = [0, 0], sizes = [8, 32], strides = [1, 1]} : vector<8x96xf32> to vector<8x32xf32>
    %19 = vector.extract_strided_slice %17 {offsets = [0, 32], sizes = [8, 32], strides = [1, 1]} : vector<8x96xf32> to vector<8x32xf32>
    %20 = vector.extract_strided_slice %17 {offsets = [0, 64], sizes = [8, 32], strides = [1, 1]} : vector<8x96xf32> to vector<8x32xf32>
    %c1 = arith.constant 1 : index
    %c0_11 = arith.constant 0 : index
    %c0_12 = arith.constant 0 : index
    %21 = vector.load %arg6[%c1, %c0_11, %c0_12] : memref<5x32x32xf32, #tpu.memory_space<vmem>>, vector<1x32x32xf32>
    %22 = vector.shape_cast %21 : vector<1x32x32xf32> to vector<32x32xf32>
    %cst_13 = arith.constant 0.000000e+00 : f32
    %23 = vector.broadcast %cst_13 : f32 to vector<8x32xf32>
    %24 = vector.extract_strided_slice %18 {offsets = [0, 0], sizes = [8, 8], strides = [1, 1]} : vector<8x32xf32> to vector<8x8xf32>
    %25 = vector.extract_strided_slice %19 {offsets = [0, 0], sizes = [8, 8], strides = [1, 1]} : vector<8x32xf32> to vector<8x8xf32>
    %26 = vector.extract_strided_slice %20 {offsets = [0, 0], sizes = [8, 8], strides = [1, 1]} : vector<8x32xf32> to vector<8x8xf32>
    %cst_14 = arith.constant dense<0.000000e+00> : vector<8x8xf32>
    %27 = tpu.matmul %24, %25, %cst_14 {dimension_numbers = #tpu.dot_dimension_numbers<[1], [1], [0], [0], [0, 0, 1, 0], [], []>} : vector<8x8xf32>, vector<8x8xf32>, vector<8x8xf32> -> vector<8x8xf32>
    %28 = arith.addf %27, %8 : vector<8x8xf32>
    %cst_15 = arith.constant dense<0xFF800000> : vector<8xf32>
    %29 = vector.multi_reduction <maximumf>, %28, %cst_15 [1] : vector<8x8xf32> to vector<8xf32>
    %30 = vector.shape_cast %29 : vector<8xf32> to vector<8x1xf32>
    %31 = vector.broadcast %30 : vector<8x1xf32> to vector<8x8xf32>
    %32 = arith.subf %28, %31 : vector<8x8xf32>
    %33 = math.exp %32 : vector<8x8xf32>
    %cst_16 = arith.constant dense<0.000000e+00> : vector<8xf32>
    %34 = vector.multi_reduction <add>, %33, %cst_16 [1] : vector<8x8xf32> to vector<8xf32>
    %35 = vector.shape_cast %34 : vector<8xf32> to vector<8x1xf32>
    %36 = tpu.reciprocal %35 : vector<8x1xf32> -> vector<8x1xf32>
    %37 = vector.broadcast %36 : vector<8x1xf32> to vector<8x8xf32>
    %38 = arith.mulf %33, %37 : vector<8x8xf32>
    %cst_17 = arith.constant dense<0.000000e+00> : vector<8x8xf32>
    %39 = tpu.matmul %38, %26, %cst_17 {dimension_numbers = #tpu.dot_dimension_numbers<[1], [0], [0], [1], [0, 0, 1, 1], [], []>} : vector<8x8xf32>, vector<8x8xf32>, vector<8x8xf32> -> vector<8x8xf32>
    %40 = vector.extract_strided_slice %22 {offsets = [0, 0], sizes = [8, 32], strides = [1, 1]} : vector<32x32xf32> to vector<8x32xf32>
    %cst_18 = arith.constant dense<0.000000e+00> : vector<8x32xf32>
    %41 = tpu.matmul %39, %40, %cst_18 {dimension_numbers = #tpu.dot_dimension_numbers<[1], [0], [0], [1], [0, 0, 1, 1], [], []>} : vector<8x8xf32>, vector<8x32xf32>, vector<8x32xf32> -> vector<8x32xf32>
    %42 = arith.addf %23, %41 : vector<8x32xf32>
    %43 = vector.extract_strided_slice %18 {offsets = [0, 8], sizes = [8, 8], strides = [1, 1]} : vector<8x32xf32> to vector<8x8xf32>
    %44 = vector.extract_strided_slice %19 {offsets = [0, 8], sizes = [8, 8], strides = [1, 1]} : vector<8x32xf32> to vector<8x8xf32>
    %45 = vector.extract_strided_slice %20 {offsets = [0, 8], sizes = [8, 8], strides = [1, 1]} : vector<8x32xf32> to vector<8x8xf32>
    %cst_19 = arith.constant dense<0.000000e+00> : vector<8x8xf32>
    %46 = tpu.matmul %43, %44, %cst_19 {dimension_numbers = #tpu.dot_dimension_numbers<[1], [1], [0], [0], [0, 0, 1, 0], [], []>} : vector<8x8xf32>, vector<8x8xf32>, vector<8x8xf32> -> vector<8x8xf32>
    %47 = arith.addf %46, %8 : vector<8x8xf32>
    %cst_20 = arith.constant dense<0xFF800000> : vector<8xf32>
    %48 = vector.multi_reduction <maximumf>, %47, %cst_20 [1] : vector<8x8xf32> to vector<8xf32>
    %49 = vector.shape_cast %48 : vector<8xf32> to vector<8x1xf32>
    %50 = vector.broadcast %49 : vector<8x1xf32> to vector<8x8xf32>
    %51 = arith.subf %47, %50 : vector<8x8xf32>
    %52 = math.exp %51 : vector<8x8xf32>
    %cst_21 = arith.constant dense<0.000000e+00> : vector<8xf32>
    %53 = vector.multi_reduction <add>, %52, %cst_21 [1] : vector<8x8xf32> to vector<8xf32>
    %54 = vector.shape_cast %53 : vector<8xf32> to vector<8x1xf32>
    %55 = tpu.reciprocal %54 : vector<8x1xf32> -> vector<8x1xf32>
    %56 = vector.broadcast %55 : vector<8x1xf32> to vector<8x8xf32>
    %57 = arith.mulf %52, %56 : vector<8x8xf32>
    %cst_22 = arith.constant dense<0.000000e+00> : vector<8x8xf32>
    %58 = tpu.matmul %57, %45, %cst_22 {dimension_numbers = #tpu.dot_dimension_numbers<[1], [0], [0], [1], [0, 0, 1, 1], [], []>} : vector<8x8xf32>, vector<8x8xf32>, vector<8x8xf32> -> vector<8x8xf32>
    %59 = vector.extract_strided_slice %22 {offsets = [8, 0], sizes = [8, 32], strides = [1, 1]} : vector<32x32xf32> to vector<8x32xf32>
    %cst_23 = arith.constant dense<0.000000e+00> : vector<8x32xf32>
    %60 = tpu.matmul %58, %59, %cst_23 {dimension_numbers = #tpu.dot_dimension_numbers<[1], [0], [0], [1], [0, 0, 1, 1], [], []>} : vector<8x8xf32>, vector<8x32xf32>, vector<8x32xf32> -> vector<8x32xf32>
    %61 = arith.addf %42, %60 : vector<8x32xf32>
    %62 = vector.extract_strided_slice %18 {offsets = [0, 16], sizes = [8, 8], strides = [1, 1]} : vector<8x32xf32> to vector<8x8xf32>
    %63 = vector.extract_strided_slice %19 {offsets = [0, 16], sizes = [8, 8], strides = [1, 1]} : vector<8x32xf32> to vector<8x8xf32>
    %64 = vector.extract_strided_slice %20 {offsets = [0, 16], sizes = [8, 8], strides = [1, 1]} : vector<8x32xf32> to vector<8x8xf32>
    %cst_24 = arith.constant dense<0.000000e+00> : vector<8x8xf32>
    %65 = tpu.matmul %62, %63, %cst_24 {dimension_numbers = #tpu.dot_dimension_numbers<[1], [1], [0], [0], [0, 0, 1, 0], [], []>} : vector<8x8xf32>, vector<8x8xf32>, vector<8x8xf32> -> vector<8x8xf32>
    %66 = arith.addf %65, %8 : vector<8x8xf32>
    %cst_25 = arith.constant dense<0xFF800000> : vector<8xf32>
    %67 = vector.multi_reduction <maximumf>, %66, %cst_25 [1] : vector<8x8xf32> to vector<8xf32>
    %68 = vector.shape_cast %67 : vector<8xf32> to vector<8x1xf32>
    %69 = vector.broadcast %68 : vector<8x1xf32> to vector<8x8xf32>
    %70 = arith.subf %66, %69 : vector<8x8xf32>
    %71 = math.exp %70 : vector<8x8xf32>
    %cst_26 = arith.constant dense<0.000000e+00> : vector<8xf32>
    %72 = vector.multi_reduction <add>, %71, %cst_26 [1] : vector<8x8xf32> to vector<8xf32>
    %73 = vector.shape_cast %72 : vector<8xf32> to vector<8x1xf32>
    %74 = tpu.reciprocal %73 : vector<8x1xf32> -> vector<8x1xf32>
    %75 = vector.broadcast %74 : vector<8x1xf32> to vector<8x8xf32>
    %76 = arith.mulf %71, %75 : vector<8x8xf32>
    %cst_27 = arith.constant dense<0.000000e+00> : vector<8x8xf32>
    %77 = tpu.matmul %76, %64, %cst_27 {dimension_numbers = #tpu.dot_dimension_numbers<[1], [0], [0], [1], [0, 0, 1, 1], [], []>} : vector<8x8xf32>, vector<8x8xf32>, vector<8x8xf32> -> vector<8x8xf32>
    %78 = vector.extract_strided_slice %22 {offsets = [16, 0], sizes = [8, 32], strides = [1, 1]} : vector<32x32xf32> to vector<8x32xf32>
    %cst_28 = arith.constant dense<0.000000e+00> : vector<8x32xf32>
    %79 = tpu.matmul %77, %78, %cst_28 {dimension_numbers = #tpu.dot_dimension_numbers<[1], [0], [0], [1], [0, 0, 1, 1], [], []>} : vector<8x8xf32>, vector<8x32xf32>, vector<8x32xf32> -> vector<8x32xf32>
    %80 = arith.addf %61, %79 : vector<8x32xf32>
    %81 = vector.extract_strided_slice %18 {offsets = [0, 24], sizes = [8, 8], strides = [1, 1]} : vector<8x32xf32> to vector<8x8xf32>
    %82 = vector.extract_strided_slice %19 {offsets = [0, 24], sizes = [8, 8], strides = [1, 1]} : vector<8x32xf32> to vector<8x8xf32>
    %83 = vector.extract_strided_slice %20 {offsets = [0, 24], sizes = [8, 8], strides = [1, 1]} : vector<8x32xf32> to vector<8x8xf32>
    %cst_29 = arith.constant dense<0.000000e+00> : vector<8x8xf32>
    %84 = tpu.matmul %81, %82, %cst_29 {dimension_numbers = #tpu.dot_dimension_numbers<[1], [1], [0], [0], [0, 0, 1, 0], [], []>} : vector<8x8xf32>, vector<8x8xf32>, vector<8x8xf32> -> vector<8x8xf32>
    %85 = arith.addf %84, %8 : vector<8x8xf32>
    %cst_30 = arith.constant dense<0xFF800000> : vector<8xf32>
    %86 = vector.multi_reduction <maximumf>, %85, %cst_30 [1] : vector<8x8xf32> to vector<8xf32>
    %87 = vector.shape_cast %86 : vector<8xf32> to vector<8x1xf32>
    %88 = vector.broadcast %87 : vector<8x1xf32> to vector<8x8xf32>
    %89 = arith.subf %85, %88 : vector<8x8xf32>
    %90 = math.exp %89 : vector<8x8xf32>
    %cst_31 = arith.constant dense<0.000000e+00> : vector<8xf32>
    %91 = vector.multi_reduction <add>, %90, %cst_31 [1] : vector<8x8xf32> to vector<8xf32>
    %92 = vector.shape_cast %91 : vector<8xf32> to vector<8x1xf32>
    %93 = tpu.reciprocal %92 : vector<8x1xf32> -> vector<8x1xf32>
    %94 = vector.broadcast %93 : vector<8x1xf32> to vector<8x8xf32>
    %95 = arith.mulf %90, %94 : vector<8x8xf32>
    %cst_32 = arith.constant dense<0.000000e+00> : vector<8x8xf32>
    %96 = tpu.matmul %95, %83, %cst_32 {dimension_numbers = #tpu.dot_dimension_numbers<[1], [0], [0], [1], [0, 0, 1, 1], [], []>} : vector<8x8xf32>, vector<8x8xf32>, vector<8x8xf32> -> vector<8x8xf32>
    %97 = vector.extract_strided_slice %22 {offsets = [24, 0], sizes = [8, 32], strides = [1, 1]} : vector<32x32xf32> to vector<8x32xf32>
    %cst_33 = arith.constant dense<0.000000e+00> : vector<8x32xf32>
    %98 = tpu.matmul %96, %97, %cst_33 {dimension_numbers = #tpu.dot_dimension_numbers<[1], [0], [0], [1], [0, 0, 1, 1], [], []>} : vector<8x8xf32>, vector<8x32xf32>, vector<8x32xf32> -> vector<8x32xf32>
    %99 = arith.addf %80, %98 : vector<8x32xf32>
    %100 = arith.addf %0, %99 : vector<8x32xf32>
    %101 = vector.extract_strided_slice %2 {offsets = [0, 0], sizes = [1, 32], strides = [1, 1]} : vector<6x32xf32> to vector<1x32xf32>
    %102 = vector.extract_strided_slice %2 {offsets = [1, 0], sizes = [1, 32], strides = [1, 1]} : vector<6x32xf32> to vector<1x32xf32>
    %cst_34 = arith.constant dense<0.000000e+00> : vector<8xf32>
    %103 = vector.multi_reduction <add>, %100, %cst_34 [1] : vector<8x32xf32> to vector<8xf32>
    %104 = vector.shape_cast %103 : vector<8xf32> to vector<8x1xf32>
    %cst_35 = arith.constant 3.200000e+01 : f32
    %105 = vector.broadcast %cst_35 : f32 to vector<8x1xf32>
    %106 = arith.divf %104, %105 : vector<8x1xf32>
    %107 = arith.mulf %100, %100 : vector<8x32xf32>
    %cst_36 = arith.constant dense<0.000000e+00> : vector<8xf32>
    %108 = vector.multi_reduction <add>, %107, %cst_36 [1] : vector<8x32xf32> to vector<8xf32>
    %109 = vector.shape_cast %108 : vector<8xf32> to vector<8x1xf32>
    %cst_37 = arith.constant 3.200000e+01 : f32
    %110 = vector.broadcast %cst_37 : f32 to vector<8x1xf32>
    %111 = arith.divf %109, %110 : vector<8x1xf32>
    %112 = arith.mulf %106, %106 : vector<8x1xf32>
    %113 = arith.subf %111, %112 : vector<8x1xf32>
    %114 = vector.broadcast %106 : vector<8x1xf32> to vector<8x32xf32>
    %115 = arith.subf %100, %114 : vector<8x32xf32>
    %cst_38 = arith.constant 9.99999974E-6 : f32
    %116 = vector.broadcast %cst_38 : f32 to vector<8x1xf32>
    %117 = arith.addf %113, %116 : vector<8x1xf32>
    %118 = math.rsqrt %117 : vector<8x1xf32>
    %119 = vector.broadcast %118 : vector<8x1xf32> to vector<8x32xf32>
    %120 = arith.mulf %115, %119 : vector<8x32xf32>
    %121 = vector.broadcast %101 : vector<1x32xf32> to vector<8x32xf32>
    %122 = arith.mulf %120, %121 : vector<8x32xf32>
    %123 = vector.broadcast %102 : vector<1x32xf32> to vector<8x32xf32>
    %124 = arith.addf %122, %123 : vector<8x32xf32>
    %c0_39 = arith.constant 0 : index
    %c0_40 = arith.constant 0 : index
    %c0_41 = arith.constant 0 : index
    %125 = vector.load %arg6[%c0_39, %c0_40, %c0_41] : memref<5x32x32xf32, #tpu.memory_space<vmem>>, vector<1x32x32xf32>
    %126 = vector.shape_cast %125 : vector<1x32x32xf32> to vector<32x32xf32>
    %cst_42 = arith.constant dense<0.000000e+00> : vector<8x32xf32>
    %127 = tpu.matmul %124, %126, %cst_42 {dimension_numbers = #tpu.dot_dimension_numbers<[1], [0], [0], [1], [0, 0, 1, 1], [], []>} : vector<8x32xf32>, vector<32x32xf32>, vector<8x32xf32> -> vector<8x32xf32>
    %c0_43 = arith.constant 0 : index
    %c0_44 = arith.constant 0 : index
    %128 = vector.load %arg5[%c0_43, %c0_44] : memref<32x64xf32, #tpu.memory_space<vmem>>, vector<32x64xf32>
    %cst_45 = arith.constant dense<0.000000e+00> : vector<8x64xf32>
    %129 = tpu.matmul %1, %128, %cst_45 {dimension_numbers = #tpu.dot_dimension_numbers<[1], [0], [0], [1], [0, 0, 1, 1], [], []>} : vector<8x32xf32>, vector<32x64xf32>, vector<8x64xf32> -> vector<8x64xf32>
    %130 = vector.extract_strided_slice %129 {offsets = [0, 0], sizes = [8, 32], strides = [1, 1]} : vector<8x64xf32> to vector<8x32xf32>
    %131 = vector.extract_strided_slice %129 {offsets = [0, 32], sizes = [8, 32], strides = [1, 1]} : vector<8x64xf32> to vector<8x32xf32>
    %c2 = arith.constant 2 : index
    %c0_46 = arith.constant 0 : index
    %c0_47 = arith.constant 0 : index
    %132 = vector.load %arg6[%c2, %c0_46, %c0_47] : memref<5x32x32xf32, #tpu.memory_space<vmem>>, vector<1x32x32xf32>
    %133 = vector.shape_cast %132 : vector<1x32x32xf32> to vector<32x32xf32>
    %cst_48 = arith.constant 0.000000e+00 : f32
    %134 = vector.broadcast %cst_48 : f32 to vector<8x32xf32>
    %135 = vector.extract_strided_slice %127 {offsets = [0, 0], sizes = [8, 8], strides = [1, 1]} : vector<8x32xf32> to vector<8x8xf32>
    %136 = vector.extract_strided_slice %130 {offsets = [0, 0], sizes = [8, 8], strides = [1, 1]} : vector<8x32xf32> to vector<8x8xf32>
    %137 = vector.extract_strided_slice %131 {offsets = [0, 0], sizes = [8, 8], strides = [1, 1]} : vector<8x32xf32> to vector<8x8xf32>
    %cst_49 = arith.constant dense<0.000000e+00> : vector<8x8xf32>
    %138 = tpu.matmul %135, %136, %cst_49 {dimension_numbers = #tpu.dot_dimension_numbers<[1], [1], [0], [0], [0, 0, 1, 0], [], []>} : vector<8x8xf32>, vector<8x8xf32>, vector<8x8xf32> -> vector<8x8xf32>
    %139 = arith.addf %138, %15 : vector<8x8xf32>
    %cst_50 = arith.constant dense<0xFF800000> : vector<8xf32>
    %140 = vector.multi_reduction <maximumf>, %139, %cst_50 [1] : vector<8x8xf32> to vector<8xf32>
    %141 = vector.shape_cast %140 : vector<8xf32> to vector<8x1xf32>
    %142 = vector.broadcast %141 : vector<8x1xf32> to vector<8x8xf32>
    %143 = arith.subf %139, %142 : vector<8x8xf32>
    %144 = math.exp %143 : vector<8x8xf32>
    %cst_51 = arith.constant dense<0.000000e+00> : vector<8xf32>
    %145 = vector.multi_reduction <add>, %144, %cst_51 [1] : vector<8x8xf32> to vector<8xf32>
    %146 = vector.shape_cast %145 : vector<8xf32> to vector<8x1xf32>
    %147 = tpu.reciprocal %146 : vector<8x1xf32> -> vector<8x1xf32>
    %148 = vector.broadcast %147 : vector<8x1xf32> to vector<8x8xf32>
    %149 = arith.mulf %144, %148 : vector<8x8xf32>
    %cst_52 = arith.constant dense<0.000000e+00> : vector<8x8xf32>
    %150 = tpu.matmul %149, %137, %cst_52 {dimension_numbers = #tpu.dot_dimension_numbers<[1], [0], [0], [1], [0, 0, 1, 1], [], []>} : vector<8x8xf32>, vector<8x8xf32>, vector<8x8xf32> -> vector<8x8xf32>
    %151 = vector.extract_strided_slice %133 {offsets = [0, 0], sizes = [8, 32], strides = [1, 1]} : vector<32x32xf32> to vector<8x32xf32>
    %cst_53 = arith.constant dense<0.000000e+00> : vector<8x32xf32>
    %152 = tpu.matmul %150, %151, %cst_53 {dimension_numbers = #tpu.dot_dimension_numbers<[1], [0], [0], [1], [0, 0, 1, 1], [], []>} : vector<8x8xf32>, vector<8x32xf32>, vector<8x32xf32> -> vector<8x32xf32>
    %153 = arith.addf %134, %152 : vector<8x32xf32>
    %154 = vector.extract_strided_slice %127 {offsets = [0, 8], sizes = [8, 8], strides = [1, 1]} : vector<8x32xf32> to vector<8x8xf32>
    %155 = vector.extract_strided_slice %130 {offsets = [0, 8], sizes = [8, 8], strides = [1, 1]} : vector<8x32xf32> to vector<8x8xf32>
    %156 = vector.extract_strided_slice %131 {offsets = [0, 8], sizes = [8, 8], strides = [1, 1]} : vector<8x32xf32> to vector<8x8xf32>
    %cst_54 = arith.constant dense<0.000000e+00> : vector<8x8xf32>
    %157 = tpu.matmul %154, %155, %cst_54 {dimension_numbers = #tpu.dot_dimension_numbers<[1], [1], [0], [0], [0, 0, 1, 0], [], []>} : vector<8x8xf32>, vector<8x8xf32>, vector<8x8xf32> -> vector<8x8xf32>
    %158 = arith.addf %157, %15 : vector<8x8xf32>
    %cst_55 = arith.constant dense<0xFF800000> : vector<8xf32>
    %159 = vector.multi_reduction <maximumf>, %158, %cst_55 [1] : vector<8x8xf32> to vector<8xf32>
    %160 = vector.shape_cast %159 : vector<8xf32> to vector<8x1xf32>
    %161 = vector.broadcast %160 : vector<8x1xf32> to vector<8x8xf32>
    %162 = arith.subf %158, %161 : vector<8x8xf32>
    %163 = math.exp %162 : vector<8x8xf32>
    %cst_56 = arith.constant dense<0.000000e+00> : vector<8xf32>
    %164 = vector.multi_reduction <add>, %163, %cst_56 [1] : vector<8x8xf32> to vector<8xf32>
    %165 = vector.shape_cast %164 : vector<8xf32> to vector<8x1xf32>
    %166 = tpu.reciprocal %165 : vector<8x1xf32> -> vector<8x1xf32>
    %167 = vector.broadcast %166 : vector<8x1xf32> to vector<8x8xf32>
    %168 = arith.mulf %163, %167 : vector<8x8xf32>
    %cst_57 = arith.constant dense<0.000000e+00> : vector<8x8xf32>
    %169 = tpu.matmul %168, %156, %cst_57 {dimension_numbers = #tpu.dot_dimension_numbers<[1], [0], [0], [1], [0, 0, 1, 1], [], []>} : vector<8x8xf32>, vector<8x8xf32>, vector<8x8xf32> -> vector<8x8xf32>
    %170 = vector.extract_strided_slice %133 {offsets = [8, 0], sizes = [8, 32], strides = [1, 1]} : vector<32x32xf32> to vector<8x32xf32>
    %cst_58 = arith.constant dense<0.000000e+00> : vector<8x32xf32>
    %171 = tpu.matmul %169, %170, %cst_58 {dimension_numbers = #tpu.dot_dimension_numbers<[1], [0], [0], [1], [0, 0, 1, 1], [], []>} : vector<8x8xf32>, vector<8x32xf32>, vector<8x32xf32> -> vector<8x32xf32>
    %172 = arith.addf %153, %171 : vector<8x32xf32>
    %173 = vector.extract_strided_slice %127 {offsets = [0, 16], sizes = [8, 8], strides = [1, 1]} : vector<8x32xf32> to vector<8x8xf32>
    %174 = vector.extract_strided_slice %130 {offsets = [0, 16], sizes = [8, 8], strides = [1, 1]} : vector<8x32xf32> to vector<8x8xf32>
    %175 = vector.extract_strided_slice %131 {offsets = [0, 16], sizes = [8, 8], strides = [1, 1]} : vector<8x32xf32> to vector<8x8xf32>
    %cst_59 = arith.constant dense<0.000000e+00> : vector<8x8xf32>
    %176 = tpu.matmul %173, %174, %cst_59 {dimension_numbers = #tpu.dot_dimension_numbers<[1], [1], [0], [0], [0, 0, 1, 0], [], []>} : vector<8x8xf32>, vector<8x8xf32>, vector<8x8xf32> -> vector<8x8xf32>
    %177 = arith.addf %176, %15 : vector<8x8xf32>
    %cst_60 = arith.constant dense<0xFF800000> : vector<8xf32>
    %178 = vector.multi_reduction <maximumf>, %177, %cst_60 [1] : vector<8x8xf32> to vector<8xf32>
    %179 = vector.shape_cast %178 : vector<8xf32> to vector<8x1xf32>
    %180 = vector.broadcast %179 : vector<8x1xf32> to vector<8x8xf32>
    %181 = arith.subf %177, %180 : vector<8x8xf32>
    %182 = math.exp %181 : vector<8x8xf32>
    %cst_61 = arith.constant dense<0.000000e+00> : vector<8xf32>
    %183 = vector.multi_reduction <add>, %182, %cst_61 [1] : vector<8x8xf32> to vector<8xf32>
    %184 = vector.shape_cast %183 : vector<8xf32> to vector<8x1xf32>
    %185 = tpu.reciprocal %184 : vector<8x1xf32> -> vector<8x1xf32>
    %186 = vector.broadcast %185 : vector<8x1xf32> to vector<8x8xf32>
    %187 = arith.mulf %182, %186 : vector<8x8xf32>
    %cst_62 = arith.constant dense<0.000000e+00> : vector<8x8xf32>
    %188 = tpu.matmul %187, %175, %cst_62 {dimension_numbers = #tpu.dot_dimension_numbers<[1], [0], [0], [1], [0, 0, 1, 1], [], []>} : vector<8x8xf32>, vector<8x8xf32>, vector<8x8xf32> -> vector<8x8xf32>
    %189 = vector.extract_strided_slice %133 {offsets = [16, 0], sizes = [8, 32], strides = [1, 1]} : vector<32x32xf32> to vector<8x32xf32>
    %cst_63 = arith.constant dense<0.000000e+00> : vector<8x32xf32>
    %190 = tpu.matmul %188, %189, %cst_63 {dimension_numbers = #tpu.dot_dimension_numbers<[1], [0], [0], [1], [0, 0, 1, 1], [], []>} : vector<8x8xf32>, vector<8x32xf32>, vector<8x32xf32> -> vector<8x32xf32>
    %191 = arith.addf %172, %190 : vector<8x32xf32>
    %192 = vector.extract_strided_slice %127 {offsets = [0, 24], sizes = [8, 8], strides = [1, 1]} : vector<8x32xf32> to vector<8x8xf32>
    %193 = vector.extract_strided_slice %130 {offsets = [0, 24], sizes = [8, 8], strides = [1, 1]} : vector<8x32xf32> to vector<8x8xf32>
    %194 = vector.extract_strided_slice %131 {offsets = [0, 24], sizes = [8, 8], strides = [1, 1]} : vector<8x32xf32> to vector<8x8xf32>
    %cst_64 = arith.constant dense<0.000000e+00> : vector<8x8xf32>
    %195 = tpu.matmul %192, %193, %cst_64 {dimension_numbers = #tpu.dot_dimension_numbers<[1], [1], [0], [0], [0, 0, 1, 0], [], []>} : vector<8x8xf32>, vector<8x8xf32>, vector<8x8xf32> -> vector<8x8xf32>
    %196 = arith.addf %195, %15 : vector<8x8xf32>
    %cst_65 = arith.constant dense<0xFF800000> : vector<8xf32>
    %197 = vector.multi_reduction <maximumf>, %196, %cst_65 [1] : vector<8x8xf32> to vector<8xf32>
    %198 = vector.shape_cast %197 : vector<8xf32> to vector<8x1xf32>
    %199 = vector.broadcast %198 : vector<8x1xf32> to vector<8x8xf32>
    %200 = arith.subf %196, %199 : vector<8x8xf32>
    %201 = math.exp %200 : vector<8x8xf32>
    %cst_66 = arith.constant dense<0.000000e+00> : vector<8xf32>
    %202 = vector.multi_reduction <add>, %201, %cst_66 [1] : vector<8x8xf32> to vector<8xf32>
    %203 = vector.shape_cast %202 : vector<8xf32> to vector<8x1xf32>
    %204 = tpu.reciprocal %203 : vector<8x1xf32> -> vector<8x1xf32>
    %205 = vector.broadcast %204 : vector<8x1xf32> to vector<8x8xf32>
    %206 = arith.mulf %201, %205 : vector<8x8xf32>
    %cst_67 = arith.constant dense<0.000000e+00> : vector<8x8xf32>
    %207 = tpu.matmul %206, %194, %cst_67 {dimension_numbers = #tpu.dot_dimension_numbers<[1], [0], [0], [1], [0, 0, 1, 1], [], []>} : vector<8x8xf32>, vector<8x8xf32>, vector<8x8xf32> -> vector<8x8xf32>
    %208 = vector.extract_strided_slice %133 {offsets = [24, 0], sizes = [8, 32], strides = [1, 1]} : vector<32x32xf32> to vector<8x32xf32>
    %cst_68 = arith.constant dense<0.000000e+00> : vector<8x32xf32>
    %209 = tpu.matmul %207, %208, %cst_68 {dimension_numbers = #tpu.dot_dimension_numbers<[1], [0], [0], [1], [0, 0, 1, 1], [], []>} : vector<8x8xf32>, vector<8x32xf32>, vector<8x32xf32> -> vector<8x32xf32>
    %210 = arith.addf %191, %209 : vector<8x32xf32>
    %211 = arith.addf %124, %210 : vector<8x32xf32>
    %212 = vector.extract_strided_slice %2 {offsets = [2, 0], sizes = [1, 32], strides = [1, 1]} : vector<6x32xf32> to vector<1x32xf32>
    %213 = vector.extract_strided_slice %2 {offsets = [3, 0], sizes = [1, 32], strides = [1, 1]} : vector<6x32xf32> to vector<1x32xf32>
    %cst_69 = arith.constant dense<0.000000e+00> : vector<8xf32>
    %214 = vector.multi_reduction <add>, %211, %cst_69 [1] : vector<8x32xf32> to vector<8xf32>
    %215 = vector.shape_cast %214 : vector<8xf32> to vector<8x1xf32>
    %cst_70 = arith.constant 3.200000e+01 : f32
    %216 = vector.broadcast %cst_70 : f32 to vector<8x1xf32>
    %217 = arith.divf %215, %216 : vector<8x1xf32>
    %218 = arith.mulf %211, %211 : vector<8x32xf32>
    %cst_71 = arith.constant dense<0.000000e+00> : vector<8xf32>
    %219 = vector.multi_reduction <add>, %218, %cst_71 [1] : vector<8x32xf32> to vector<8xf32>
    %220 = vector.shape_cast %219 : vector<8xf32> to vector<8x1xf32>
    %cst_72 = arith.constant 3.200000e+01 : f32
    %221 = vector.broadcast %cst_72 : f32 to vector<8x1xf32>
    %222 = arith.divf %220, %221 : vector<8x1xf32>
    %223 = arith.mulf %217, %217 : vector<8x1xf32>
    %224 = arith.subf %222, %223 : vector<8x1xf32>
    %225 = vector.broadcast %217 : vector<8x1xf32> to vector<8x32xf32>
    %226 = arith.subf %211, %225 : vector<8x32xf32>
    %cst_73 = arith.constant 9.99999974E-6 : f32
    %227 = vector.broadcast %cst_73 : f32 to vector<8x1xf32>
    %228 = arith.addf %224, %227 : vector<8x1xf32>
    %229 = math.rsqrt %228 : vector<8x1xf32>
    %230 = vector.broadcast %229 : vector<8x1xf32> to vector<8x32xf32>
    %231 = arith.mulf %226, %230 : vector<8x32xf32>
    %232 = vector.broadcast %212 : vector<1x32xf32> to vector<8x32xf32>
    %233 = arith.mulf %231, %232 : vector<8x32xf32>
    %234 = vector.broadcast %213 : vector<1x32xf32> to vector<8x32xf32>
    %235 = arith.addf %233, %234 : vector<8x32xf32>
    %c3 = arith.constant 3 : index
    %c0_74 = arith.constant 0 : index
    %c0_75 = arith.constant 0 : index
    %236 = vector.load %arg6[%c3, %c0_74, %c0_75] : memref<5x32x32xf32, #tpu.memory_space<vmem>>, vector<1x32x32xf32>
    %237 = vector.shape_cast %236 : vector<1x32x32xf32> to vector<32x32xf32>
    %cst_76 = arith.constant dense<0.000000e+00> : vector<8x32xf32>
    %238 = tpu.matmul %235, %237, %cst_76 {dimension_numbers = #tpu.dot_dimension_numbers<[1], [0], [0], [1], [0, 0, 1, 1], [], []>} : vector<8x32xf32>, vector<32x32xf32>, vector<8x32xf32> -> vector<8x32xf32>
    %cst_77 = arith.constant 0.000000e+00 : f32
    %239 = vector.broadcast %cst_77 : f32 to vector<8x32xf32>
    %240 = arith.maximumf %238, %239 : vector<8x32xf32>
    %c4 = arith.constant 4 : index
    %c0_78 = arith.constant 0 : index
    %c0_79 = arith.constant 0 : index
    %241 = vector.load %arg6[%c4, %c0_78, %c0_79] : memref<5x32x32xf32, #tpu.memory_space<vmem>>, vector<1x32x32xf32>
    %242 = vector.shape_cast %241 : vector<1x32x32xf32> to vector<32x32xf32>
    %cst_80 = arith.constant dense<0.000000e+00> : vector<8x32xf32>
    %243 = tpu.matmul %240, %242, %cst_80 {dimension_numbers = #tpu.dot_dimension_numbers<[1], [0], [0], [1], [0, 0, 1, 1], [], []>} : vector<8x32xf32>, vector<32x32xf32>, vector<8x32xf32> -> vector<8x32xf32>
    %244 = arith.addf %235, %243 : vector<8x32xf32>
    %245 = vector.extract_strided_slice %2 {offsets = [4, 0], sizes = [1, 32], strides = [1, 1]} : vector<6x32xf32> to vector<1x32xf32>
    %246 = vector.extract_strided_slice %2 {offsets = [5, 0], sizes = [1, 32], strides = [1, 1]} : vector<6x32xf32> to vector<1x32xf32>
    %cst_81 = arith.constant dense<0.000000e+00> : vector<8xf32>
    %247 = vector.multi_reduction <add>, %244, %cst_81 [1] : vector<8x32xf32> to vector<8xf32>
    %248 = vector.shape_cast %247 : vector<8xf32> to vector<8x1xf32>
    %cst_82 = arith.constant 3.200000e+01 : f32
    %249 = vector.broadcast %cst_82 : f32 to vector<8x1xf32>
    %250 = arith.divf %248, %249 : vector<8x1xf32>
    %251 = arith.mulf %244, %244 : vector<8x32xf32>
    %cst_83 = arith.constant dense<0.000000e+00> : vector<8xf32>
    %252 = vector.multi_reduction <add>, %251, %cst_83 [1] : vector<8x32xf32> to vector<8xf32>
    %253 = vector.shape_cast %252 : vector<8xf32> to vector<8x1xf32>
    %cst_84 = arith.constant 3.200000e+01 : f32
    %254 = vector.broadcast %cst_84 : f32 to vector<8x1xf32>
    %255 = arith.divf %253, %254 : vector<8x1xf32>
    %256 = arith.mulf %250, %250 : vector<8x1xf32>
    %257 = arith.subf %255, %256 : vector<8x1xf32>
    %258 = vector.broadcast %250 : vector<8x1xf32> to vector<8x32xf32>
    %259 = arith.subf %244, %258 : vector<8x32xf32>
    %cst_85 = arith.constant 9.99999974E-6 : f32
    %260 = vector.broadcast %cst_85 : f32 to vector<8x1xf32>
    %261 = arith.addf %257, %260 : vector<8x1xf32>
    %262 = math.rsqrt %261 : vector<8x1xf32>
    %263 = vector.broadcast %262 : vector<8x1xf32> to vector<8x32xf32>
    %264 = arith.mulf %259, %263 : vector<8x32xf32>
    %265 = vector.broadcast %245 : vector<1x32xf32> to vector<8x32xf32>
    %266 = arith.mulf %264, %265 : vector<8x32xf32>
    %267 = vector.broadcast %246 : vector<1x32xf32> to vector<8x32xf32>
    %268 = arith.addf %266, %267 : vector<8x32xf32>
    %c0_86 = arith.constant 0 : index
    %c0_87 = arith.constant 0 : index
    %269 = vector.load %arg8[%c0_86, %c0_87] : memref<8x32xf32, #tpu.memory_space<vmem>>, vector<8x32xf32>
    tpu.vector_store %arg8[%c0_86, %c0_87], %268 {strides = array<i32>} : memref<8x32xf32, #tpu.memory_space<vmem>>, vector<8x32xf32>,
    return
  }
  func.func @transform_0(%arg0: i32, %arg1: memref<2xi32, #tpu.memory_space<smem>>) -> (i32, i32) {
    %c0_i32 = arith.constant 0 : i32
    %c0_i32_0 = arith.constant 0 : i32
    return %arg0, %c0_i32 : i32, i32
  }
  func.func @transform_1(%arg0: i32, %arg1: memref<2xi32, #tpu.memory_space<smem>>) -> (i32, i32) {
    %c0_i32 = arith.constant 0 : i32
    %c0_i32_0 = arith.constant 0 : i32
    return %arg0, %c0_i32 : i32, i32
  }
  func.func @transform_2(%arg0: i32, %arg1: memref<2xi32, #tpu.memory_space<smem>>) -> (i32, i32) {
    %c0_i32 = arith.constant 0 : i32
    %c0_i32_0 = arith.constant 0 : i32
    %c0_i32_1 = arith.constant 0 : i32
    return %c0_i32, %c0_i32_0 : i32, i32
  }
  func.func @transform_3(%arg0: i32, %arg1: memref<2xi32, #tpu.memory_space<smem>>) -> (i32, i32) {
    %c0_i32 = arith.constant 0 : i32
    %c0_i32_0 = arith.constant 0 : i32
    %c0_i32_1 = arith.constant 0 : i32
    return %c0_i32, %c0_i32_0 : i32, i32
  }
  func.func @transform_4(%arg0: i32, %arg1: memref<2xi32, #tpu.memory_space<smem>>) -> (i32, i32, i32) {
    %c0_i32 = arith.constant 0 : i32
    %c0_i32_0 = arith.constant 0 : i32
    %c0_i32_1 = arith.constant 0 : i32
    %c0_i32_2 = arith.constant 0 : i32
    return %c0_i32, %c0_i32_0, %c0_i32_1 : i32, i32, i32
  }
  func.func @transform_5(%arg0: i32, %arg1: memref<2xi32, #tpu.memory_space<smem>>) -> (i32, i32) {
    %c0_i32 = arith.constant 0 : i32
    %c0_i32_0 = arith.constant 0 : i32
    %c0_i32_1 = arith.constant 0 : i32
    return %c0_i32, %c0_i32_0 : i32, i32
  }
  func.func @transform_6(%arg0: i32, %arg1: memref<2xi32, #tpu.memory_space<smem>>) -> (i32, i32) {
    %c0_i32 = arith.constant 0 : i32
    %c0_i32_0 = arith.constant 0 : i32
    return %arg0, %c0_i32 : i32, i32
  }
}

</mosaic_0001>

<llo_original>
// kernel: decoder_block_pallas.1
$region0: #{decoder_block_pallas.1}
  #allocation0 [shape = 'u32[]', space=smem, size = 0x4, offset = 0x4, fixed_abs, tag = 'smem constant byte address 0x4 - core index']
  #allocation1 [shape = 'u32[144,128]{1,0:T(1,128)}', space=vmem, size = 0x12000, scoped, tag = 'internal scratch']
  #allocation2 [shape = 's32[1]{0}', space=sflag, size = 0x4, scoped, tag = 'scoped memory for decoder_block_pallas.1']
  #allocation3 [shape = 'u8[512]{0}', space=smem, size = 0x200, scoped, tag = 'prefetched SMEM operand 0']
  %s0 = inlined_call_operand.vmem [shape: s32[2], index: 0, kind: input, shape index: {}]
  %s1 = inlined_call_operand.vmem [shape: f32[16,32], index: 1, kind: input, shape index: {}]
  %s2 = inlined_call_operand.vmem [shape: f32[16,32], index: 2, kind: input, shape index: {}]
  %s3 = inlined_call_operand.vmem [shape: f32[32,96], index: 3, kind: input, shape index: {}]
  %s4 = inlined_call_operand.vmem [shape: f32[32,64], index: 4, kind: input, shape index: {}]
  %s5 = inlined_call_operand.vmem [shape: f32[5,32,32], index: 5, kind: input, shape index: {}]
  %s6 = inlined_call_operand.vmem [shape: f32[6,32], index: 6, kind: input, shape index: {}]
  %s7 = inlined_call_operand.hbm [shape: f32[16,32], index: 7, kind: output, shape index: {}]
  %s8 = sld [smem:[#allocation0]]
  $region57: #{decoder_block_pallas.1} parent=0
    _
  %s10 = ssub.s32 1, %s8
  %s11 = scalar_select 0, %s10, %s8
  %s12 = sshll.u32 %s0, 4
  %s13 = int_to_ptr.vmem [resolvable:$true] %s12
  %15 = dma.vmem_to_smem %s13, 16, [#allocation3], [#allocation2]
  %16 = dma.done [#allocation2], 16
  %17 = sfence
  $region1: #{decoder_block_pallas.1} parent=0
    #allocation4 [shape = 'u8[8192]{0}', space=vmem, size = 0x2000, scoped, tag = 'output window, operand 0']
    #allocation5 [shape = 's32[2]{0}', space=sflag, size = 0x8, scoped, tag = 'scoped memory for decoder_block_pallas.1']
    %18 = vsyncpa [#allocation5], 0
    %s19 = scalar_lea.sflag [#allocation5], 1
    %20 = vsyncpa %s19, 0
    loop: start=0, step=1, limit=4
    $region2: #{decoder_block_pallas.1} parent=1 // loop_pre_header
      _
    $region3: #{decoder_block_pallas.1} parent=1 // loop_header
      %s22 = sphi 0, %s26
      %p23 = scmp.ge.s32.totalorder %s22, 4
      %s32 = sphi 0, %s34
      %s35 = sphi 0, %s32
      %s36 = sphi 0, %s35
      %s52 = sphi 0, %s36
      %s58 = sphi 0, %s60
      %s61 = sphi 0, %s58
      %s62 = sphi 0, %s61
      %s78 = sphi 0, %s62
      %s82 = sphi 0, %s82
      %s84 = sphi 0, %s82
      %s85 = sphi 0, %s84
      %s99 = sphi 0, %s85
      %s103 = sphi 0, %s103
      %s105 = sphi 0, %s103
      %s106 = sphi 0, %s105
      %s120 = sphi 0, %s106
      %s124 = sphi 0, %s124
      %s126 = sphi 0, %s124
      %s127 = sphi 0, %s126
      %s141 = sphi 0, %s127
      %s145 = sphi 0, %s145
      %s147 = sphi 0, %s145
      %s148 = sphi 0, %s147
      %s162 = sphi 0, %s148
      %s168 = sphi 0, %s170
      %s171 = sphi 0, %s168
      %s172 = sphi 0, %s171
      %s188 = sphi 0, %s172
    $region4: #{decoder_block_pallas.1} parent=1 // loop_header_branch
      %25 = sbr.rel (%p23) target = $region8
    $region5: #{decoder_block_pallas.1} parent=1 // loop_body
      %s27 = ssub.s32 %s22, 1
      %s28 = ssub.s32 %s22, 2
      %s29 = sadd.s32 %s22, 1
      %s30 = ssub.s32 %s22, %s29
      %p31 = scmp.eq.s32.totalorder %s30, 0
      %s33 = sadd.s32 %s32, 1
      %s34 = scalar_select %p31, %s32, %s33
      %p37 = pneg %p31
      %p38 = scmp.eq.s32.totalorder %s22, 1
      %p39 = por %p37, %p38
      %p40 = scmp.ne.s32.totalorder %s32, %s35
      %p41 = scmp.eq.s32.totalorder %s22, 0
      %p42 = por %p40, %p41
      %p43 = scmp.ne.s32.totalorder %s32, %s35
      %p44 = scmp.eq.s32.totalorder %s27, 1
      %p45 = por %p43, %p44
      %p46 = scmp.ne.s32.totalorder %s35, %s36
      %p47 = scmp.eq.s32.totalorder %s27, 0
      %p48 = por %p46, %p47
      %p49 = scmp.ne.s32.totalorder %s35, %s36
      %p50 = scmp.eq.s32.totalorder %s28, 1
      %p51 = por %p49, %p50
      %p53 = scmp.ne.s32.totalorder %s36, %s52
      %p54 = scmp.eq.s32.totalorder %s28, 0
      %p55 = por %p53, %p54
      %s56 = ssub.s32 %s22, %s29
      %p57 = scmp.eq.s32.totalorder %s56, 0
      %s59 = sadd.s32 %s58, 1
      %s60 = scalar_select %p57, %s58, %s59
      %p63 = pneg %p57
      %p64 = scmp.eq.s32.totalorder %s22, 1
      %p65 = por %p63, %p64
      %p66 = scmp.ne.s32.totalorder %s58, %s61
      %p67 = scmp.eq.s32.totalorder %s22, 0
      %p68 = por %p66, %p67
      %p69 = scmp.ne.s32.totalorder %s58, %s61
      %p70 = scmp.eq.s32.totalorder %s27, 1
      %p71 = por %p69, %p70
      %p72 = scmp.ne.s32.totalorder %s61, %s62
      %p73 = scmp.eq.s32.totalorder %s27, 0
      %p74 = por %p72, %p73
      %p75 = scmp.ne.s32.totalorder %s61, %s62
      %p76 = scmp.eq.s32.totalorder %s28, 1
      %p77 = por %p75, %p76
      %p79 = scmp.ne.s32.totalorder %s62, %s78
      %p80 = scmp.eq.s32.totalorder %s28, 0
      %p81 = por %p79, %p80
      %s83 = sadd.s32 %s82, 1
      %p86 = scmp.eq.s32.totalorder %s22, 1
      %p87 = scmp.ne.s32.totalorder %s82, %s84
      %p88 = scmp.eq.s32.totalorder %s22, 0
      %p89 = por %p87, %p88
      %p90 = scmp.ne.s32.totalorder %s82, %s84
      %p91 = scmp.eq.s32.totalorder %s27, 1
      %p92 = por %p90, %p91
      %p93 = scmp.ne.s32.totalorder %s84, %s85
      %p94 = scmp.eq.s32.totalorder %s27, 0
      %p95 = por %p93, %p94
      %p96 = scmp.ne.s32.totalorder %s84, %s85
      %p97 = scmp.eq.s32.totalorder %s28, 1
      %p98 = por %p96, %p97
      %p100 = scmp.ne.s32.totalorder %s85, %s99
      %p101 = scmp.eq.s32.totalorder %s28, 0
      %p102 = por %p100, %p101
      %s104 = sadd.s32 %s103, 1
      %p107 = scmp.eq.s32.totalorder %s22, 1
      %p108 = scmp.ne.s32.totalorder %s103, %s105
      %p109 = scmp.eq.s32.totalorder %s22, 0
      %p110 = por %p108, %p109
      %p111 = scmp.ne.s32.totalorder %s103, %s105
      %p112 = scmp.eq.s32.totalorder %s27, 1
      %p113 = por %p111, %p112
      %p114 = scmp.ne.s32.totalorder %s105, %s106
      %p115 = scmp.eq.s32.totalorder %s27, 0
      %p116 = por %p114, %p115
      %p117 = scmp.ne.s32.totalorder %s105, %s106
      %p118 = scmp.eq.s32.totalorder %s28, 1
      %p119 = por %p117, %p118
      %p121 = scmp.ne.s32.totalorder %s106, %s120
      %p122 = scmp.eq.s32.totalorder %s28, 0
      %p123 = por %p121, %p122
      %s125 = sadd.s32 %s124, 1
      %p128 = scmp.eq.s32.totalorder %s22, 1
      %p129 = scmp.ne.s32.totalorder %s124, %s126
      %p130 = scmp.eq.s32.totalorder %s22, 0
      %p131 = por %p129, %p130
      %p132 = scmp.ne.s32.totalorder %s124, %s126
      %p133 = scmp.eq.s32.totalorder %s27, 1
      %p134 = por %p132, %p133
      %p135 = scmp.ne.s32.totalorder %s126, %s127
      %p136 = scmp.eq.s32.totalorder %s27, 0
      %p137 = por %p135, %p136
      %p138 = scmp.ne.s32.totalorder %s126, %s127
      %p139 = scmp.eq.s32.totalorder %s28, 1
      %p140 = por %p138, %p139
      %p142 = scmp.ne.s32.totalorder %s127, %s141
      %p143 = scmp.eq.s32.totalorder %s28, 0
      %p144 = por %p142, %p143
      %s146 = sadd.s32 %s145, 1
      %p149 = scmp.eq.s32.totalorder %s22, 1
      %p150 = scmp.ne.s32.totalorder %s145, %s147
      %p151 = scmp.eq.s32.totalorder %s22, 0
      %p152 = por %p150, %p151
      %p153 = scmp.ne.s32.totalorder %s145, %s147
      %p154 = scmp.eq.s32.totalorder %s27, 1
      %p155 = por %p153, %p154
      %p156 = scmp.ne.s32.totalorder %s147, %s148
      %p157 = scmp.eq.s32.totalorder %s27, 0
      %p158 = por %p156, %p157
      %p159 = scmp.ne.s32.totalorder %s147, %s148
      %p160 = scmp.eq.s32.totalorder %s28, 1
      %p161 = por %p159, %p160
      %p163 = scmp.ne.s32.totalorder %s148, %s162
      %p164 = scmp.eq.s32.totalorder %s28, 0
      %p165 = por %p163, %p164
      %s166 = ssub.s32 %s22, %s29
      %p167 = scmp.eq.s32.totalorder %s166, 0
      %s169 = sadd.s32 %s168, 1
      %s170 = scalar_select %p167, %s168, %s169
      %p173 = pneg %p167
      %p174 = scmp.eq.s32.totalorder %s22, 1
      %p175 = por %p173, %p174
      %p176 = scmp.ne.s32.totalorder %s168, %s171
      %p177 = scmp.eq.s32.totalorder %s22, 0
      %p178 = por %p176, %p177
      %p179 = scmp.ne.s32.totalorder %s168, %s171
      %p180 = scmp.eq.s32.totalorder %s27, 1
      %p181 = por %p179, %p180
      %p182 = scmp.ne.s32.totalorder %s171, %s172
      %p183 = scmp.eq.s32.totalorder %s27, 0
      %p184 = por %p182, %p183
      %p185 = scmp.ne.s32.totalorder %s171, %s172
      %p186 = scmp.eq.s32.totalorder %s28, 1
      %p187 = por %p185, %p186
      %p189 = scmp.ne.s32.totalorder %s172, %s188
      %p190 = scmp.eq.s32.totalorder %s28, 0
      %p191 = por %p189, %p190
      %p192 = scmp.le.s32.totalorder 1, %s22
      %p193 = scmp.lt.s32.totalorder %s22, 3
      %p194 = pnand %p192, %p193
      %p195 = pneg %p194
      // Predicated region
      $region9: #{decoder_block_pallas.1} parent=5 // pred_check
        _
      $region10: #{decoder_block_pallas.1} parent=5 // pred_check_branch
        %197 = sbr.rel (%p194) target = $region12
      $region11: #{decoder_block_pallas.1} parent=5 // pred_region
        %s198 = ssub.s32 %s22, 1
        // Predicated region
        $region13: #{decoder_block_pallas.1} parent=11 // pred_check
          %p199 = pneg %p95
        $region14: #{decoder_block_pallas.1} parent=11 // pred_check_branch
          %201 = sbr.rel (%p199) target = $region16
        $region15: #{decoder_block_pallas.1} parent=11 // pred_region
          _
        $region16: #{decoder_block_pallas.1} parent=11 // pred_fallthru
          _
        // Predicated region
        $region17: #{decoder_block_pallas.1} parent=11 // pred_check
          %p202 = pneg %p116
        $region18: #{decoder_block_pallas.1} parent=11 // pred_check_branch
          %204 = sbr.rel (%p202) target = $region20
        $region19: #{decoder_block_pallas.1} parent=11 // pred_region
          _
        $region20: #{decoder_block_pallas.1} parent=11 // pred_fallthru
          _
        // Predicated region
        $region21: #{decoder_block_pallas.1} parent=11 // pred_check
          %p205 = pneg %p137
        $region22: #{decoder_block_pallas.1} parent=11 // pred_check_branch
          %207 = sbr.rel (%p205) target = $region24
        $region23: #{decoder_block_pallas.1} parent=11 // pred_region
          _
        $region24: #{decoder_block_pallas.1} parent=11 // pred_fallthru
          _
        // Predicated region
        $region25: #{decoder_block_pallas.1} parent=11 // pred_check
          %p208 = pneg %p158
        $region26: #{decoder_block_pallas.1} parent=11 // pred_check_branch
          %210 = sbr.rel (%p208) target = $region28
        $region27: #{decoder_block_pallas.1} parent=11 // pred_region
          _
        $region28: #{decoder_block_pallas.1} parent=11 // pred_fallthru
          _
      $region12: #{decoder_block_pallas.1} parent=5 // pred_fallthru
        _
      %p211 = scmp.lt.s32.totalorder %s22, 2
      // Predicated region
      $region29: #{decoder_block_pallas.1} parent=5 // pred_check
        %p212 = pneg %p211
      $region30: #{decoder_block_pallas.1} parent=5 // pred_check_branch
        %214 = sbr.rel (%p212) target = $region32
      $region31: #{decoder_block_pallas.1} parent=5 // pred_region
        // Predicated region
        $region33: #{decoder_block_pallas.1} parent=31 // pred_check
          %p215 = pneg %p42
        $region34: #{decoder_block_pallas.1} parent=31 // pred_check_branch
          %217 = sbr.rel (%p215) target = $region36
        $region35: #{decoder_block_pallas.1} parent=31 // pred_region
          %p218 = scmp.lt.s32.totalorder %s22, 1
          %s219 = scalar_select %p218, %s22, 1
          %s220 = smul.addr %s219, 8
          %s221 = scalar_lea.vmem %s1, %s220
        $region36: #{decoder_block_pallas.1} parent=31 // pred_fallthru
          _
        // Predicated region
        $region37: #{decoder_block_pallas.1} parent=31 // pred_check
          %p222 = pneg %p68
        $region38: #{decoder_block_pallas.1} parent=31 // pred_check_branch
          %224 = sbr.rel (%p222) target = $region40
        $region39: #{decoder_block_pallas.1} parent=31 // pred_region
          %p225 = scmp.lt.s32.totalorder %s22, 1
          %s226 = scalar_select %p225, %s22, 1
          %s227 = smul.addr %s226, 8
          %s228 = scalar_lea.vmem %s2, %s227
        $region40: #{decoder_block_pallas.1} parent=31 // pred_fallthru
          _
      $region32: #{decoder_block_pallas.1} parent=5 // pred_fallthru
        _
      %p229 = scmp.le.s32.totalorder 1, %s22
      %p230 = scmp.lt.s32.totalorder %s22, 3
      %p231 = pnand %p229, %p230
      %p232 = pneg %p231
      // Predicated region
      $region41: #{decoder_block_pallas.1} parent=5 // pred_check
        _
      $region42: #{decoder_block_pallas.1} parent=5 // pred_check_branch
        %234 = sbr.rel (%p231) target = $region44
      $region43: #{decoder_block_pallas.1} parent=5 // pred_region
        %s235 = ssub.s32 %s22, 1
        %p236 = scmp.lt.s32.totalorder %s27, 1
        %s237 = scalar_select %p236, %s27, 1
        %s238 = smul.addr %s237, 8
        %s239 = scalar_lea.vmem %s1, %s238
        %p240 = pneg %p48
        %p241 = pneg %p45
        %p242 = scmp.lt.s32.totalorder %s27, 1
        %s243 = scalar_select %p242, %s27, 1
        %s244 = smul.addr %s243, 8
        %s245 = scalar_lea.vmem %s2, %s244
        %p246 = pneg %p74
        %p247 = pneg %p71
        %p248 = pneg %p95
        %p249 = pneg %p92
        %p250 = pneg %p116
        %p251 = pneg %p113
        %p252 = pneg %p137
        %p253 = pneg %p134
        %p254 = pneg %p158
        %p255 = pneg %p155
        %p256 = pneg %p184
        %p257 = pneg %p181
        %s258 = sand.u32 %s171, 1
        %s259 = scalar_lea.sflag [#allocation5], %s258
        %s260 = sand.u32 %s171, 1
        %s261 = smul.addr %s260, 8
        %s262 = scalar_lea.vmem [#allocation4], %s261
        %p263 = scmp.lt.s32.totalorder %s27, 1
        %s264 = scalar_select %p263, %s27, 1
        %s265 = smul.addr %s264, 8
        %s266 = scalar_lea.vmem %s1, %s265
        %p267 = scmp.lt.s32.totalorder %s27, 1
        %s268 = scalar_select %p267, %s27, 1
        %s269 = smul.addr %s268, 8
        %s270 = scalar_lea.vmem %s2, %s269
        %v271 = vld [vmem:[%s266] sm:$0xff]
        %v272 = vld [vmem:[%s270] sm:$0xff]
        %v273 = vld [vmem:[%s6] sm:$0x3f]
        %v274 = vlaneseq
        %v275 = vshrl.u32 %v274, 7
        %v276 = vlaneseq
        %v277 = vand.u32 %v276, 127
        %vm278 = vcmp.le.s32.totalorder %v277, %v275
        %v279 = vsel %vm278, 0.0, -1e+30
        %s280 = sld [smem:[#allocation3 + %s27]]
        %v281 = vstv %s280
        %vm282 = vcmp.lt.s32.totalorder %v277, %v281
        %v283 = vsel %vm282, 0.0, -1e+30
        %v284 = vld [vmem:[%s3] sm:$0xff]
        %v285 = vld [vmem:[%s3 + $0x8] sm:$0xff]
        %v286 = vld [vmem:[%s3 + $0x10] sm:$0xff]
        %v287 = vld [vmem:[%s3 + $0x18] sm:$0xff]
        %vm288 = vcmask 261120
        %v290 = vsel %vm288, %v271, 0
        %292 = vmatprep.subr.mxu0 0.0
        %293 = vmatpush1.msra.mxu0 %v284
        %294 = vmatprep.subr.mxu0 0.0
        %295 = vmatpush1.msra.mxu0 %v285
        %296 = vmatprep.subr.mxu0 0.0
        %297 = vmatpush1.msra.mxu0 %v286
        %298 = vmatprep.subr.mxu0 0.0
        %299 = vmatpush1.msra.mxu0 %v287
        %300 = vmatprep.subr.mxu0 0.0
        %301 = vmatpush1.msra.mxu0 0.0
        %302 = vmatprep.subr.mxu0 0.0
        %303 = vmatpush1.msra.mxu0 0.0
        %304 = vmatprep.subr.mxu0 0.0
        %305 = vmatpush1.msra.mxu0 0.0
        %306 = vmatprep.subr.mxu0 0.0
        %307 = vmatpush1.msra.mxu0 0.0
        %308 = vmatprep.subr.mxu0 0.0
        %309 = vmatpush1.msra.mxu0 0.0
        %310 = vmatprep.subr.mxu0 0.0
        %311 = vmatpush1.msra.mxu0 0.0
        %312 = vmatprep.subr.mxu0 0.0
        %313 = vmatpush1.msra.mxu0 0.0
        %314 = vmatprep.subr.mxu0 0.0
        %315 = vmatpush1.msra.mxu0 0.0
        %316 = vmatprep.subr.mxu0 0.0
        %317 = vmatpush1.msra.mxu0 0.0
        %318 = vmatprep.subr.mxu0 0.0
        %319 = vmatpush1.msra.mxu0 0.0
        %320 = vmatprep.subr.mxu0 0.0
        %321 = vmatpush1.msra.mxu0 0.0
        %322 = vmatprep.subr.mxu0 0.0
        %323 = vmatpush1.msra.mxu0 0.0
        %324 = vmatprep.subr.mxu0 0.0
        %325 = vmatpush1.msra.mxu0 0.0
        %326 = vmatprep.subr.mxu0 0.0
        %327 = vmatpush1.msra.mxu0 0.0
        %328 = vmatprep.subr.mxu0 0.0
        %329 = vmatpush1.msra.mxu0 0.0
        %330 = vmatprep.subr.mxu0 0.0
        %331 = vmatpush1.msra.mxu0 0.0
        %332 = vmatprep.subr.mxu0 0.0
        %333 = vmatpush1.msra.mxu0 0.0
        %334 = vmatprep.subr.mxu0 0.0
        %335 = vmatpush1.msra.mxu0 0.0
        %336 = vmatprep.subr.mxu0 0.0
        %337 = vmatpush1.msra.mxu0 0.0
        %338 = vmatprep.subr.mxu0 0.0
        %339 = vmatpush1.msra.mxu0 0.0
        %340 = vmatprep.subr.mxu0 0.0
        %341 = vmatpush1.msra.mxu0 0.0
        %342 = vmatprep.subr.mxu0 0.0
        %343 = vmatpush1.msra.mxu0 0.0
        %344 = vmatprep.subr.mxu0 0.0
        %345 = vmatpush1.msra.mxu0 0.0
        %346 = vmatprep.subr.mxu0 0.0
        %347 = vmatpush1.msra.mxu0 0.0
        %348 = vmatprep.subr.mxu0 0.0
        %349 = vmatpush1.msra.mxu0 0.0
        %350 = vmatprep.subr.mxu0 0.0
        %351 = vmatpush1.msra.mxu0 0.0
        %352 = vmatprep.subr.mxu0 0.0
        %353 = vmatpush1.msra.mxu0 0.0
        %354 = vmatprep.subr.mxu0 0.0
        %355 = vmatpush1.msra.mxu0 0.0
        %356 = vmatprep.mubr.f32.mxu0 0.0
        %357 = vmatmul.mubr.f32.gmra.mrb[0].mxu0 %v290
        %v358 = vpop.f32.mrb[0].mxu0
        %v359 = vadd.f32 0.0, %v358
        %v360 = vpop.f32.mrb[0].mxu0
        %361 = vdwg.mxu0
        %s362 = scalar_lea.vmem %s5, 32
        %v363 = vld [vmem:[%s362] sm:$0xff]
        %v364 = vld [vmem:[%s362 + $0x8] sm:$0xff]
        %v365 = vld [vmem:[%s362 + $0x10] sm:$0xff]
        %v366 = vld [vmem:[%s362 + $0x18] sm:$0xff]
        %368 = vrot.lane.b32.xlu0 %v359, 96
        %v369 = vpop.permute.xlu0 %368
        %vm370 = vcmask 64512
        %v371 = vsel %vm370, %v359, 0
        %v373 = vsel %vm370, %v369, 0
        %375 = vmatprep.subr.mxu0 0.0
        %376 = vmatpush1.xpose.msra.mxu0 %v373
        %377 = vmatprep.subr.mxu0 0.0
        %378 = vmatpush1.xpose.msra.mxu0 0.0
        %379 = vmatprep.subr.mxu0 0.0
        %380 = vmatpush1.xpose.msra.mxu0 0.0
        %381 = vmatprep.subr.mxu0 0.0
        %382 = vmatpush1.xpose.msra.mxu0 0.0
        %383 = vmatprep.subr.mxu0 0.0
        %384 = vmatpush1.xpose.msra.mxu0 0.0
        %385 = vmatprep.subr.mxu0 0.0
        %386 = vmatpush1.xpose.msra.mxu0 0.0
        %387 = vmatprep.subr.mxu0 0.0
        %388 = vmatpush1.xpose.msra.mxu0 0.0
        %389 = vmatprep.subr.mxu0 0.0
        %390 = vmatpush1.xpose.msra.mxu0 0.0
        %391 = vmatprep.subr.mxu0 0.0
        %392 = vmatpush1.xpose.msra.mxu0 0.0
        %393 = vmatprep.subr.mxu0 0.0
        %394 = vmatpush1.xpose.msra.mxu0 0.0
        %395 = vmatprep.subr.mxu0 0.0
        %396 = vmatpush1.xpose.msra.mxu0 0.0
        %397 = vmatprep.subr.mxu0 0.0
        %398 = vmatpush1.xpose.msra.mxu0 0.0
        %399 = vmatprep.subr.mxu0 0.0
        %400 = vmatpush1.xpose.msra.mxu0 0.0
        %401 = vmatprep.subr.mxu0 0.0
        %402 = vmatpush1.xpose.msra.mxu0 0.0
        %403 = vmatprep.subr.mxu0 0.0
        %404 = vmatpush1.xpose.msra.mxu0 0.0
        %405 = vmatprep.subr.mxu0 0.0
        %406 = vmatpush1.xpose.msra.mxu0 0.0
        %407 = vmatprep.subr.mxu0 0.0
        %408 = vmatpush1.xpose.msra.mxu0 0.0
        %409 = vmatprep.subr.mxu0 0.0
        %410 = vmatpush1.xpose.msra.mxu0 0.0
        %411 = vmatprep.subr.mxu0 0.0
        %412 = vmatpush1.xpose.msra.mxu0 0.0
        %413 = vmatprep.subr.mxu0 0.0
        %414 = vmatpush1.xpose.msra.mxu0 0.0
        %415 = vmatprep.subr.mxu0 0.0
        %416 = vmatpush1.xpose.msra.mxu0 0.0
        %417 = vmatprep.subr.mxu0 0.0
        %418 = vmatpush1.xpose.msra.mxu0 0.0
        %419 = vmatprep.subr.mxu0 0.0
        %420 = vmatpush1.xpose.msra.mxu0 0.0
        %421 = vmatprep.subr.mxu0 0.0
        %422 = vmatpush1.xpose.msra.mxu0 0.0
        %423 = vmatprep.subr.mxu0 0.0
        %424 = vmatpush1.xpose.msra.mxu0 0.0
        %425 = vmatprep.subr.mxu0 0.0
        %426 = vmatpush1.xpose.msra.mxu0 0.0
        %427 = vmatprep.subr.mxu0 0.0
        %428 = vmatpush1.xpose.msra.mxu0 0.0
        %429 = vmatprep.subr.mxu0 0.0
        %430 = vmatpush1.xpose.msra.mxu0 0.0
        %431 = vmatprep.subr.mxu0 0.0
        %432 = vmatpush1.xpose.msra.mxu0 0.0
        %433 = vmatprep.subr.mxu0 0.0
        %434 = vmatpush1.xpose.msra.mxu0 0.0
        %435 = vmatprep.subr.mxu0 0.0
        %436 = vmatpush1.xpose.msra.mxu0 0.0
        %437 = vmatprep.subr.mxu0 0.0
        %438 = vmatpush1.xpose.msra.mxu0 0.0
        %439 = vmatprep.mubr.f32.mxu0 0.0
        %440 = vmatmul.mubr.f32.gmra.mrb[0].mxu0 %v371
        %v441 = vpop.f32.mrb[0].mxu0
        %v442 = vadd.f32 %v279, %v441
        %v443 = vpop.f32.mrb[0].mxu0
        %444 = vdwg.mxu0
        %v445 = vsel %vm370, %v442, -inf
        %446 = vmax.xlane.f32.xlu0 %v445
        %v447 = vpop.xlane.xlu0 %446
        %v448 = vsub.f32 %v442, %v447
        %v449 = vmul.f32 %v448, 1.442695
        %v450 = vpow.pop %v449
        %v451 = vsel %vm370, %v450, 0.0
        %452 = vadd.xlane.f32.xlu0 %v451
        %v453 = vpop.xlane.xlu0 %452
        %v454 = vrcp.pop %v453
        %v455 = vmul.f32 %v450, %v454
        %456 = vrot.lane.b32.xlu0 %v359, 64
        %v457 = vpop.permute.xlu0 %456
        %v460 = vsel %vm370, %v455, 0
        %462 = vmatprep.subr.mxu0 0.0
        %463 = vmatpush1.msra.mxu0 %v457
        %464 = vmatprep.subr.mxu0 0.0
        %465 = vmatpush1.msra.mxu0 0.0
        %466 = vmatprep.subr.mxu0 0.0
        %467 = vmatpush1.msra.mxu0 0.0
        %468 = vmatprep.subr.mxu0 0.0
        %469 = vmatpush1.msra.mxu0 0.0
        %470 = vmatprep.subr.mxu0 0.0
        %471 = vmatpush1.msra.mxu0 0.0
        %472 = vmatprep.subr.mxu0 0.0
        %473 = vmatpush1.msra.mxu0 0.0
        %474 = vmatprep.subr.mxu0 0.0
        %475 = vmatpush1.msra.mxu0 0.0
        %476 = vmatprep.subr.mxu0 0.0
        %477 = vmatpush1.msra.mxu0 0.0
        %478 = vmatprep.subr.mxu0 0.0
        %479 = vmatpush1.msra.mxu0 0.0
        %480 = vmatprep.subr.mxu0 0.0
        %481 = vmatpush1.msra.mxu0 0.0
        %482 = vmatprep.subr.mxu0 0.0
        %483 = vmatpush1.msra.mxu0 0.0
        %484 = vmatprep.subr.mxu0 0.0
        %485 = vmatpush1.msra.mxu0 0.0
        %486 = vmatprep.subr.mxu0 0.0
        %487 = vmatpush1.msra.mxu0 0.0
        %488 = vmatprep.subr.mxu0 0.0
        %489 = vmatpush1.msra.mxu0 0.0
        %490 = vmatprep.subr.mxu0 0.0
        %491 = vmatpush1.msra.mxu0 0.0
        %492 = vmatprep.subr.mxu0 0.0
        %493 = vmatpush1.msra.mxu0 0.0
        %494 = vmatprep.subr.mxu0 0.0
        %495 = vmatpush1.msra.mxu0 0.0
        %496 = vmatprep.subr.mxu0 0.0
        %497 = vmatpush1.msra.mxu0 0.0
        %498 = vmatprep.subr.mxu0 0.0
        %499 = vmatpush1.msra.mxu0 0.0
        %500 = vmatprep.subr.mxu0 0.0
        %501 = vmatpush1.msra.mxu0 0.0
        %502 = vmatprep.subr.mxu0 0.0
        %503 = vmatpush1.msra.mxu0 0.0
        %504 = vmatprep.subr.mxu0 0.0
        %505 = vmatpush1.msra.mxu0 0.0
        %506 = vmatprep.subr.mxu0 0.0
        %507 = vmatpush1.msra.mxu0 0.0
        %508 = vmatprep.subr.mxu0 0.0
        %509 = vmatpush1.msra.mxu0 0.0
        %510 = vmatprep.subr.mxu0 0.0
        %511 = vmatpush1.msra.mxu0 0.0
        %512 = vmatprep.subr.mxu0 0.0
        %513 = vmatpush1.msra.mxu0 0.0
        %514 = vmatprep.subr.mxu0 0.0
        %515 = vmatpush1.msra.mxu0 0.0
        %516 = vmatprep.subr.mxu0 0.0
        %517 = vmatpush1.msra.mxu0 0.0
        %518 = vmatprep.subr.mxu0 0.0
        %519 = vmatpush1.msra.mxu0 0.0
        %520 = vmatprep.subr.mxu0 0.0
        %521 = vmatpush1.msra.mxu0 0.0
        %522 = vmatprep.subr.mxu0 0.0
        %523 = vmatpush1.msra.mxu0 0.0
        %524 = vmatprep.subr.mxu0 0.0
        %525 = vmatpush1.msra.mxu0 0.0
        %526 = vmatprep.mubr.f32.mxu0 0.0
        %527 = vmatmul.mubr.f32.gmra.mrb[0].mxu0 %v460
        %v528 = vpop.f32.mrb[0].mxu0
        %v529 = vadd.f32 0.0, %v528
        %v530 = vpop.f32.mrb[0].mxu0
        %531 = vdwg.mxu0
        %532 = vrot.lane.b32.xlu0 %v359, 120
        %v533 = vpop.permute.xlu0 %532
        %534 = vrot.lane.b32.xlu0 %v359, 88
        %v535 = vpop.permute.xlu0 %534
        %v536 = vsel %vm370, %v533, 0
        %v538 = vsel %vm370, %v535, 0
        %540 = vmatprep.subr.mxu0 0.0
        %541 = vmatpush1.xpose.msra.mxu0 %v538
        %542 = vmatprep.subr.mxu0 0.0
        %543 = vmatpush1.xpose.msra.mxu0 0.0
        %544 = vmatprep.subr.mxu0 0.0
        %545 = vmatpush1.xpose.msra.mxu0 0.0
        %546 = vmatprep.subr.mxu0 0.0
        %547 = vmatpush1.xpose.msra.mxu0 0.0
        %548 = vmatprep.subr.mxu0 0.0
        %549 = vmatpush1.xpose.msra.mxu0 0.0
        %550 = vmatprep.subr.mxu0 0.0
        %551 = vmatpush1.xpose.msra.mxu0 0.0
        %552 = vmatprep.subr.mxu0 0.0
        %553 = vmatpush1.xpose.msra.mxu0 0.0
        %554 = vmatprep.subr.mxu0 0.0
        %555 = vmatpush1.xpose.msra.mxu0 0.0
        %556 = vmatprep.subr.mxu0 0.0
        %557 = vmatpush1.xpose.msra.mxu0 0.0
        %558 = vmatprep.subr.mxu0 0.0
        %559 = vmatpush1.xpose.msra.mxu0 0.0
        %560 = vmatprep.subr.mxu0 0.0
        %561 = vmatpush1.xpose.msra.mxu0 0.0
        %562 = vmatprep.subr.mxu0 0.0
        %563 = vmatpush1.xpose.msra.mxu0 0.0
        %564 = vmatprep.subr.mxu0 0.0
        %565 = vmatpush1.xpose.msra.mxu0 0.0
        %566 = vmatprep.subr.mxu0 0.0
        %567 = vmatpush1.xpose.msra.mxu0 0.0
        %568 = vmatprep.subr.mxu0 0.0
        %569 = vmatpush1.xpose.msra.mxu0 0.0
        %570 = vmatprep.subr.mxu0 0.0
        %571 = vmatpush1.xpose.msra.mxu0 0.0
        %572 = vmatprep.subr.mxu0 0.0
        %573 = vmatpush1.xpose.msra.mxu0 0.0
        %574 = vmatprep.subr.mxu0 0.0
        %575 = vmatpush1.xpose.msra.mxu0 0.0
        %576 = vmatprep.subr.mxu0 0.0
        %577 = vmatpush1.xpose.msra.mxu0 0.0
        %578 = vmatprep.subr.mxu0 0.0
        %579 = vmatpush1.xpose.msra.mxu0 0.0
        %580 = vmatprep.subr.mxu0 0.0
        %581 = vmatpush1.xpose.msra.mxu0 0.0
        %582 = vmatprep.subr.mxu0 0.0
        %583 = vmatpush1.xpose.msra.mxu0 0.0
        %584 = vmatprep.subr.mxu0 0.0
        %585 = vmatpush1.xpose.msra.mxu0 0.0
        %586 = vmatprep.subr.mxu0 0.0
        %587 = vmatpush1.xpose.msra.mxu0 0.0
        %588 = vmatprep.subr.mxu0 0.0
        %589 = vmatpush1.xpose.msra.mxu0 0.0
        %590 = vmatprep.subr.mxu0 0.0
        %591 = vmatpush1.xpose.msra.mxu0 0.0
        %592 = vmatprep.subr.mxu0 0.0
        %593 = vmatpush1.xpose.msra.mxu0 0.0
        %594 = vmatprep.subr.mxu0 0.0
        %595 = vmatpush1.xpose.msra.mxu0 0.0
        %596 = vmatprep.subr.mxu0 0.0
        %597 = vmatpush1.xpose.msra.mxu0 0.0
        %598 = vmatprep.subr.mxu0 0.0
        %599 = vmatpush1.xpose.msra.mxu0 0.0
        %600 = vmatprep.subr.mxu0 0.0
        %601 = vmatpush1.xpose.msra.mxu0 0.0
        %602 = vmatprep.subr.mxu0 0.0
        %603 = vmatpush1.xpose.msra.mxu0 0.0
        %604 = vmatprep.mubr.f32.mxu0 0.0
        %605 = vmatmul.mubr.f32.gmra.mrb[0].mxu0 %v536
        %v606 = vpop.f32.mrb[0].mxu0
        %v607 = vadd.f32 %v279, %v606
        %v608 = vpop.f32.mrb[0].mxu0
        %609 = vdwg.mxu0
        %v610 = vsel %vm370, %v607, -inf
        %611 = vmax.xlane.f32.xlu0 %v610
        %v612 = vpop.xlane.xlu0 %611
        %v613 = vsub.f32 %v607, %v612
        %v614 = vmul.f32 %v613, 1.442695
        %v615 = vpow.pop %v614
        %v616 = vsel %vm370, %v615, 0.0
        %617 = vadd.xlane.f32.xlu0 %v616
        %v618 = vpop.xlane.xlu0 %617
        %v619 = vrcp.pop %v618
        %v620 = vmul.f32 %v615, %v619
        %621 = vrot.lane.b32.xlu0 %v359, 56
        %v622 = vpop.permute.xlu0 %621
        %v625 = vsel %vm370, %v620, 0
        %627 = vmatprep.subr.mxu0 0.0
        %628 = vmatpush1.msra.mxu0 %v622
        %629 = vmatprep.subr.mxu0 0.0
        %630 = vmatpush1.msra.mxu0 0.0
        %631 = vmatprep.subr.mxu0 0.0
        %632 = vmatpush1.msra.mxu0 0.0
        %633 = vmatprep.subr.mxu0 0.0
        %634 = vmatpush1.msra.mxu0 0.0
        %635 = vmatprep.subr.mxu0 0.0
        %636 = vmatpush1.msra.mxu0 0.0
        %637 = vmatprep.subr.mxu0 0.0
        %638 = vmatpush1.msra.mxu0 0.0
        %639 = vmatprep.subr.mxu0 0.0
        %640 = vmatpush1.msra.mxu0 0.0
        %641 = vmatprep.subr.mxu0 0.0
        %642 = vmatpush1.msra.mxu0 0.0
        %643 = vmatprep.subr.mxu0 0.0
        %644 = vmatpush1.msra.mxu0 0.0
        %645 = vmatprep.subr.mxu0 0.0
        %646 = vmatpush1.msra.mxu0 0.0
        %647 = vmatprep.subr.mxu0 0.0
        %648 = vmatpush1.msra.mxu0 0.0
        %649 = vmatprep.subr.mxu0 0.0
        %650 = vmatpush1.msra.mxu0 0.0
        %651 = vmatprep.subr.mxu0 0.0
        %652 = vmatpush1.msra.mxu0 0.0
        %653 = vmatprep.subr.mxu0 0.0
        %654 = vmatpush1.msra.mxu0 0.0
        %655 = vmatprep.subr.mxu0 0.0
        %656 = vmatpush1.msra.mxu0 0.0
        %657 = vmatprep.subr.mxu0 0.0
        %658 = vmatpush1.msra.mxu0 0.0
        %659 = vmatprep.subr.mxu0 0.0
        %660 = vmatpush1.msra.mxu0 0.0
        %661 = vmatprep.subr.mxu0 0.0
        %662 = vmatpush1.msra.mxu0 0.0
        %663 = vmatprep.subr.mxu0 0.0
        %664 = vmatpush1.msra.mxu0 0.0
        %665 = vmatprep.subr.mxu0 0.0
        %666 = vmatpush1.msra.mxu0 0.0
        %667 = vmatprep.subr.mxu0 0.0
        %668 = vmatpush1.msra.mxu0 0.0
        %669 = vmatprep.subr.mxu0 0.0
        %670 = vmatpush1.msra.mxu0 0.0
        %671 = vmatprep.subr.mxu0 0.0
        %672 = vmatpush1.msra.mxu0 0.0
        %673 = vmatprep.subr.mxu0 0.0
        %674 = vmatpush1.msra.mxu0 0.0
        %675 = vmatprep.subr.mxu0 0.0
        %676 = vmatpush1.msra.mxu0 0.0
        %677 = vmatprep.subr.mxu0 0.0
        %678 = vmatpush1.msra.mxu0 0.0
        %679 = vmatprep.subr.mxu0 0.0
        %680 = vmatpush1.msra.mxu0 0.0
        %681 = vmatprep.subr.mxu0 0.0
        %682 = vmatpush1.msra.mxu0 0.0
        %683 = vmatprep.subr.mxu0 0.0
        %684 = vmatpush1.msra.mxu0 0.0
        %685 = vmatprep.subr.mxu0 0.0
        %686 = vmatpush1.msra.mxu0 0.0
        %687 = vmatprep.subr.mxu0 0.0
        %688 = vmatpush1.msra.mxu0 0.0
        %689 = vmatprep.subr.mxu0 0.0
        %690 = vmatpush1.msra.mxu0 0.0
        %691 = vmatprep.mubr.f32.mxu0 0.0
        %692 = vmatmul.mubr.f32.gmra.mrb[0].mxu0 %v625
        %v693 = vpop.f32.mrb[0].mxu0
        %v694 = vadd.f32 0.0, %v693
        %v695 = vpop.f32.mrb[0].mxu0
        %696 = vdwg.mxu0
        %v698 = vsel %vm370, %v694, 0
        %700 = vmatprep.subr.mxu0 0.0
        %701 = vmatpush1.msra.mxu0 %v364
        %702 = vmatprep.subr.mxu0 0.0
        %703 = vmatpush1.msra.mxu0 0.0
        %704 = vmatprep.subr.mxu0 0.0
        %705 = vmatpush1.msra.mxu0 0.0
        %706 = vmatprep.subr.mxu0 0.0
        %707 = vmatpush1.msra.mxu0 0.0
        %708 = vmatprep.subr.mxu0 0.0
        %709 = vmatpush1.msra.mxu0 0.0
        %710 = vmatprep.subr.mxu0 0.0
        %711 = vmatpush1.msra.mxu0 0.0
        %712 = vmatprep.subr.mxu0 0.0
        %713 = vmatpush1.msra.mxu0 0.0
        %714 = vmatprep.subr.mxu0 0.0
        %715 = vmatpush1.msra.mxu0 0.0
        %716 = vmatprep.subr.mxu0 0.0
        %717 = vmatpush1.msra.mxu0 0.0
        %718 = vmatprep.subr.mxu0 0.0
        %719 = vmatpush1.msra.mxu0 0.0
        %720 = vmatprep.subr.mxu0 0.0
        %721 = vmatpush1.msra.mxu0 0.0
        %722 = vmatprep.subr.mxu0 0.0
        %723 = vmatpush1.msra.mxu0 0.0
        %724 = vmatprep.subr.mxu0 0.0
        %725 = vmatpush1.msra.mxu0 0.0
        %726 = vmatprep.subr.mxu0 0.0
        %727 = vmatpush1.msra.mxu0 0.0
        %728 = vmatprep.subr.mxu0 0.0
        %729 = vmatpush1.msra.mxu0 0.0
        %730 = vmatprep.subr.mxu0 0.0
        %731 = vmatpush1.msra.mxu0 0.0
        %732 = vmatprep.subr.mxu0 0.0
        %733 = vmatpush1.msra.mxu0 0.0
        %734 = vmatprep.subr.mxu0 0.0
        %735 = vmatpush1.msra.mxu0 0.0
        %736 = vmatprep.subr.mxu0 0.0
        %737 = vmatpush1.msra.mxu0 0.0
        %738 = vmatprep.subr.mxu0 0.0
        %739 = vmatpush1.msra.mxu0 0.0
        %740 = vmatprep.subr.mxu0 0.0
        %741 = vmatpush1.msra.mxu0 0.0
        %742 = vmatprep.subr.mxu0 0.0
        %743 = vmatpush1.msra.mxu0 0.0
        %744 = vmatprep.subr.mxu0 0.0
        %745 = vmatpush1.msra.mxu0 0.0
        %746 = vmatprep.subr.mxu0 0.0
        %747 = vmatpush1.msra.mxu0 0.0
        %748 = vmatprep.subr.mxu0 0.0
        %749 = vmatpush1.msra.mxu0 0.0
        %750 = vmatprep.subr.mxu0 0.0
        %751 = vmatpush1.msra.mxu0 0.0
        %752 = vmatprep.subr.mxu0 0.0
        %753 = vmatpush1.msra.mxu0 0.0
        %754 = vmatprep.subr.mxu0 0.0
        %755 = vmatpush1.msra.mxu0 0.0
        %756 = vmatprep.subr.mxu0 0.0
        %757 = vmatpush1.msra.mxu0 0.0
        %758 = vmatprep.subr.mxu0 0.0
        %759 = vmatpush1.msra.mxu0 0.0
        %760 = vmatprep.subr.mxu0 0.0
        %761 = vmatpush1.msra.mxu0 0.0
        %762 = vmatprep.subr.mxu0 0.0
        %763 = vmatpush1.msra.mxu0 0.0
        %764 = vmatprep.mubr.f32.mxu0 0.0
        %765 = vmatmul.mubr.f32.gmra.mrb[0].mxu0 %v698
        %v766 = vpop.f32.mrb[0].mxu0
        %v767 = vadd.f32 0.0, %v766
        %v768 = vpop.f32.mrb[0].mxu0
        %769 = vdwg.mxu0
        %v771 = vsel %vm370, %v529, 0
        %773 = vmatprep.subr.mxu0 0.0
        %774 = vmatpush1.msra.mxu0 %v363
        %775 = vmatprep.subr.mxu0 0.0
        %776 = vmatpush1.msra.mxu0 0.0
        %777 = vmatprep.subr.mxu0 0.0
        %778 = vmatpush1.msra.mxu0 0.0
        %779 = vmatprep.subr.mxu0 0.0
        %780 = vmatpush1.msra.mxu0 0.0
        %781 = vmatprep.subr.mxu0 0.0
        %782 = vmatpush1.msra.mxu0 0.0
        %783 = vmatprep.subr.mxu0 0.0
        %784 = vmatpush1.msra.mxu0 0.0
        %785 = vmatprep.subr.mxu0 0.0
        %786 = vmatpush1.msra.mxu0 0.0
        %787 = vmatprep.subr.mxu0 0.0
        %788 = vmatpush1.msra.mxu0 0.0
        %789 = vmatprep.subr.mxu0 0.0
        %790 = vmatpush1.msra.mxu0 0.0
        %791 = vmatprep.subr.mxu0 0.0
        %792 = vmatpush1.msra.mxu0 0.0
        %793 = vmatprep.subr.mxu0 0.0
        %794 = vmatpush1.msra.mxu0 0.0
        %795 = vmatprep.subr.mxu0 0.0
        %796 = vmatpush1.msra.mxu0 0.0
        %797 = vmatprep.subr.mxu0 0.0
        %798 = vmatpush1.msra.mxu0 0.0
        %799 = vmatprep.subr.mxu0 0.0
        %800 = vmatpush1.msra.mxu0 0.0
        %801 = vmatprep.subr.mxu0 0.0
        %802 = vmatpush1.msra.mxu0 0.0
        %803 = vmatprep.subr.mxu0 0.0
        %804 = vmatpush1.msra.mxu0 0.0
        %805 = vmatprep.subr.mxu0 0.0
        %806 = vmatpush1.msra.mxu0 0.0
        %807 = vmatprep.subr.mxu0 0.0
        %808 = vmatpush1.msra.mxu0 0.0
        %809 = vmatprep.subr.mxu0 0.0
        %810 = vmatpush1.msra.mxu0 0.0
        %811 = vmatprep.subr.mxu0 0.0
        %812 = vmatpush1.msra.mxu0 0.0
        %813 = vmatprep.subr.mxu0 0.0
        %814 = vmatpush1.msra.mxu0 0.0
        %815 = vmatprep.subr.mxu0 0.0
        %816 = vmatpush1.msra.mxu0 0.0
        %817 = vmatprep.subr.mxu0 0.0
        %818 = vmatpush1.msra.mxu0 0.0
        %819 = vmatprep.subr.mxu0 0.0
        %820 = vmatpush1.msra.mxu0 0.0
        %821 = vmatprep.subr.mxu0 0.0
        %822 = vmatpush1.msra.mxu0 0.0
        %823 = vmatprep.subr.mxu0 0.0
        %824 = vmatpush1.msra.mxu0 0.0
        %825 = vmatprep.subr.mxu0 0.0
        %826 = vmatpush1.msra.mxu0 0.0
        %827 = vmatprep.subr.mxu0 0.0
        %828 = vmatpush1.msra.mxu0 0.0
        %829 = vmatprep.subr.mxu0 0.0
        %830 = vmatpush1.msra.mxu0 0.0
        %831 = vmatprep.subr.mxu0 0.0
        %832 = vmatpush1.msra.mxu0 0.0
        %833 = vmatprep.subr.mxu0 0.0
        %834 = vmatpush1.msra.mxu0 0.0
        %835 = vmatprep.subr.mxu0 0.0
        %836 = vmatpush1.msra.mxu0 0.0
        %837 = vmatprep.mubr.f32.mxu0 0.0
        %838 = vmatmul.mubr.f32.gmra.mrb[0].mxu0 %v771
        %v839 = vpop.f32.mrb[0].mxu0
        %v840 = vadd.f32 %v767, %v839
        %v841 = vpop.f32.mrb[0].mxu0
        %842 = vdwg.mxu0
        %843 = vrot.lane.b32.xlu0 %v359, 112
        %v844 = vpop.permute.xlu0 %843
        %845 = vrot.lane.b32.xlu0 %v359, 80
        %v846 = vpop.permute.xlu0 %845
        %v847 = vsel %vm370, %v844, 0
        %v849 = vsel %vm370, %v846, 0
        %851 = vmatprep.subr.mxu0 0.0
        %852 = vmatpush1.xpose.msra.mxu0 %v849
        %853 = vmatprep.subr.mxu0 0.0
        %854 = vmatpush1.xpose.msra.mxu0 0.0
        %855 = vmatprep.subr.mxu0 0.0
        %856 = vmatpush1.xpose.msra.mxu0 0.0
        %857 = vmatprep.subr.mxu0 0.0
        %858 = vmatpush1.xpose.msra.mxu0 0.0
        %859 = vmatprep.subr.mxu0 0.0
        %860 = vmatpush1.xpose.msra.mxu0 0.0
        %861 = vmatprep.subr.mxu0 0.0
        %862 = vmatpush1.xpose.msra.mxu0 0.0
        %863 = vmatprep.subr.mxu0 0.0
        %864 = vmatpush1.xpose.msra.mxu0 0.0
        %865 = vmatprep.subr.mxu0 0.0
        %866 = vmatpush1.xpose.msra.mxu0 0.0
        %867 = vmatprep.subr.mxu0 0.0
        %868 = vmatpush1.xpose.msra.mxu0 0.0
        %869 = vmatprep.subr.mxu0 0.0
        %870 = vmatpush1.xpose.msra.mxu0 0.0
        %871 = vmatprep.subr.mxu0 0.0
        %872 = vmatpush1.xpose.msra.mxu0 0.0
        %873 = vmatprep.subr.mxu0 0.0
        %874 = vmatpush1.xpose.msra.mxu0 0.0
        %875 = vmatprep.subr.mxu0 0.0
        %876 = vmatpush1.xpose.msra.mxu0 0.0
        %877 = vmatprep.subr.mxu0 0.0
        %878 = vmatpush1.xpose.msra.mxu0 0.0
        %879 = vmatprep.subr.mxu0 0.0
        %880 = vmatpush1.xpose.msra.mxu0 0.0
        %881 = vmatprep.subr.mxu0 0.0
        %882 = vmatpush1.xpose.msra.mxu0 0.0
        %883 = vmatprep.subr.mxu0 0.0
        %884 = vmatpush1.xpose.msra.mxu0 0.0
        %885 = vmatprep.subr.mxu0 0.0
        %886 = vmatpush1.xpose.msra.mxu0 0.0
        %887 = vmatprep.subr.mxu0 0.0
        %888 = vmatpush1.xpose.msra.mxu0 0.0
        %889 = vmatprep.subr.mxu0 0.0
        %890 = vmatpush1.xpose.msra.mxu0 0.0
        %891 = vmatprep.subr.mxu0 0.0
        %892 = vmatpush1.xpose.msra.mxu0 0.0
        %893 = vmatprep.subr.mxu0 0.0
        %894 = vmatpush1.xpose.msra.mxu0 0.0
        %895 = vmatprep.subr.mxu0 0.0
        %896 = vmatpush1.xpose.msra.mxu0 0.0
        %897 = vmatprep.subr.mxu0 0.0
        %898 = vmatpush1.xpose.msra.mxu0 0.0
        %899 = vmatprep.subr.mxu0 0.0
        %900 = vmatpush1.xpose.msra.mxu0 0.0
        %901 = vmatprep.subr.mxu0 0.0
        %902 = vmatpush1.xpose.msra.mxu0 0.0
        %903 = vmatprep.subr.mxu0 0.0
        %904 = vmatpush1.xpose.msra.mxu0 0.0
        %905 = vmatprep.subr.mxu0 0.0
        %906 = vmatpush1.xpose.msra.mxu0 0.0
        %907 = vmatprep.subr.mxu0 0.0
        %908 = vmatpush1.xpose.msra.mxu0 0.0
        %909 = vmatprep.subr.mxu0 0.0
        %910 = vmatpush1.xpose.msra.mxu0 0.0
        %911 = vmatprep.subr.mxu0 0.0
        %912 = vmatpush1.xpose.msra.mxu0 0.0
        %913 = vmatprep.subr.mxu0 0.0
        %914 = vmatpush1.xpose.msra.mxu0 0.0
        %915 = vmatprep.mubr.f32.mxu0 0.0
        %916 = vmatmul.mubr.f32.gmra.mrb[0].mxu0 %v847
        %v917 = vpop.f32.mrb[0].mxu0
        %v918 = vadd.f32 %v279, %v917
        %v919 = vpop.f32.mrb[0].mxu0
        %920 = vdwg.mxu0
        %v921 = vsel %vm370, %v918, -inf
        %922 = vmax.xlane.f32.xlu0 %v921
        %v923 = vpop.xlane.xlu0 %922
        %v924 = vsub.f32 %v918, %v923
        %v925 = vmul.f32 %v924, 1.442695
        %v926 = vpow.pop %v925
        %v927 = vsel %vm370, %v926, 0.0
        %928 = vadd.xlane.f32.xlu0 %v927
        %v929 = vpop.xlane.xlu0 %928
        %v930 = vrcp.pop %v929
        %v931 = vmul.f32 %v926, %v930
        %932 = vrot.lane.b32.xlu0 %v359, 48
        %v933 = vpop.permute.xlu0 %932
        %v936 = vsel %vm370, %v931, 0
        %938 = vmatprep.subr.mxu0 0.0
        %939 = vmatpush1.msra.mxu0 %v933
        %940 = vmatprep.subr.mxu0 0.0
        %941 = vmatpush1.msra.mxu0 0.0
        %942 = vmatprep.subr.mxu0 0.0
        %943 = vmatpush1.msra.mxu0 0.0
        %944 = vmatprep.subr.mxu0 0.0
        %945 = vmatpush1.msra.mxu0 0.0
        %946 = vmatprep.subr.mxu0 0.0
        %947 = vmatpush1.msra.mxu0 0.0
        %948 = vmatprep.subr.mxu0 0.0
        %949 = vmatpush1.msra.mxu0 0.0
        %950 = vmatprep.subr.mxu0 0.0
        %951 = vmatpush1.msra.mxu0 0.0
        %952 = vmatprep.subr.mxu0 0.0
        %953 = vmatpush1.msra.mxu0 0.0
        %954 = vmatprep.subr.mxu0 0.0
        %955 = vmatpush1.msra.mxu0 0.0
        %956 = vmatprep.subr.mxu0 0.0
        %957 = vmatpush1.msra.mxu0 0.0
        %958 = vmatprep.subr.mxu0 0.0
        %959 = vmatpush1.msra.mxu0 0.0
        %960 = vmatprep.subr.mxu0 0.0
        %961 = vmatpush1.msra.mxu0 0.0
        %962 = vmatprep.subr.mxu0 0.0
        %963 = vmatpush1.msra.mxu0 0.0
        %964 = vmatprep.subr.mxu0 0.0
        %965 = vmatpush1.msra.mxu0 0.0
        %966 = vmatprep.subr.mxu0 0.0
        %967 = vmatpush1.msra.mxu0 0.0
        %968 = vmatprep.subr.mxu0 0.0
        %969 = vmatpush1.msra.mxu0 0.0
        %970 = vmatprep.subr.mxu0 0.0
        %971 = vmatpush1.msra.mxu0 0.0
        %972 = vmatprep.subr.mxu0 0.0
        %973 = vmatpush1.msra.mxu0 0.0
        %974 = vmatprep.subr.mxu0 0.0
        %975 = vmatpush1.msra.mxu0 0.0
        %976 = vmatprep.subr.mxu0 0.0
        %977 = vmatpush1.msra.mxu0 0.0
        %978 = vmatprep.subr.mxu0 0.0
        %979 = vmatpush1.msra.mxu0 0.0
        %980 = vmatprep.subr.mxu0 0.0
        %981 = vmatpush1.msra.mxu0 0.0
        %982 = vmatprep.subr.mxu0 0.0
        %983 = vmatpush1.msra.mxu0 0.0
        %984 = vmatprep.subr.mxu0 0.0
        %985 = vmatpush1.msra.mxu0 0.0
        %986 = vmatprep.subr.mxu0 0.0
        %987 = vmatpush1.msra.mxu0 0.0
        %988 = vmatprep.subr.mxu0 0.0
        %989 = vmatpush1.msra.mxu0 0.0
        %990 = vmatprep.subr.mxu0 0.0
        %991 = vmatpush1.msra.mxu0 0.0
        %992 = vmatprep.subr.mxu0 0.0
        %993 = vmatpush1.msra.mxu0 0.0
        %994 = vmatprep.subr.mxu0 0.0
        %995 = vmatpush1.msra.mxu0 0.0
        %996 = vmatprep.subr.mxu0 0.0
        %997 = vmatpush1.msra.mxu0 0.0
        %998 = vmatprep.subr.mxu0 0.0
        %999 = vmatpush1.msra.mxu0 0.0
        %1000 = vmatprep.subr.mxu0 0.0
        %1001 = vmatpush1.msra.mxu0 0.0
        %1002 = vmatprep.mubr.f32.mxu0 0.0
        %1003 = vmatmul.mubr.f32.gmra.mrb[0].mxu0 %v936
        %v1004 = vpop.f32.mrb[0].mxu0
        %v1005 = vadd.f32 0.0, %v1004
        %v1006 = vpop.f32.mrb[0].mxu0
        %1007 = vdwg.mxu0
        %v1009 = vsel %vm370, %v1005, 0
        %1011 = vmatprep.subr.mxu0 0.0
        %1012 = vmatpush1.msra.mxu0 %v365
        %1013 = vmatprep.subr.mxu0 0.0
        %1014 = vmatpush1.msra.mxu0 0.0
        %1015 = vmatprep.subr.mxu0 0.0
        %1016 = vmatpush1.msra.mxu0 0.0
        %1017 = vmatprep.subr.mxu0 0.0
        %1018 = vmatpush1.msra.mxu0 0.0
        %1019 = vmatprep.subr.mxu0 0.0
        %1020 = vmatpush1.msra.mxu0 0.0
        %1021 = vmatprep.subr.mxu0 0.0
        %1022 = vmatpush1.msra.mxu0 0.0
        %1023 = vmatprep.subr.mxu0 0.0
        %1024 = vmatpush1.msra.mxu0 0.0
        %1025 = vmatprep.subr.mxu0 0.0
        %1026 = vmatpush1.msra.mxu0 0.0
        %1027 = vmatprep.subr.mxu0 0.0
        %1028 = vmatpush1.msra.mxu0 0.0
        %1029 = vmatprep.subr.mxu0 0.0
        %1030 = vmatpush1.msra.mxu0 0.0
        %1031 = vmatprep.subr.mxu0 0.0
        %1032 = vmatpush1.msra.mxu0 0.0
        %1033 = vmatprep.subr.mxu0 0.0
        %1034 = vmatpush1.msra.mxu0 0.0
        %1035 = vmatprep.subr.mxu0 0.0
        %1036 = vmatpush1.msra.mxu0 0.0
        %1037 = vmatprep.subr.mxu0 0.0
        %1038 = vmatpush1.msra.mxu0 0.0
        %1039 = vmatprep.subr.mxu0 0.0
        %1040 = vmatpush1.msra.mxu0 0.0
        %1041 = vmatprep.subr.mxu0 0.0
        %1042 = vmatpush1.msra.mxu0 0.0
        %1043 = vmatprep.subr.mxu0 0.0
        %1044 = vmatpush1.msra.mxu0 0.0
        %1045 = vmatprep.subr.mxu0 0.0
        %1046 = vmatpush1.msra.mxu0 0.0
        %1047 = vmatprep.subr.mxu0 0.0
        %1048 = vmatpush1.msra.mxu0 0.0
        %1049 = vmatprep.subr.mxu0 0.0
        %1050 = vmatpush1.msra.mxu0 0.0
        %1051 = vmatprep.subr.mxu0 0.0
        %1052 = vmatpush1.msra.mxu0 0.0
        %1053 = vmatprep.subr.mxu0 0.0
        %1054 = vmatpush1.msra.mxu0 0.0
        %1055 = vmatprep.subr.mxu0 0.0
        %1056 = vmatpush1.msra.mxu0 0.0
        %1057 = vmatprep.subr.mxu0 0.0
        %1058 = vmatpush1.msra.mxu0 0.0
        %1059 = vmatprep.subr.mxu0 0.0
        %1060 = vmatpush1.msra.mxu0 0.0
        %1061 = vmatprep.subr.mxu0 0.0
        %1062 = vmatpush1.msra.mxu0 0.0
        %1063 = vmatprep.subr.mxu0 0.0
        %1064 = vmatpush1.msra.mxu0 0.0
        %1065 = vmatprep.subr.mxu0 0.0
        %1066 = vmatpush1.msra.mxu0 0.0
        %1067 = vmatprep.subr.mxu0 0.0
        %1068 = vmatpush1.msra.mxu0 0.0
        %1069 = vmatprep.subr.mxu0 0.0
        %1070 = vmatpush1.msra.mxu0 0.0
        %1071 = vmatprep.subr.mxu0 0.0
        %1072 = vmatpush1.msra.mxu0 0.0
        %1073 = vmatprep.subr.mxu0 0.0
        %1074 = vmatpush1.msra.mxu0 0.0
        %1075 = vmatprep.mubr.f32.mxu0 0.0
        %1076 = vmatmul.mubr.f32.gmra.mrb[0].mxu0 %v1009
        %v1077 = vpop.f32.mrb[0].mxu0
        %v1078 = vadd.f32 0.0, %v1077
        %v1079 = vpop.f32.mrb[0].mxu0
        %1080 = vdwg.mxu0
        %v1081 = vadd.f32 %v840, %v1078
        %1082 = vrot.lane.b32.xlu0 %v359, 104
        %v1083 = vpop.permute.xlu0 %1082
        %1084 = vrot.lane.b32.xlu0 %v359, 72
        %v1085 = vpop.permute.xlu0 %1084
        %v1086 = vsel %vm370, %v1083, 0
        %v1088 = vsel %vm370, %v1085, 0
        %1090 = vmatprep.subr.mxu0 0.0
        %1091 = vmatpush1.xpose.msra.mxu0 %v1088
        %1092 = vmatprep.subr.mxu0 0.0
        %1093 = vmatpush1.xpose.msra.mxu0 0.0
        %1094 = vmatprep.subr.mxu0 0.0
        %1095 = vmatpush1.xpose.msra.mxu0 0.0
        %1096 = vmatprep.subr.mxu0 0.0
        %1097 = vmatpush1.xpose.msra.mxu0 0.0
        %1098 = vmatprep.subr.mxu0 0.0
        %1099 = vmatpush1.xpose.msra.mxu0 0.0
        %1100 = vmatprep.subr.mxu0 0.0
        %1101 = vmatpush1.xpose.msra.mxu0 0.0
        %1102 = vmatprep.subr.mxu0 0.0
        %1103 = vmatpush1.xpose.msra.mxu0 0.0
        %1104 = vmatprep.subr.mxu0 0.0
        %1105 = vmatpush1.xpose.msra.mxu0 0.0
        %1106 = vmatprep.subr.mxu0 0.0
        %1107 = vmatpush1.xpose.msra.mxu0 0.0
        %1108 = vmatprep.subr.mxu0 0.0
        %1109 = vmatpush1.xpose.msra.mxu0 0.0
        %1110 = vmatprep.subr.mxu0 0.0
        %1111 = vmatpush1.xpose.msra.mxu0 0.0
        %1112 = vmatprep.subr.mxu0 0.0
        %1113 = vmatpush1.xpose.msra.mxu0 0.0
        %1114 = vmatprep.subr.mxu0 0.0
        %1115 = vmatpush1.xpose.msra.mxu0 0.0
        %1116 = vmatprep.subr.mxu0 0.0
        %1117 = vmatpush1.xpose.msra.mxu0 0.0
        %1118 = vmatprep.subr.mxu0 0.0
        %1119 = vmatpush1.xpose.msra.mxu0 0.0
        %1120 = vmatprep.subr.mxu0 0.0
        %1121 = vmatpush1.xpose.msra.mxu0 0.0
        %1122 = vmatprep.subr.mxu0 0.0
        %1123 = vmatpush1.xpose.msra.mxu0 0.0
        %1124 = vmatprep.subr.mxu0 0.0
        %1125 = vmatpush1.xpose.msra.mxu0 0.0
        %1126 = vmatprep.subr.mxu0 0.0
        %1127 = vmatpush1.xpose.msra.mxu0 0.0
        %1128 = vmatprep.subr.mxu0 0.0
        %1129 = vmatpush1.xpose.msra.mxu0 0.0
        %1130 = vmatprep.subr.mxu0 0.0
        %1131 = vmatpush1.xpose.msra.mxu0 0.0
        %1132 = vmatprep.subr.mxu0 0.0
        %1133 = vmatpush1.xpose.msra.mxu0 0.0
        %1134 = vmatprep.subr.mxu0 0.0
        %1135 = vmatpush1.xpose.msra.mxu0 0.0
        %1136 = vmatprep.subr.mxu0 0.0
        %1137 = vmatpush1.xpose.msra.mxu0 0.0
        %1138 = vmatprep.subr.mxu0 0.0
        %1139 = vmatpush1.xpose.msra.mxu0 0.0
        %1140 = vmatprep.subr.mxu0 0.0
        %1141 = vmatpush1.xpose.msra.mxu0 0.0
        %1142 = vmatprep.subr.mxu0 0.0
        %1143 = vmatpush1.xpose.msra.mxu0 0.0
        %1144 = vmatprep.subr.mxu0 0.0
        %1145 = vmatpush1.xpose.msra.mxu0 0.0
        %1146 = vmatprep.subr.mxu0 0.0
        %1147 = vmatpush1.xpose.msra.mxu0 0.0
        %1148 = vmatprep.subr.mxu0 0.0
        %1149 = vmatpush1.xpose.msra.mxu0 0.0
        %1150 = vmatprep.subr.mxu0 0.0
        %1151 = vmatpush1.xpose.msra.mxu0 0.0
        %1152 = vmatprep.subr.mxu0 0.0
        %1153 = vmatpush1.xpose.msra.mxu0 0.0
        %1154 = vmatprep.mubr.f32.mxu0 0.0
        %1155 = vmatmul.mubr.f32.gmra.mrb[0].mxu0 %v1086
        %v1156 = vpop.f32.mrb[0].mxu0
        %v1157 = vadd.f32 %v279, %v1156
        %v1158 = vpop.f32.mrb[0].mxu0
        %1159 = vdwg.mxu0
        %v1160 = vsel %vm370, %v1157, -inf
        %1161 = vmax.xlane.f32.xlu0 %v1160
        %v1162 = vpop.xlane.xlu0 %1161
        %v1163 = vsub.f32 %v1157, %v1162
        %v1164 = vmul.f32 %v1163, 1.442695
        %v1165 = vpow.pop %v1164
        %v1166 = vsel %vm370, %v1165, 0.0
        %1167 = vadd.xlane.f32.xlu0 %v1166
        %v1168 = vpop.xlane.xlu0 %1167
        %v1169 = vrcp.pop %v1168
        %v1170 = vmul.f32 %v1165, %v1169
        %1171 = vrot.lane.b32.xlu0 %v359, 40
        %v1172 = vpop.permute.xlu0 %1171
        %v1175 = vsel %vm370, %v1170, 0
        %1177 = vmatprep.subr.mxu0 0.0
        %1178 = vmatpush1.msra.mxu0 %v1172
        %1179 = vmatprep.subr.mxu0 0.0
        %1180 = vmatpush1.msra.mxu0 0.0
        %1181 = vmatprep.subr.mxu0 0.0
        %1182 = vmatpush1.msra.mxu0 0.0
        %1183 = vmatprep.subr.mxu0 0.0
        %1184 = vmatpush1.msra.mxu0 0.0
        %1185 = vmatprep.subr.mxu0 0.0
        %1186 = vmatpush1.msra.mxu0 0.0
        %1187 = vmatprep.subr.mxu0 0.0
        %1188 = vmatpush1.msra.mxu0 0.0
        %1189 = vmatprep.subr.mxu0 0.0
        %1190 = vmatpush1.msra.mxu0 0.0
        %1191 = vmatprep.subr.mxu0 0.0
        %1192 = vmatpush1.msra.mxu0 0.0
        %1193 = vmatprep.subr.mxu0 0.0
        %1194 = vmatpush1.msra.mxu0 0.0
        %1195 = vmatprep.subr.mxu0 0.0
        %1196 = vmatpush1.msra.mxu0 0.0
        %1197 = vmatprep.subr.mxu0 0.0
        %1198 = vmatpush1.msra.mxu0 0.0
        %1199 = vmatprep.subr.mxu0 0.0
        %1200 = vmatpush1.msra.mxu0 0.0
        %1201 = vmatprep.subr.mxu0 0.0
        %1202 = vmatpush1.msra.mxu0 0.0
        %1203 = vmatprep.subr.mxu0 0.0
        %1204 = vmatpush1.msra.mxu0 0.0
        %1205 = vmatprep.subr.mxu0 0.0
        %1206 = vmatpush1.msra.mxu0 0.0
        %1207 = vmatprep.subr.mxu0 0.0
        %1208 = vmatpush1.msra.mxu0 0.0
        %1209 = vmatprep.subr.mxu0 0.0
        %1210 = vmatpush1.msra.mxu0 0.0
        %1211 = vmatprep.subr.mxu0 0.0
        %1212 = vmatpush1.msra.mxu0 0.0
        %1213 = vmatprep.subr.mxu0 0.0
        %1214 = vmatpush1.msra.mxu0 0.0
        %1215 = vmatprep.subr.mxu0 0.0
        %1216 = vmatpush1.msra.mxu0 0.0
        %1217 = vmatprep.subr.mxu0 0.0
        %1218 = vmatpush1.msra.mxu0 0.0
        %1219 = vmatprep.subr.mxu0 0.0
        %1220 = vmatpush1.msra.mxu0 0.0
        %1221 = vmatprep.subr.mxu0 0.0
        %1222 = vmatpush1.msra.mxu0 0.0
        %1223 = vmatprep.subr.mxu0 0.0
        %1224 = vmatpush1.msra.mxu0 0.0
        %1225 = vmatprep.subr.mxu0 0.0
        %1226 = vmatpush1.msra.mxu0 0.0
        %1227 = vmatprep.subr.mxu0 0.0
        %1228 = vmatpush1.msra.mxu0 0.0
        %1229 = vmatprep.subr.mxu0 0.0
        %1230 = vmatpush1.msra.mxu0 0.0
        %1231 = vmatprep.subr.mxu0 0.0
        %1232 = vmatpush1.msra.mxu0 0.0
        %1233 = vmatprep.subr.mxu0 0.0
        %1234 = vmatpush1.msra.mxu0 0.0
        %1235 = vmatprep.subr.mxu0 0.0
        %1236 = vmatpush1.msra.mxu0 0.0
        %1237 = vmatprep.subr.mxu0 0.0
        %1238 = vmatpush1.msra.mxu0 0.0
        %1239 = vmatprep.subr.mxu0 0.0
        %1240 = vmatpush1.msra.mxu0 0.0
        %1241 = vmatprep.mubr.f32.mxu0 0.0
        %1242 = vmatmul.mubr.f32.gmra.mrb[0].mxu0 %v1175
        %v1243 = vpop.f32.mrb[0].mxu0
        %v1244 = vadd.f32 0.0, %v1243
        %v1245 = vpop.f32.mrb[0].mxu0
        %1246 = vdwg.mxu0
        %v1248 = vsel %vm370, %v1244, 0
        %1250 = vmatprep.subr.mxu0 0.0
        %1251 = vmatpush1.msra.mxu0 %v366
        %1252 = vmatprep.subr.mxu0 0.0
        %1253 = vmatpush1.msra.mxu0 0.0
        %1254 = vmatprep.subr.mxu0 0.0
        %1255 = vmatpush1.msra.mxu0 0.0
        %1256 = vmatprep.subr.mxu0 0.0
        %1257 = vmatpush1.msra.mxu0 0.0
        %1258 = vmatprep.subr.mxu0 0.0
        %1259 = vmatpush1.msra.mxu0 0.0
        %1260 = vmatprep.subr.mxu0 0.0
        %1261 = vmatpush1.msra.mxu0 0.0
        %1262 = vmatprep.subr.mxu0 0.0
        %1263 = vmatpush1.msra.mxu0 0.0
        %1264 = vmatprep.subr.mxu0 0.0
        %1265 = vmatpush1.msra.mxu0 0.0
        %1266 = vmatprep.subr.mxu0 0.0
        %1267 = vmatpush1.msra.mxu0 0.0
        %1268 = vmatprep.subr.mxu0 0.0
        %1269 = vmatpush1.msra.mxu0 0.0
        %1270 = vmatprep.subr.mxu0 0.0
        %1271 = vmatpush1.msra.mxu0 0.0
        %1272 = vmatprep.subr.mxu0 0.0
        %1273 = vmatpush1.msra.mxu0 0.0
        %1274 = vmatprep.subr.mxu0 0.0
        %1275 = vmatpush1.msra.mxu0 0.0
        %1276 = vmatprep.subr.mxu0 0.0
        %1277 = vmatpush1.msra.mxu0 0.0
        %1278 = vmatprep.subr.mxu0 0.0
        %1279 = vmatpush1.msra.mxu0 0.0
        %1280 = vmatprep.subr.mxu0 0.0
        %1281 = vmatpush1.msra.mxu0 0.0
        %1282 = vmatprep.subr.mxu0 0.0
        %1283 = vmatpush1.msra.mxu0 0.0
        %1284 = vmatprep.subr.mxu0 0.0
        %1285 = vmatpush1.msra.mxu0 0.0
        %1286 = vmatprep.subr.mxu0 0.0
        %1287 = vmatpush1.msra.mxu0 0.0
        %1288 = vmatprep.subr.mxu0 0.0
        %1289 = vmatpush1.msra.mxu0 0.0
        %1290 = vmatprep.subr.mxu0 0.0
        %1291 = vmatpush1.msra.mxu0 0.0
        %1292 = vmatprep.subr.mxu0 0.0
        %1293 = vmatpush1.msra.mxu0 0.0
        %1294 = vmatprep.subr.mxu0 0.0
        %1295 = vmatpush1.msra.mxu0 0.0
        %1296 = vmatprep.subr.mxu0 0.0
        %1297 = vmatpush1.msra.mxu0 0.0
        %1298 = vmatprep.subr.mxu0 0.0
        %1299 = vmatpush1.msra.mxu0 0.0
        %1300 = vmatprep.subr.mxu0 0.0
        %1301 = vmatpush1.msra.mxu0 0.0
        %1302 = vmatprep.subr.mxu0 0.0
        %1303 = vmatpush1.msra.mxu0 0.0
        %1304 = vmatprep.subr.mxu0 0.0
        %1305 = vmatpush1.msra.mxu0 0.0
        %1306 = vmatprep.subr.mxu0 0.0
        %1307 = vmatpush1.msra.mxu0 0.0
        %1308 = vmatprep.subr.mxu0 0.0
        %1309 = vmatpush1.msra.mxu0 0.0
        %1310 = vmatprep.subr.mxu0 0.0
        %1311 = vmatpush1.msra.mxu0 0.0
        %1312 = vmatprep.subr.mxu0 0.0
        %1313 = vmatpush1.msra.mxu0 0.0
        %1314 = vmatprep.mubr.f32.mxu0 0.0
        %1315 = vmatmul.mubr.f32.gmra.mrb[0].mxu0 %v1248
        %v1316 = vpop.f32.mrb[0].mxu0
        %v1317 = vadd.f32 0.0, %v1316
        %v1318 = vpop.f32.mrb[0].mxu0
        %1319 = vdwg.mxu0
        %v1320 = vadd.f32 %v1081, %v1317
        %v1321 = vadd.f32 %v271, %v1320
        %v1322 = vsel %vm288, %v1321, 0.0
        %1323 = vadd.xlane.f32.xlu0 %v1322
        %v1324 = vpop.xlane.xlu0 %1323
        %v1325 = vrcp.pop 32.0
        %v1326 = vmul.f32 %v1324, %v1325
        %v1327 = vmul.f32 %v1321, %v1321
        %v1328 = vsel %vm288, %v1327, 0.0
        %1329 = vadd.xlane.f32.xlu0 %v1328
        %v1330 = vpop.xlane.xlu0 %1329
        %v1331 = vmul.f32 %v1330, %v1325
        %v1332 = vmul.f32 %v1326, %v1326
        %v1333 = vsub.f32 %v1331, %v1332
        %v1334 = vsub.f32 %v1321, %v1326
        %v1335 = vadd.f32 %v1333, 1e-05
        %v1336 = vrsqrt.pop %v1335
        %v1337 = vmul.f32 %v1334, %v1336
        %v1338 = vlaneseq
        %v1339 = vshrl.u32 %v1338, 7
        %v1340 = vsub.s32 0, %v1339
        %v1341 = vrot.slane %v273, %v1340
        %v1342 = vmul.f32 %v1337, %v1341
        %v1343 = vlaneseq
        %v1344 = vshrl.u32 %v1343, 7
        %v1345 = vsub.s32 1, %v1344
        %v1346 = vrot.slane %v273, %v1345
        %v1347 = vadd.f32 %v1342, %v1346
        %v1348 = vld [vmem:[%s5] sm:$0xff]
        %v1349 = vld [vmem:[%s5 + $0x8] sm:$0xff]
        %v1350 = vld [vmem:[%s5 + $0x10] sm:$0xff]
        %v1351 = vld [vmem:[%s5 + $0x18] sm:$0xff]
        %v1353 = vsel %vm288, %v1347, 0
        %1355 = vmatprep.subr.mxu0 0.0
        %1356 = vmatpush1.msra.mxu0 %v1348
        %1357 = vmatprep.subr.mxu0 0.0
        %1358 = vmatpush1.msra.mxu0 %v1349
        %1359 = vmatprep.subr.mxu0 0.0
        %1360 = vmatpush1.msra.mxu0 %v1350
        %1361 = vmatprep.subr.mxu0 0.0
        %1362 = vmatpush1.msra.mxu0 %v1351
        %1363 = vmatprep.subr.mxu0 0.0
        %1364 = vmatpush1.msra.mxu0 0.0
        %1365 = vmatprep.subr.mxu0 0.0
        %1366 = vmatpush1.msra.mxu0 0.0
        %1367 = vmatprep.subr.mxu0 0.0
        %1368 = vmatpush1.msra.mxu0 0.0
        %1369 = vmatprep.subr.mxu0 0.0
        %1370 = vmatpush1.msra.mxu0 0.0
        %1371 = vmatprep.subr.mxu0 0.0
        %1372 = vmatpush1.msra.mxu0 0.0
        %1373 = vmatprep.subr.mxu0 0.0
        %1374 = vmatpush1.msra.mxu0 0.0
        %1375 = vmatprep.subr.mxu0 0.0
        %1376 = vmatpush1.msra.mxu0 0.0
        %1377 = vmatprep.subr.mxu0 0.0
        %1378 = vmatpush1.msra.mxu0 0.0
        %1379 = vmatprep.subr.mxu0 0.0
        %1380 = vmatpush1.msra.mxu0 0.0
        %1381 = vmatprep.subr.mxu0 0.0
        %1382 = vmatpush1.msra.mxu0 0.0
        %1383 = vmatprep.subr.mxu0 0.0
        %1384 = vmatpush1.msra.mxu0 0.0
        %1385 = vmatprep.subr.mxu0 0.0
        %1386 = vmatpush1.msra.mxu0 0.0
        %1387 = vmatprep.subr.mxu0 0.0
        %1388 = vmatpush1.msra.mxu0 0.0
        %1389 = vmatprep.subr.mxu0 0.0
        %1390 = vmatpush1.msra.mxu0 0.0
        %1391 = vmatprep.subr.mxu0 0.0
        %1392 = vmatpush1.msra.mxu0 0.0
        %1393 = vmatprep.subr.mxu0 0.0
        %1394 = vmatpush1.msra.mxu0 0.0
        %1395 = vmatprep.subr.mxu0 0.0
        %1396 = vmatpush1.msra.mxu0 0.0
        %1397 = vmatprep.subr.mxu0 0.0
        %1398 = vmatpush1.msra.mxu0 0.0
        %1399 = vmatprep.subr.mxu0 0.0
        %1400 = vmatpush1.msra.mxu0 0.0
        %1401 = vmatprep.subr.mxu0 0.0
        %1402 = vmatpush1.msra.mxu0 0.0
        %1403 = vmatprep.subr.mxu0 0.0
        %1404 = vmatpush1.msra.mxu0 0.0
        %1405 = vmatprep.subr.mxu0 0.0
        %1406 = vmatpush1.msra.mxu0 0.0
        %1407 = vmatprep.subr.mxu0 0.0
        %1408 = vmatpush1.msra.mxu0 0.0
        %1409 = vmatprep.subr.mxu0 0.0
        %1410 = vmatpush1.msra.mxu0 0.0
        %1411 = vmatprep.subr.mxu0 0.0
        %1412 = vmatpush1.msra.mxu0 0.0
        %1413 = vmatprep.subr.mxu0 0.0
        %1414 = vmatpush1.msra.mxu0 0.0
        %1415 = vmatprep.subr.mxu0 0.0
        %1416 = vmatpush1.msra.mxu0 0.0
        %1417 = vmatprep.subr.mxu0 0.0
        %1418 = vmatpush1.msra.mxu0 0.0
        %1419 = vmatprep.mubr.f32.mxu0 0.0
        %1420 = vmatmul.mubr.f32.gmra.mrb[0].mxu0 %v1353
        %v1421 = vpop.f32.mrb[0].mxu0
        %v1422 = vadd.f32 0.0, %v1421
        %v1423 = vpop.f32.mrb[0].mxu0
        %1424 = vdwg.mxu0
        %v1425 = vld [vmem:[%s4] sm:$0xff]
        %v1426 = vld [vmem:[%s4 + $0x8] sm:$0xff]
        %v1427 = vld [vmem:[%s4 + $0x10] sm:$0xff]
        %v1428 = vld [vmem:[%s4 + $0x18] sm:$0xff]
        %v1430 = vsel %vm288, %v272, 0
        %1432 = vmatprep.subr.mxu0 0.0
        %1433 = vmatpush1.msra.mxu0 %v1425
        %1434 = vmatprep.subr.mxu0 0.0
        %1435 = vmatpush1.msra.mxu0 %v1426
        %1436 = vmatprep.subr.mxu0 0.0
        %1437 = vmatpush1.msra.mxu0 %v1427
        %1438 = vmatprep.subr.mxu0 0.0
        %1439 = vmatpush1.msra.mxu0 %v1428
        %1440 = vmatprep.subr.mxu0 0.0
        %1441 = vmatpush1.msra.mxu0 0.0
        %1442 = vmatprep.subr.mxu0 0.0
        %1443 = vmatpush1.msra.mxu0 0.0
        %1444 = vmatprep.subr.mxu0 0.0
        %1445 = vmatpush1.msra.mxu0 0.0
        %1446 = vmatprep.subr.mxu0 0.0
        %1447 = vmatpush1.msra.mxu0 0.0
        %1448 = vmatprep.subr.mxu0 0.0
        %1449 = vmatpush1.msra.mxu0 0.0
        %1450 = vmatprep.subr.mxu0 0.0
        %1451 = vmatpush1.msra.mxu0 0.0
        %1452 = vmatprep.subr.mxu0 0.0
        %1453 = vmatpush1.msra.mxu0 0.0
        %1454 = vmatprep.subr.mxu0 0.0
        %1455 = vmatpush1.msra.mxu0 0.0
        %1456 = vmatprep.subr.mxu0 0.0
        %1457 = vmatpush1.msra.mxu0 0.0
        %1458 = vmatprep.subr.mxu0 0.0
        %1459 = vmatpush1.msra.mxu0 0.0
        %1460 = vmatprep.subr.mxu0 0.0
        %1461 = vmatpush1.msra.mxu0 0.0
        %1462 = vmatprep.subr.mxu0 0.0
        %1463 = vmatpush1.msra.mxu0 0.0
        %1464 = vmatprep.subr.mxu0 0.0
        %1465 = vmatpush1.msra.mxu0 0.0
        %1466 = vmatprep.subr.mxu0 0.0
        %1467 = vmatpush1.msra.mxu0 0.0
        %1468 = vmatprep.subr.mxu0 0.0
        %1469 = vmatpush1.msra.mxu0 0.0
        %1470 = vmatprep.subr.mxu0 0.0
        %1471 = vmatpush1.msra.mxu0 0.0
        %1472 = vmatprep.subr.mxu0 0.0
        %1473 = vmatpush1.msra.mxu0 0.0
        %1474 = vmatprep.subr.mxu0 0.0
        %1475 = vmatpush1.msra.mxu0 0.0
        %1476 = vmatprep.subr.mxu0 0.0
        %1477 = vmatpush1.msra.mxu0 0.0
        %1478 = vmatprep.subr.mxu0 0.0
        %1479 = vmatpush1.msra.mxu0 0.0
        %1480 = vmatprep.subr.mxu0 0.0
        %1481 = vmatpush1.msra.mxu0 0.0
        %1482 = vmatprep.subr.mxu0 0.0
        %1483 = vmatpush1.msra.mxu0 0.0
        %1484 = vmatprep.subr.mxu0 0.0
        %1485 = vmatpush1.msra.mxu0 0.0
        %1486 = vmatprep.subr.mxu0 0.0
        %1487 = vmatpush1.msra.mxu0 0.0
        %1488 = vmatprep.subr.mxu0 0.0
        %1489 = vmatpush1.msra.mxu0 0.0
        %1490 = vmatprep.subr.mxu0 0.0
        %1491 = vmatpush1.msra.mxu0 0.0
        %1492 = vmatprep.subr.mxu0 0.0
        %1493 = vmatpush1.msra.mxu0 0.0
        %1494 = vmatprep.subr.mxu0 0.0
        %1495 = vmatpush1.msra.mxu0 0.0
        %1496 = vmatprep.mubr.f32.mxu0 0.0
        %1497 = vmatmul.mubr.f32.gmra.mrb[0].mxu0 %v1430
        %v1498 = vpop.f32.mrb[0].mxu0
        %v1499 = vadd.f32 0.0, %v1498
        %v1500 = vpop.f32.mrb[0].mxu0
        %1501 = vdwg.mxu0
        %s1502 = scalar_lea.vmem %s5, 64
        %v1503 = vld [vmem:[%s1502] sm:$0xff]
        %v1504 = vld [vmem:[%s1502 + $0x8] sm:$0xff]
        %v1505 = vld [vmem:[%s1502 + $0x10] sm:$0xff]
        %v1506 = vld [vmem:[%s1502 + $0x18] sm:$0xff]
        %v1508 = vsel %vm370, %v1422, 0
        %v1511 = vsel %vm370, %v1499, 0
        %1513 = vmatprep.subr.mxu0 0.0
        %1514 = vmatpush1.xpose.msra.mxu0 %v1511
        %1515 = vmatprep.subr.mxu0 0.0
        %1516 = vmatpush1.xpose.msra.mxu0 0.0
        %1517 = vmatprep.subr.mxu0 0.0
        %1518 = vmatpush1.xpose.msra.mxu0 0.0
        %1519 = vmatprep.subr.mxu0 0.0
        %1520 = vmatpush1.xpose.msra.mxu0 0.0
        %1521 = vmatprep.subr.mxu0 0.0
        %1522 = vmatpush1.xpose.msra.mxu0 0.0
        %1523 = vmatprep.subr.mxu0 0.0
        %1524 = vmatpush1.xpose.msra.mxu0 0.0
        %1525 = vmatprep.subr.mxu0 0.0
        %1526 = vmatpush1.xpose.msra.mxu0 0.0
        %1527 = vmatprep.subr.mxu0 0.0
        %1528 = vmatpush1.xpose.msra.mxu0 0.0
        %1529 = vmatprep.subr.mxu0 0.0
        %1530 = vmatpush1.xpose.msra.mxu0 0.0
        %1531 = vmatprep.subr.mxu0 0.0
        %1532 = vmatpush1.xpose.msra.mxu0 0.0
        %1533 = vmatprep.subr.mxu0 0.0
        %1534 = vmatpush1.xpose.msra.mxu0 0.0
        %1535 = vmatprep.subr.mxu0 0.0
        %1536 = vmatpush1.xpose.msra.mxu0 0.0
        %1537 = vmatprep.subr.mxu0 0.0
        %1538 = vmatpush1.xpose.msra.mxu0 0.0
        %1539 = vmatprep.subr.mxu0 0.0
        %1540 = vmatpush1.xpose.msra.mxu0 0.0
        %1541 = vmatprep.subr.mxu0 0.0
        %1542 = vmatpush1.xpose.msra.mxu0 0.0
        %1543 = vmatprep.subr.mxu0 0.0
        %1544 = vmatpush1.xpose.msra.mxu0 0.0
        %1545 = vmatprep.subr.mxu0 0.0
        %1546 = vmatpush1.xpose.msra.mxu0 0.0
        %1547 = vmatprep.subr.mxu0 0.0
        %1548 = vmatpush1.xpose.msra.mxu0 0.0
        %1549 = vmatprep.subr.mxu0 0.0
        %1550 = vmatpush1.xpose.msra.mxu0 0.0
        %1551 = vmatprep.subr.mxu0 0.0
        %1552 = vmatpush1.xpose.msra.mxu0 0.0
        %1553 = vmatprep.subr.mxu0 0.0
        %1554 = vmatpush1.xpose.msra.mxu0 0.0
        %1555 = vmatprep.subr.mxu0 0.0
        %1556 = vmatpush1.xpose.msra.mxu0 0.0
        %1557 = vmatprep.subr.mxu0 0.0
        %1558 = vmatpush1.xpose.msra.mxu0 0.0
        %1559 = vmatprep.subr.mxu0 0.0
        %1560 = vmatpush1.xpose.msra.mxu0 0.0
        %1561 = vmatprep.subr.mxu0 0.0
        %1562 = vmatpush1.xpose.msra.mxu0 0.0
        %1563 = vmatprep.subr.mxu0 0.0
        %1564 = vmatpush1.xpose.msra.mxu0 0.0
        %1565 = vmatprep.subr.mxu0 0.0
        %1566 = vmatpush1.xpose.msra.mxu0 0.0
        %1567 = vmatprep.subr.mxu0 0.0
        %1568 = vmatpush1.xpose.msra.mxu0 0.0
        %1569 = vmatprep.subr.mxu0 0.0
        %1570 = vmatpush1.xpose.msra.mxu0 0.0
        %1571 = vmatprep.subr.mxu0 0.0
        %1572 = vmatpush1.xpose.msra.mxu0 0.0
        %1573 = vmatprep.subr.mxu0 0.0
        %1574 = vmatpush1.xpose.msra.mxu0 0.0
        %1575 = vmatprep.subr.mxu0 0.0
        %1576 = vmatpush1.xpose.msra.mxu0 0.0
        %1577 = vmatprep.mubr.f32.mxu0 0.0
        %1578 = vmatmul.mubr.f32.gmra.mrb[0].mxu0 %v1508
        %v1579 = vpop.f32.mrb[0].mxu0
        %v1580 = vadd.f32 %v283, %v1579
        %v1581 = vpop.f32.mrb[0].mxu0
        %1582 = vdwg.mxu0
        %v1583 = vsel %vm370, %v1580, -inf
        %1584 = vmax.xlane.f32.xlu0 %v1583
        %v1585 = vpop.xlane.xlu0 %1584
        %v1586 = vsub.f32 %v1580, %v1585
        %v1587 = vmul.f32 %v1586, 1.442695
        %v1588 = vpow.pop %v1587
        %v1589 = vsel %vm370, %v1588, 0.0
        %1590 = vadd.xlane.f32.xlu0 %v1589
        %v1591 = vpop.xlane.xlu0 %1590
        %v1592 = vrcp.pop %v1591
        %v1593 = vmul.f32 %v1588, %v1592
        %1594 = vrot.lane.b32.xlu0 %v1499, 96
        %v1595 = vpop.permute.xlu0 %1594
        %v1598 = vsel %vm370, %v1593, 0
        %1600 = vmatprep.subr.mxu0 0.0
        %1601 = vmatpush1.msra.mxu0 %v1595
        %1602 = vmatprep.subr.mxu0 0.0
        %1603 = vmatpush1.msra.mxu0 0.0
        %1604 = vmatprep.subr.mxu0 0.0
        %1605 = vmatpush1.msra.mxu0 0.0
        %1606 = vmatprep.subr.mxu0 0.0
        %1607 = vmatpush1.msra.mxu0 0.0
        %1608 = vmatprep.subr.mxu0 0.0
        %1609 = vmatpush1.msra.mxu0 0.0
        %1610 = vmatprep.subr.mxu0 0.0
        %1611 = vmatpush1.msra.mxu0 0.0
        %1612 = vmatprep.subr.mxu0 0.0
        %1613 = vmatpush1.msra.mxu0 0.0
        %1614 = vmatprep.subr.mxu0 0.0
        %1615 = vmatpush1.msra.mxu0 0.0
        %1616 = vmatprep.subr.mxu0 0.0
        %1617 = vmatpush1.msra.mxu0 0.0
        %1618 = vmatprep.subr.mxu0 0.0
        %1619 = vmatpush1.msra.mxu0 0.0
        %1620 = vmatprep.subr.mxu0 0.0
        %1621 = vmatpush1.msra.mxu0 0.0
        %1622 = vmatprep.subr.mxu0 0.0
        %1623 = vmatpush1.msra.mxu0 0.0
        %1624 = vmatprep.subr.mxu0 0.0
        %1625 = vmatpush1.msra.mxu0 0.0
        %1626 = vmatprep.subr.mxu0 0.0
        %1627 = vmatpush1.msra.mxu0 0.0
        %1628 = vmatprep.subr.mxu0 0.0
        %1629 = vmatpush1.msra.mxu0 0.0
        %1630 = vmatprep.subr.mxu0 0.0
        %1631 = vmatpush1.msra.mxu0 0.0
        %1632 = vmatprep.subr.mxu0 0.0
        %1633 = vmatpush1.msra.mxu0 0.0
        %1634 = vmatprep.subr.mxu0 0.0
        %1635 = vmatpush1.msra.mxu0 0.0
        %1636 = vmatprep.subr.mxu0 0.0
        %1637 = vmatpush1.msra.mxu0 0.0
        %1638 = vmatprep.subr.mxu0 0.0
        %1639 = vmatpush1.msra.mxu0 0.0
        %1640 = vmatprep.subr.mxu0 0.0
        %1641 = vmatpush1.msra.mxu0 0.0
        %1642 = vmatprep.subr.mxu0 0.0
        %1643 = vmatpush1.msra.mxu0 0.0
        %1644 = vmatprep.subr.mxu0 0.0
        %1645 = vmatpush1.msra.mxu0 0.0
        %1646 = vmatprep.subr.mxu0 0.0
        %1647 = vmatpush1.msra.mxu0 0.0
        %1648 = vmatprep.subr.mxu0 0.0
        %1649 = vmatpush1.msra.mxu0 0.0
        %1650 = vmatprep.subr.mxu0 0.0
        %1651 = vmatpush1.msra.mxu0 0.0
        %1652 = vmatprep.subr.mxu0 0.0
        %1653 = vmatpush1.msra.mxu0 0.0
        %1654 = vmatprep.subr.mxu0 0.0
        %1655 = vmatpush1.msra.mxu0 0.0
        %1656 = vmatprep.subr.mxu0 0.0
        %1657 = vmatpush1.msra.mxu0 0.0
        %1658 = vmatprep.subr.mxu0 0.0
        %1659 = vmatpush1.msra.mxu0 0.0
        %1660 = vmatprep.subr.mxu0 0.0
        %1661 = vmatpush1.msra.mxu0 0.0
        %1662 = vmatprep.subr.mxu0 0.0
        %1663 = vmatpush1.msra.mxu0 0.0
        %1664 = vmatprep.mubr.f32.mxu0 0.0
        %1665 = vmatmul.mubr.f32.gmra.mrb[0].mxu0 %v1598
        %v1666 = vpop.f32.mrb[0].mxu0
        %v1667 = vadd.f32 0.0, %v1666
        %v1668 = vpop.f32.mrb[0].mxu0
        %1669 = vdwg.mxu0
        %1670 = vrot.lane.b32.xlu0 %v1422, 120
        %v1671 = vpop.permute.xlu0 %1670
        %1672 = vrot.lane.b32.xlu0 %v1499, 120
        %v1673 = vpop.permute.xlu0 %1672
        %v1674 = vsel %vm370, %v1671, 0
        %v1676 = vsel %vm370, %v1673, 0
        %1678 = vmatprep.subr.mxu0 0.0
        %1679 = vmatpush1.xpose.msra.mxu0 %v1676
        %1680 = vmatprep.subr.mxu0 0.0
        %1681 = vmatpush1.xpose.msra.mxu0 0.0
        %1682 = vmatprep.subr.mxu0 0.0
        %1683 = vmatpush1.xpose.msra.mxu0 0.0
        %1684 = vmatprep.subr.mxu0 0.0
        %1685 = vmatpush1.xpose.msra.mxu0 0.0
        %1686 = vmatprep.subr.mxu0 0.0
        %1687 = vmatpush1.xpose.msra.mxu0 0.0
        %1688 = vmatprep.subr.mxu0 0.0
        %1689 = vmatpush1.xpose.msra.mxu0 0.0
        %1690 = vmatprep.subr.mxu0 0.0
        %1691 = vmatpush1.xpose.msra.mxu0 0.0
        %1692 = vmatprep.subr.mxu0 0.0
        %1693 = vmatpush1.xpose.msra.mxu0 0.0
        %1694 = vmatprep.subr.mxu0 0.0
        %1695 = vmatpush1.xpose.msra.mxu0 0.0
        %1696 = vmatprep.subr.mxu0 0.0
        %1697 = vmatpush1.xpose.msra.mxu0 0.0
        %1698 = vmatprep.subr.mxu0 0.0
        %1699 = vmatpush1.xpose.msra.mxu0 0.0
        %1700 = vmatprep.subr.mxu0 0.0
        %1701 = vmatpush1.xpose.msra.mxu0 0.0
        %1702 = vmatprep.subr.mxu0 0.0
        %1703 = vmatpush1.xpose.msra.mxu0 0.0
        %1704 = vmatprep.subr.mxu0 0.0
        %1705 = vmatpush1.xpose.msra.mxu0 0.0
        %1706 = vmatprep.subr.mxu0 0.0
        %1707 = vmatpush1.xpose.msra.mxu0 0.0
        %1708 = vmatprep.subr.mxu0 0.0
        %1709 = vmatpush1.xpose.msra.mxu0 0.0
        %1710 = vmatprep.subr.mxu0 0.0
        %1711 = vmatpush1.xpose.msra.mxu0 0.0
        %1712 = vmatprep.subr.mxu0 0.0
        %1713 = vmatpush1.xpose.msra.mxu0 0.0
        %1714 = vmatprep.subr.mxu0 0.0
        %1715 = vmatpush1.xpose.msra.mxu0 0.0
        %1716 = vmatprep.subr.mxu0 0.0
        %1717 = vmatpush1.xpose.msra.mxu0 0.0
        %1718 = vmatprep.subr.mxu0 0.0
        %1719 = vmatpush1.xpose.msra.mxu0 0.0
        %1720 = vmatprep.subr.mxu0 0.0
        %1721 = vmatpush1.xpose.msra.mxu0 0.0
        %1722 = vmatprep.subr.mxu0 0.0
        %1723 = vmatpush1.xpose.msra.mxu0 0.0
        %1724 = vmatprep.subr.mxu0 0.0
        %1725 = vmatpush1.xpose.msra.mxu0 0.0
        %1726 = vmatprep.subr.mxu0 0.0
        %1727 = vmatpush1.xpose.msra.mxu0 0.0
        %1728 = vmatprep.subr.mxu0 0.0
        %1729 = vmatpush1.xpose.msra.mxu0 0.0
        %1730 = vmatprep.subr.mxu0 0.0
        %1731 = vmatpush1.xpose.msra.mxu0 0.0
        %1732 = vmatprep.subr.mxu0 0.0
        %1733 = vmatpush1.xpose.msra.mxu0 0.0
        %1734 = vmatprep.subr.mxu0 0.0
        %1735 = vmatpush1.xpose.msra.mxu0 0.0
        %1736 = vmatprep.subr.mxu0 0.0
        %1737 = vmatpush1.xpose.msra.mxu0 0.0
        %1738 = vmatprep.subr.mxu0 0.0
        %1739 = vmatpush1.xpose.msra.mxu0 0.0
        %1740 = vmatprep.subr.mxu0 0.0
        %1741 = vmatpush1.xpose.msra.mxu0 0.0
        %1742 = vmatprep.mubr.f32.mxu0 0.0
        %1743 = vmatmul.mubr.f32.gmra.mrb[0].mxu0 %v1674
        %v1744 = vpop.f32.mrb[0].mxu0
        %v1745 = vadd.f32 %v283, %v1744
        %v1746 = vpop.f32.mrb[0].mxu0
        %1747 = vdwg.mxu0
        %v1748 = vsel %vm370, %v1745, -inf
        %1749 = vmax.xlane.f32.xlu0 %v1748
        %v1750 = vpop.xlane.xlu0 %1749
        %v1751 = vsub.f32 %v1745, %v1750
        %v1752 = vmul.f32 %v1751, 1.442695
        %v1753 = vpow.pop %v1752
        %v1754 = vsel %vm370, %v1753, 0.0
        %1755 = vadd.xlane.f32.xlu0 %v1754
        %v1756 = vpop.xlane.xlu0 %1755
        %v1757 = vrcp.pop %v1756
        %v1758 = vmul.f32 %v1753, %v1757
        %1759 = vrot.lane.b32.xlu0 %v1499, 88
        %v1760 = vpop.permute.xlu0 %1759
        %v1763 = vsel %vm370, %v1758, 0
        %1765 = vmatprep.subr.mxu0 0.0
        %1766 = vmatpush1.msra.mxu0 %v1760
        %1767 = vmatprep.subr.mxu0 0.0
        %1768 = vmatpush1.msra.mxu0 0.0
        %1769 = vmatprep.subr.mxu0 0.0
        %1770 = vmatpush1.msra.mxu0 0.0
        %1771 = vmatprep.subr.mxu0 0.0
        %1772 = vmatpush1.msra.mxu0 0.0
        %1773 = vmatprep.subr.mxu0 0.0
        %1774 = vmatpush1.msra.mxu0 0.0
        %1775 = vmatprep.subr.mxu0 0.0
        %1776 = vmatpush1.msra.mxu0 0.0
        %1777 = vmatprep.subr.mxu0 0.0
        %1778 = vmatpush1.msra.mxu0 0.0
        %1779 = vmatprep.subr.mxu0 0.0
        %1780 = vmatpush1.msra.mxu0 0.0
        %1781 = vmatprep.subr.mxu0 0.0
        %1782 = vmatpush1.msra.mxu0 0.0
        %1783 = vmatprep.subr.mxu0 0.0
        %1784 = vmatpush1.msra.mxu0 0.0
        %1785 = vmatprep.subr.mxu0 0.0
        %1786 = vmatpush1.msra.mxu0 0.0
        %1787 = vmatprep.subr.mxu0 0.0
        %1788 = vmatpush1.msra.mxu0 0.0
        %1789 = vmatprep.subr.mxu0 0.0
        %1790 = vmatpush1.msra.mxu0 0.0
        %1791 = vmatprep.subr.mxu0 0.0
        %1792 = vmatpush1.msra.mxu0 0.0
        %1793 = vmatprep.subr.mxu0 0.0
        %1794 = vmatpush1.msra.mxu0 0.0
        %1795 = vmatprep.subr.mxu0 0.0
        %1796 = vmatpush1.msra.mxu0 0.0
        %1797 = vmatprep.subr.mxu0 0.0
        %1798 = vmatpush1.msra.mxu0 0.0
        %1799 = vmatprep.subr.mxu0 0.0
        %1800 = vmatpush1.msra.mxu0 0.0
        %1801 = vmatprep.subr.mxu0 0.0
        %1802 = vmatpush1.msra.mxu0 0.0
        %1803 = vmatprep.subr.mxu0 0.0
        %1804 = vmatpush1.msra.mxu0 0.0
        %1805 = vmatprep.subr.mxu0 0.0
        %1806 = vmatpush1.msra.mxu0 0.0
        %1807 = vmatprep.subr.mxu0 0.0
        %1808 = vmatpush1.msra.mxu0 0.0
        %1809 = vmatprep.subr.mxu0 0.0
        %1810 = vmatpush1.msra.mxu0 0.0
        %1811 = vmatprep.subr.mxu0 0.0
        %1812 = vmatpush1.msra.mxu0 0.0
        %1813 = vmatprep.subr.mxu0 0.0
        %1814 = vmatpush1.msra.mxu0 0.0
        %1815 = vmatprep.subr.mxu0 0.0
        %1816 = vmatpush1.msra.mxu0 0.0
        %1817 = vmatprep.subr.mxu0 0.0
        %1818 = vmatpush1.msra.mxu0 0.0
        %1819 = vmatprep.subr.mxu0 0.0
        %1820 = vmatpush1.msra.mxu0 0.0
        %1821 = vmatprep.subr.mxu0 0.0
        %1822 = vmatpush1.msra.mxu0 0.0
        %1823 = vmatprep.subr.mxu0 0.0
        %1824 = vmatpush1.msra.mxu0 0.0
        %1825 = vmatprep.subr.mxu0 0.0
        %1826 = vmatpush1.msra.mxu0 0.0
        %1827 = vmatprep.subr.mxu0 0.0
        %1828 = vmatpush1.msra.mxu0 0.0
        %1829 = vmatprep.mubr.f32.mxu0 0.0
        %1830 = vmatmul.mubr.f32.gmra.mrb[0].mxu0 %v1763
        %v1831 = vpop.f32.mrb[0].mxu0
        %v1832 = vadd.f32 0.0, %v1831
        %v1833 = vpop.f32.mrb[0].mxu0
        %1834 = vdwg.mxu0
        %v1836 = vsel %vm370, %v1832, 0
        %1838 = vmatprep.subr.mxu0 0.0
        %1839 = vmatpush1.msra.mxu0 %v1504
        %1840 = vmatprep.subr.mxu0 0.0
        %1841 = vmatpush1.msra.mxu0 0.0
        %1842 = vmatprep.subr.mxu0 0.0
        %1843 = vmatpush1.msra.mxu0 0.0
        %1844 = vmatprep.subr.mxu0 0.0
        %1845 = vmatpush1.msra.mxu0 0.0
        %1846 = vmatprep.subr.mxu0 0.0
        %1847 = vmatpush1.msra.mxu0 0.0
        %1848 = vmatprep.subr.mxu0 0.0
        %1849 = vmatpush1.msra.mxu0 0.0
        %1850 = vmatprep.subr.mxu0 0.0
        %1851 = vmatpush1.msra.mxu0 0.0
        %1852 = vmatprep.subr.mxu0 0.0
        %1853 = vmatpush1.msra.mxu0 0.0
        %1854 = vmatprep.subr.mxu0 0.0
        %1855 = vmatpush1.msra.mxu0 0.0
        %1856 = vmatprep.subr.mxu0 0.0
        %1857 = vmatpush1.msra.mxu0 0.0
        %1858 = vmatprep.subr.mxu0 0.0
        %1859 = vmatpush1.msra.mxu0 0.0
        %1860 = vmatprep.subr.mxu0 0.0
        %1861 = vmatpush1.msra.mxu0 0.0
        %1862 = vmatprep.subr.mxu0 0.0
        %1863 = vmatpush1.msra.mxu0 0.0
        %1864 = vmatprep.subr.mxu0 0.0
        %1865 = vmatpush1.msra.mxu0 0.0
        %1866 = vmatprep.subr.mxu0 0.0
        %1867 = vmatpush1.msra.mxu0 0.0
        %1868 = vmatprep.subr.mxu0 0.0
        %1869 = vmatpush1.msra.mxu0 0.0
        %1870 = vmatprep.subr.mxu0 0.0
        %1871 = vmatpush1.msra.mxu0 0.0
        %1872 = vmatprep.subr.mxu0 0.0
        %1873 = vmatpush1.msra.mxu0 0.0
        %1874 = vmatprep.subr.mxu0 0.0
        %1875 = vmatpush1.msra.mxu0 0.0
        %1876 = vmatprep.subr.mxu0 0.0
        %1877 = vmatpush1.msra.mxu0 0.0
        %1878 = vmatprep.subr.mxu0 0.0
        %1879 = vmatpush1.msra.mxu0 0.0
        %1880 = vmatprep.subr.mxu0 0.0
        %1881 = vmatpush1.msra.mxu0 0.0
        %1882 = vmatprep.subr.mxu0 0.0
        %1883 = vmatpush1.msra.mxu0 0.0
        %1884 = vmatprep.subr.mxu0 0.0
        %1885 = vmatpush1.msra.mxu0 0.0
        %1886 = vmatprep.subr.mxu0 0.0
        %1887 = vmatpush1.msra.mxu0 0.0
        %1888 = vmatprep.subr.mxu0 0.0
        %1889 = vmatpush1.msra.mxu0 0.0
        %1890 = vmatprep.subr.mxu0 0.0
        %1891 = vmatpush1.msra.mxu0 0.0
        %1892 = vmatprep.subr.mxu0 0.0
        %1893 = vmatpush1.msra.mxu0 0.0
        %1894 = vmatprep.subr.mxu0 0.0
        %1895 = vmatpush1.msra.mxu0 0.0
        %1896 = vmatprep.subr.mxu0 0.0
        %1897 = vmatpush1.msra.mxu0 0.0
        %1898 = vmatprep.subr.mxu0 0.0
        %1899 = vmatpush1.msra.mxu0 0.0
        %1900 = vmatprep.subr.mxu0 0.0
        %1901 = vmatpush1.msra.mxu0 0.0
        %1902 = vmatprep.mubr.f32.mxu0 0.0
        %1903 = vmatmul.mubr.f32.gmra.mrb[0].mxu0 %v1836
        %v1904 = vpop.f32.mrb[0].mxu0
        %v1905 = vadd.f32 0.0, %v1904
        %v1906 = vpop.f32.mrb[0].mxu0
        %1907 = vdwg.mxu0
        %v1909 = vsel %vm370, %v1667, 0
        %1911 = vmatprep.subr.mxu0 0.0
        %1912 = vmatpush1.msra.mxu0 %v1503
        %1913 = vmatprep.subr.mxu0 0.0
        %1914 = vmatpush1.msra.mxu0 0.0
        %1915 = vmatprep.subr.mxu0 0.0
        %1916 = vmatpush1.msra.mxu0 0.0
        %1917 = vmatprep.subr.mxu0 0.0
        %1918 = vmatpush1.msra.mxu0 0.0
        %1919 = vmatprep.subr.mxu0 0.0
        %1920 = vmatpush1.msra.mxu0 0.0
        %1921 = vmatprep.subr.mxu0 0.0
        %1922 = vmatpush1.msra.mxu0 0.0
        %1923 = vmatprep.subr.mxu0 0.0
        %1924 = vmatpush1.msra.mxu0 0.0
        %1925 = vmatprep.subr.mxu0 0.0
        %1926 = vmatpush1.msra.mxu0 0.0
        %1927 = vmatprep.subr.mxu0 0.0
        %1928 = vmatpush1.msra.mxu0 0.0
        %1929 = vmatprep.subr.mxu0 0.0
        %1930 = vmatpush1.msra.mxu0 0.0
        %1931 = vmatprep.subr.mxu0 0.0
        %1932 = vmatpush1.msra.mxu0 0.0
        %1933 = vmatprep.subr.mxu0 0.0
        %1934 = vmatpush1.msra.mxu0 0.0
        %1935 = vmatprep.subr.mxu0 0.0
        %1936 = vmatpush1.msra.mxu0 0.0
        %1937 = vmatprep.subr.mxu0 0.0
        %1938 = vmatpush1.msra.mxu0 0.0
        %1939 = vmatprep.subr.mxu0 0.0
        %1940 = vmatpush1.msra.mxu0 0.0
        %1941 = vmatprep.subr.mxu0 0.0
        %1942 = vmatpush1.msra.mxu0 0.0
        %1943 = vmatprep.subr.mxu0 0.0
        %1944 = vmatpush1.msra.mxu0 0.0
        %1945 = vmatprep.subr.mxu0 0.0
        %1946 = vmatpush1.msra.mxu0 0.0
        %1947 = vmatprep.subr.mxu0 0.0
        %1948 = vmatpush1.msra.mxu0 0.0
        %1949 = vmatprep.subr.mxu0 0.0
        %1950 = vmatpush1.msra.mxu0 0.0
        %1951 = vmatprep.subr.mxu0 0.0
        %1952 = vmatpush1.msra.mxu0 0.0
        %1953 = vmatprep.subr.mxu0 0.0
        %1954 = vmatpush1.msra.mxu0 0.0
        %1955 = vmatprep.subr.mxu0 0.0
        %1956 = vmatpush1.msra.mxu0 0.0
        %1957 = vmatprep.subr.mxu0 0.0
        %1958 = vmatpush1.msra.mxu0 0.0
        %1959 = vmatprep.subr.mxu0 0.0
        %1960 = vmatpush1.msra.mxu0 0.0
        %1961 = vmatprep.subr.mxu0 0.0
        %1962 = vmatpush1.msra.mxu0 0.0
        %1963 = vmatprep.subr.mxu0 0.0
        %1964 = vmatpush1.msra.mxu0 0.0
        %1965 = vmatprep.subr.mxu0 0.0
        %1966 = vmatpush1.msra.mxu0 0.0
        %1967 = vmatprep.subr.mxu0 0.0
        %1968 = vmatpush1.msra.mxu0 0.0
        %1969 = vmatprep.subr.mxu0 0.0
        %1970 = vmatpush1.msra.mxu0 0.0
        %1971 = vmatprep.subr.mxu0 0.0
        %1972 = vmatpush1.msra.mxu0 0.0
        %1973 = vmatprep.subr.mxu0 0.0
        %1974 = vmatpush1.msra.mxu0 0.0
        %1975 = vmatprep.mubr.f32.mxu0 0.0
        %1976 = vmatmul.mubr.f32.gmra.mrb[0].mxu0 %v1909
        %v1977 = vpop.f32.mrb[0].mxu0
        %v1978 = vadd.f32 %v1905, %v1977
        %v1979 = vpop.f32.mrb[0].mxu0
        %1980 = vdwg.mxu0
        %1981 = vrot.lane.b32.xlu0 %v1422, 112
        %v1982 = vpop.permute.xlu0 %1981
        %1983 = vrot.lane.b32.xlu0 %v1499, 112
        %v1984 = vpop.permute.xlu0 %1983
        %v1985 = vsel %vm370, %v1982, 0
        %v1987 = vsel %vm370, %v1984, 0
        %1989 = vmatprep.subr.mxu0 0.0
        %1990 = vmatpush1.xpose.msra.mxu0 %v1987
        %1991 = vmatprep.subr.mxu0 0.0
        %1992 = vmatpush1.xpose.msra.mxu0 0.0
        %1993 = vmatprep.subr.mxu0 0.0
        %1994 = vmatpush1.xpose.msra.mxu0 0.0
        %1995 = vmatprep.subr.mxu0 0.0
        %1996 = vmatpush1.xpose.msra.mxu0 0.0
        %1997 = vmatprep.subr.mxu0 0.0
        %1998 = vmatpush1.xpose.msra.mxu0 0.0
        %1999 = vmatprep.subr.mxu0 0.0
        %2000 = vmatpush1.xpose.msra.mxu0 0.0
        %2001 = vmatprep.subr.mxu0 0.0
        %2002 = vmatpush1.xpose.msra.mxu0 0.0
        %2003 = vmatprep.subr.mxu0 0.0
        %2004 = vmatpush1.xpose.msra.mxu0 0.0
        %2005 = vmatprep.subr.mxu0 0.0
        %2006 = vmatpush1.xpose.msra.mxu0 0.0
        %2007 = vmatprep.subr.mxu0 0.0
        %2008 = vmatpush1.xpose.msra.mxu0 0.0
        %2009 = vmatprep.subr.mxu0 0.0
        %2010 = vmatpush1.xpose.msra.mxu0 0.0
        %2011 = vmatprep.subr.mxu0 0.0
        %2012 = vmatpush1.xpose.msra.mxu0 0.0
        %2013 = vmatprep.subr.mxu0 0.0
        %2014 = vmatpush1.xpose.msra.mxu0 0.0
        %2015 = vmatprep.subr.mxu0 0.0
        %2016 = vmatpush1.xpose.msra.mxu0 0.0
        %2017 = vmatprep.subr.mxu0 0.0
        %2018 = vmatpush1.xpose.msra.mxu0 0.0
        %2019 = vmatprep.subr.mxu0 0.0
        %2020 = vmatpush1.xpose.msra.mxu0 0.0
        %2021 = vmatprep.subr.mxu0 0.0
        %2022 = vmatpush1.xpose.msra.mxu0 0.0
        %2023 = vmatprep.subr.mxu0 0.0
        %2024 = vmatpush1.xpose.msra.mxu0 0.0
        %2025 = vmatprep.subr.mxu0 0.0
        %2026 = vmatpush1.xpose.msra.mxu0 0.0
        %2027 = vmatprep.subr.mxu0 0.0
        %2028 = vmatpush1.xpose.msra.mxu0 0.0
        %2029 = vmatprep.subr.mxu0 0.0
        %2030 = vmatpush1.xpose.msra.mxu0 0.0
        %2031 = vmatprep.subr.mxu0 0.0
        %2032 = vmatpush1.xpose.msra.mxu0 0.0
        %2033 = vmatprep.subr.mxu0 0.0
        %2034 = vmatpush1.xpose.msra.mxu0 0.0
        %2035 = vmatprep.subr.mxu0 0.0
        %2036 = vmatpush1.xpose.msra.mxu0 0.0
        %2037 = vmatprep.subr.mxu0 0.0
        %2038 = vmatpush1.xpose.msra.mxu0 0.0
        %2039 = vmatprep.subr.mxu0 0.0
        %2040 = vmatpush1.xpose.msra.mxu0 0.0
        %2041 = vmatprep.subr.mxu0 0.0
        %2042 = vmatpush1.xpose.msra.mxu0 0.0
        %2043 = vmatprep.subr.mxu0 0.0
        %2044 = vmatpush1.xpose.msra.mxu0 0.0
        %2045 = vmatprep.subr.mxu0 0.0
        %2046 = vmatpush1.xpose.msra.mxu0 0.0
        %2047 = vmatprep.subr.mxu0 0.0
        %2048 = vmatpush1.xpose.msra.mxu0 0.0
        %2049 = vmatprep.subr.mxu0 0.0
        %2050 = vmatpush1.xpose.msra.mxu0 0.0
        %2051 = vmatprep.subr.mxu0 0.0
        %2052 = vmatpush1.xpose.msra.mxu0 0.0
        %2053 = vmatprep.mubr.f32.mxu0 0.0
        %2054 = vmatmul.mubr.f32.gmra.mrb[0].mxu0 %v1985
        %v2055 = vpop.f32.mrb[0].mxu0
        %v2056 = vadd.f32 %v283, %v2055
        %v2057 = vpop.f32.mrb[0].mxu0
        %2058 = vdwg.mxu0
        %v2059 = vsel %vm370, %v2056, -inf
        %2060 = vmax.xlane.f32.xlu0 %v2059
        %v2061 = vpop.xlane.xlu0 %2060
        %v2062 = vsub.f32 %v2056, %v2061
        %v2063 = vmul.f32 %v2062, 1.442695
        %v2064 = vpow.pop %v2063
        %v2065 = vsel %vm370, %v2064, 0.0
        %2066 = vadd.xlane.f32.xlu0 %v2065
        %v2067 = vpop.xlane.xlu0 %2066
        %v2068 = vrcp.pop %v2067
        %v2069 = vmul.f32 %v2064, %v2068
        %2070 = vrot.lane.b32.xlu0 %v1499, 80
        %v2071 = vpop.permute.xlu0 %2070
        %v2074 = vsel %vm370, %v2069, 0
        %2076 = vmatprep.subr.mxu0 0.0
        %2077 = vmatpush1.msra.mxu0 %v2071
        %2078 = vmatprep.subr.mxu0 0.0
        %2079 = vmatpush1.msra.mxu0 0.0
        %2080 = vmatprep.subr.mxu0 0.0
        %2081 = vmatpush1.msra.mxu0 0.0
        %2082 = vmatprep.subr.mxu0 0.0
        %2083 = vmatpush1.msra.mxu0 0.0
        %2084 = vmatprep.subr.mxu0 0.0
        %2085 = vmatpush1.msra.mxu0 0.0
        %2086 = vmatprep.subr.mxu0 0.0
        %2087 = vmatpush1.msra.mxu0 0.0
        %2088 = vmatprep.subr.mxu0 0.0
        %2089 = vmatpush1.msra.mxu0 0.0
        %2090 = vmatprep.subr.mxu0 0.0
        %2091 = vmatpush1.msra.mxu0 0.0
        %2092 = vmatprep.subr.mxu0 0.0
        %2093 = vmatpush1.msra.mxu0 0.0
        %2094 = vmatprep.subr.mxu0 0.0
        %2095 = vmatpush1.msra.mxu0 0.0
        %2096 = vmatprep.subr.mxu0 0.0
        %2097 = vmatpush1.msra.mxu0 0.0
        %2098 = vmatprep.subr.mxu0 0.0
        %2099 = vmatpush1.msra.mxu0 0.0
        %2100 = vmatprep.subr.mxu0 0.0
        %2101 = vmatpush1.msra.mxu0 0.0
        %2102 = vmatprep.subr.mxu0 0.0
        %2103 = vmatpush1.msra.mxu0 0.0
        %2104 = vmatprep.subr.mxu0 0.0
        %2105 = vmatpush1.msra.mxu0 0.0
        %2106 = vmatprep.subr.mxu0 0.0
        %2107 = vmatpush1.msra.mxu0 0.0
        %2108 = vmatprep.subr.mxu0 0.0
        %2109 = vmatpush1.msra.mxu0 0.0
        %2110 = vmatprep.subr.mxu0 0.0
        %2111 = vmatpush1.msra.mxu0 0.0
        %2112 = vmatprep.subr.mxu0 0.0
        %2113 = vmatpush1.msra.mxu0 0.0
        %2114 = vmatprep.subr.mxu0 0.0
        %2115 = vmatpush1.msra.mxu0 0.0
        %2116 = vmatprep.subr.mxu0 0.0
        %2117 = vmatpush1.msra.mxu0 0.0
        %2118 = vmatprep.subr.mxu0 0.0
        %2119 = vmatpush1.msra.mxu0 0.0
        %2120 = vmatprep.subr.mxu0 0.0
        %2121 = vmatpush1.msra.mxu0 0.0
        %2122 = vmatprep.subr.mxu0 0.0
        %2123 = vmatpush1.msra.mxu0 0.0
        %2124 = vmatprep.subr.mxu0 0.0
        %2125 = vmatpush1.msra.mxu0 0.0
        %2126 = vmatprep.subr.mxu0 0.0
        %2127 = vmatpush1.msra.mxu0 0.0
        %2128 = vmatprep.subr.mxu0 0.0
        %2129 = vmatpush1.msra.mxu0 0.0
        %2130 = vmatprep.subr.mxu0 0.0
        %2131 = vmatpush1.msra.mxu0 0.0
        %2132 = vmatprep.subr.mxu0 0.0
        %2133 = vmatpush1.msra.mxu0 0.0
        %2134 = vmatprep.subr.mxu0 0.0
        %2135 = vmatpush1.msra.mxu0 0.0
        %2136 = vmatprep.subr.mxu0 0.0
        %2137 = vmatpush1.msra.mxu0 0.0
        %2138 = vmatprep.subr.mxu0 0.0
        %2139 = vmatpush1.msra.mxu0 0.0
        %2140 = vmatprep.mubr.f32.mxu0 0.0
        %2141 = vmatmul.mubr.f32.gmra.mrb[0].mxu0 %v2074
        %v2142 = vpop.f32.mrb[0].mxu0
        %v2143 = vadd.f32 0.0, %v2142
        %v2144 = vpop.f32.mrb[0].mxu0
        %2145 = vdwg.mxu0
        %v2147 = vsel %vm370, %v2143, 0
        %2149 = vmatprep.subr.mxu0 0.0
        %2150 = vmatpush1.msra.mxu0 %v1505
        %2151 = vmatprep.subr.mxu0 0.0
        %2152 = vmatpush1.msra.mxu0 0.0
        %2153 = vmatprep.subr.mxu0 0.0
        %2154 = vmatpush1.msra.mxu0 0.0
        %2155 = vmatprep.subr.mxu0 0.0
        %2156 = vmatpush1.msra.mxu0 0.0
        %2157 = vmatprep.subr.mxu0 0.0
        %2158 = vmatpush1.msra.mxu0 0.0
        %2159 = vmatprep.subr.mxu0 0.0
        %2160 = vmatpush1.msra.mxu0 0.0
        %2161 = vmatprep.subr.mxu0 0.0
        %2162 = vmatpush1.msra.mxu0 0.0
        %2163 = vmatprep.subr.mxu0 0.0
        %2164 = vmatpush1.msra.mxu0 0.0
        %2165 = vmatprep.subr.mxu0 0.0
        %2166 = vmatpush1.msra.mxu0 0.0
        %2167 = vmatprep.subr.mxu0 0.0
        %2168 = vmatpush1.msra.mxu0 0.0
        %2169 = vmatprep.subr.mxu0 0.0
        %2170 = vmatpush1.msra.mxu0 0.0
        %2171 = vmatprep.subr.mxu0 0.0
        %2172 = vmatpush1.msra.mxu0 0.0
        %2173 = vmatprep.subr.mxu0 0.0
        %2174 = vmatpush1.msra.mxu0 0.0
        %2175 = vmatprep.subr.mxu0 0.0
        %2176 = vmatpush1.msra.mxu0 0.0
        %2177 = vmatprep.subr.mxu0 0.0
        %2178 = vmatpush1.msra.mxu0 0.0
        %2179 = vmatprep.subr.mxu0 0.0
        %2180 = vmatpush1.msra.mxu0 0.0
        %2181 = vmatprep.subr.mxu0 0.0
        %2182 = vmatpush1.msra.mxu0 0.0
        %2183 = vmatprep.subr.mxu0 0.0
        %2184 = vmatpush1.msra.mxu0 0.0
        %2185 = vmatprep.subr.mxu0 0.0
        %2186 = vmatpush1.msra.mxu0 0.0
        %2187 = vmatprep.subr.mxu0 0.0
        %2188 = vmatpush1.msra.mxu0 0.0
        %2189 = vmatprep.subr.mxu0 0.0
        %2190 = vmatpush1.msra.mxu0 0.0
        %2191 = vmatprep.subr.mxu0 0.0
        %2192 = vmatpush1.msra.mxu0 0.0
        %2193 = vmatprep.subr.mxu0 0.0
        %2194 = vmatpush1.msra.mxu0 0.0
        %2195 = vmatprep.subr.mxu0 0.0
        %2196 = vmatpush1.msra.mxu0 0.0
        %2197 = vmatprep.subr.mxu0 0.0
        %2198 = vmatpush1.msra.mxu0 0.0
        %2199 = vmatprep.subr.mxu0 0.0
        %2200 = vmatpush1.msra.mxu0 0.0
        %2201 = vmatprep.subr.mxu0 0.0
        %2202 = vmatpush1.msra.mxu0 0.0
        %2203 = vmatprep.subr.mxu0 0.0
        %2204 = vmatpush1.msra.mxu0 0.0
        %2205 = vmatprep.subr.mxu0 0.0
        %2206 = vmatpush1.msra.mxu0 0.0
        %2207 = vmatprep.subr.mxu0 0.0
        %2208 = vmatpush1.msra.mxu0 0.0
        %2209 = vmatprep.subr.mxu0 0.0
        %2210 = vmatpush1.msra.mxu0 0.0
        %2211 = vmatprep.subr.mxu0 0.0
        %2212 = vmatpush1.msra.mxu0 0.0
        %2213 = vmatprep.mubr.f32.mxu0 0.0
        %2214 = vmatmul.mubr.f32.gmra.mrb[0].mxu0 %v2147
        %v2215 = vpop.f32.mrb[0].mxu0
        %v2216 = vadd.f32 0.0, %v2215
        %v2217 = vpop.f32.mrb[0].mxu0
        %2218 = vdwg.mxu0
        %v2219 = vadd.f32 %v1978, %v2216
        %2220 = vrot.lane.b32.xlu0 %v1422, 104
        %v2221 = vpop.permute.xlu0 %2220
        %2222 = vrot.lane.b32.xlu0 %v1499, 104
        %v2223 = vpop.permute.xlu0 %2222
        %v2224 = vsel %vm370, %v2221, 0
        %v2226 = vsel %vm370, %v2223, 0
        %2228 = vmatprep.subr.mxu0 0.0
        %2229 = vmatpush1.xpose.msra.mxu0 %v2226
        %2230 = vmatprep.subr.mxu0 0.0
        %2231 = vmatpush1.xpose.msra.mxu0 0.0
        %2232 = vmatprep.subr.mxu0 0.0
        %2233 = vmatpush1.xpose.msra.mxu0 0.0
        %2234 = vmatprep.subr.mxu0 0.0
        %2235 = vmatpush1.xpose.msra.mxu0 0.0
        %2236 = vmatprep.subr.mxu0 0.0
        %2237 = vmatpush1.xpose.msra.mxu0 0.0
        %2238 = vmatprep.subr.mxu0 0.0
        %2239 = vmatpush1.xpose.msra.mxu0 0.0
        %2240 = vmatprep.subr.mxu0 0.0
        %2241 = vmatpush1.xpose.msra.mxu0 0.0
        %2242 = vmatprep.subr.mxu0 0.0
        %2243 = vmatpush1.xpose.msra.mxu0 0.0
        %2244 = vmatprep.subr.mxu0 0.0
        %2245 = vmatpush1.xpose.msra.mxu0 0.0
        %2246 = vmatprep.subr.mxu0 0.0
        %2247 = vmatpush1.xpose.msra.mxu0 0.0
        %2248 = vmatprep.subr.mxu0 0.0
        %2249 = vmatpush1.xpose.msra.mxu0 0.0
        %2250 = vmatprep.subr.mxu0 0.0
        %2251 = vmatpush1.xpose.msra.mxu0 0.0
        %2252 = vmatprep.subr.mxu0 0.0
        %2253 = vmatpush1.xpose.msra.mxu0 0.0
        %2254 = vmatprep.subr.mxu0 0.0
        %2255 = vmatpush1.xpose.msra.mxu0 0.0
        %2256 = vmatprep.subr.mxu0 0.0
        %2257 = vmatpush1.xpose.msra.mxu0 0.0
        %2258 = vmatprep.subr.mxu0 0.0
        %2259 = vmatpush1.xpose.msra.mxu0 0.0
        %2260 = vmatprep.subr.mxu0 0.0
        %2261 = vmatpush1.xpose.msra.mxu0 0.0
        %2262 = vmatprep.subr.mxu0 0.0
        %2263 = vmatpush1.xpose.msra.mxu0 0.0
        %2264 = vmatprep.subr.mxu0 0.0
        %2265 = vmatpush1.xpose.msra.mxu0 0.0
        %2266 = vmatprep.subr.mxu0 0.0
        %2267 = vmatpush1.xpose.msra.mxu0 0.0
        %2268 = vmatprep.subr.mxu0 0.0
        %2269 = vmatpush1.xpose.msra.mxu0 0.0
        %2270 = vmatprep.subr.mxu0 0.0
        %2271 = vmatpush1.xpose.msra.mxu0 0.0
        %2272 = vmatprep.subr.mxu0 0.0
        %2273 = vmatpush1.xpose.msra.mxu0 0.0
        %2274 = vmatprep.subr.mxu0 0.0
        %2275 = vmatpush1.xpose.msra.mxu0 0.0
        %2276 = vmatprep.subr.mxu0 0.0
        %2277 = vmatpush1.xpose.msra.mxu0 0.0
        %2278 = vmatprep.subr.mxu0 0.0
        %2279 = vmatpush1.xpose.msra.mxu0 0.0
        %2280 = vmatprep.subr.mxu0 0.0
        %2281 = vmatpush1.xpose.msra.mxu0 0.0
        %2282 = vmatprep.subr.mxu0 0.0
        %2283 = vmatpush1.xpose.msra.mxu0 0.0
        %2284 = vmatprep.subr.mxu0 0.0
        %2285 = vmatpush1.xpose.msra.mxu0 0.0
        %2286 = vmatprep.subr.mxu0 0.0
        %2287 = vmatpush1.xpose.msra.mxu0 0.0
        %2288 = vmatprep.subr.mxu0 0.0
        %2289 = vmatpush1.xpose.msra.mxu0 0.0
        %2290 = vmatprep.subr.mxu0 0.0
        %2291 = vmatpush1.xpose.msra.mxu0 0.0
        %2292 = vmatprep.mubr.f32.mxu0 0.0
        %2293 = vmatmul.mubr.f32.gmra.mrb[0].mxu0 %v2224
        %v2294 = vpop.f32.mrb[0].mxu0
        %v2295 = vadd.f32 %v283, %v2294
        %v2296 = vpop.f32.mrb[0].mxu0
        %2297 = vdwg.mxu0
        %v2298 = vsel %vm370, %v2295, -inf
        %2299 = vmax.xlane.f32.xlu0 %v2298
        %v2300 = vpop.xlane.xlu0 %2299
        %v2301 = vsub.f32 %v2295, %v2300
        %v2302 = vmul.f32 %v2301, 1.442695
        %v2303 = vpow.pop %v2302
        %v2304 = vsel %vm370, %v2303, 0.0
        %2305 = vadd.xlane.f32.xlu0 %v2304
        %v2306 = vpop.xlane.xlu0 %2305
        %v2307 = vrcp.pop %v2306
        %v2308 = vmul.f32 %v2303, %v2307
        %2309 = vrot.lane.b32.xlu0 %v1499, 72
        %v2310 = vpop.permute.xlu0 %2309
        %v2313 = vsel %vm370, %v2308, 0
        %2315 = vmatprep.subr.mxu0 0.0
        %2316 = vmatpush1.msra.mxu0 %v2310
        %2317 = vmatprep.subr.mxu0 0.0
        %2318 = vmatpush1.msra.mxu0 0.0
        %2319 = vmatprep.subr.mxu0 0.0
        %2320 = vmatpush1.msra.mxu0 0.0
        %2321 = vmatprep.subr.mxu0 0.0
        %2322 = vmatpush1.msra.mxu0 0.0
        %2323 = vmatprep.subr.mxu0 0.0
        %2324 = vmatpush1.msra.mxu0 0.0
        %2325 = vmatprep.subr.mxu0 0.0
        %2326 = vmatpush1.msra.mxu0 0.0
        %2327 = vmatprep.subr.mxu0 0.0
        %2328 = vmatpush1.msra.mxu0 0.0
        %2329 = vmatprep.subr.mxu0 0.0
        %2330 = vmatpush1.msra.mxu0 0.0
        %2331 = vmatprep.subr.mxu0 0.0
        %2332 = vmatpush1.msra.mxu0 0.0
        %2333 = vmatprep.subr.mxu0 0.0
        %2334 = vmatpush1.msra.mxu0 0.0
        %2335 = vmatprep.subr.mxu0 0.0
        %2336 = vmatpush1.msra.mxu0 0.0
        %2337 = vmatprep.subr.mxu0 0.0
        %2338 = vmatpush1.msra.mxu0 0.0
        %2339 = vmatprep.subr.mxu0 0.0
        %2340 = vmatpush1.msra.mxu0 0.0
        %2341 = vmatprep.subr.mxu0 0.0
        %2342 = vmatpush1.msra.mxu0 0.0
        %2343 = vmatprep.subr.mxu0 0.0
        %2344 = vmatpush1.msra.mxu0 0.0
        %2345 = vmatprep.subr.mxu0 0.0
        %2346 = vmatpush1.msra.mxu0 0.0
        %2347 = vmatprep.subr.mxu0 0.0
        %2348 = vmatpush1.msra.mxu0 0.0
        %2349 = vmatprep.subr.mxu0 0.0
        %2350 = vmatpush1.msra.mxu0 0.0
        %2351 = vmatprep.subr.mxu0 0.0
        %2352 = vmatpush1.msra.mxu0 0.0
        %2353 = vmatprep.subr.mxu0 0.0
        %2354 = vmatpush1.msra.mxu0 0.0
        %2355 = vmatprep.subr.mxu0 0.0
        %2356 = vmatpush1.msra.mxu0 0.0
        %2357 = vmatprep.subr.mxu0 0.0
        %2358 = vmatpush1.msra.mxu0 0.0
        %2359 = vmatprep.subr.mxu0 0.0
        %2360 = vmatpush1.msra.mxu0 0.0
        %2361 = vmatprep.subr.mxu0 0.0
        %2362 = vmatpush1.msra.mxu0 0.0
        %2363 = vmatprep.subr.mxu0 0.0
        %2364 = vmatpush1.msra.mxu0 0.0
        %2365 = vmatprep.subr.mxu0 0.0
        %2366 = vmatpush1.msra.mxu0 0.0
        %2367 = vmatprep.subr.mxu0 0.0
        %2368 = vmatpush1.msra.mxu0 0.0
        %2369 = vmatprep.subr.mxu0 0.0
        %2370 = vmatpush1.msra.mxu0 0.0
        %2371 = vmatprep.subr.mxu0 0.0
        %2372 = vmatpush1.msra.mxu0 0.0
        %2373 = vmatprep.subr.mxu0 0.0
        %2374 = vmatpush1.msra.mxu0 0.0
        %2375 = vmatprep.subr.mxu0 0.0
        %2376 = vmatpush1.msra.mxu0 0.0
        %2377 = vmatprep.subr.mxu0 0.0
        %2378 = vmatpush1.msra.mxu0 0.0
        %2379 = vmatprep.mubr.f32.mxu0 0.0
        %2380 = vmatmul.mubr.f32.gmra.mrb[0].mxu0 %v2313
        %v2381 = vpop.f32.mrb[0].mxu0
        %v2382 = vadd.f32 0.0, %v2381
        %v2383 = vpop.f32.mrb[0].mxu0
        %2384 = vdwg.mxu0
        %v2386 = vsel %vm370, %v2382, 0
        %2388 = vmatprep.subr.mxu0 0.0
        %2389 = vmatpush1.msra.mxu0 %v1506
        %2390 = vmatprep.subr.mxu0 0.0
        %2391 = vmatpush1.msra.mxu0 0.0
        %2392 = vmatprep.subr.mxu0 0.0
        %2393 = vmatpush1.msra.mxu0 0.0
        %2394 = vmatprep.subr.mxu0 0.0
        %2395 = vmatpush1.msra.mxu0 0.0
        %2396 = vmatprep.subr.mxu0 0.0
        %2397 = vmatpush1.msra.mxu0 0.0
        %2398 = vmatprep.subr.mxu0 0.0
        %2399 = vmatpush1.msra.mxu0 0.0
        %2400 = vmatprep.subr.mxu0 0.0
        %2401 = vmatpush1.msra.mxu0 0.0
        %2402 = vmatprep.subr.mxu0 0.0
        %2403 = vmatpush1.msra.mxu0 0.0
        %2404 = vmatprep.subr.mxu0 0.0
        %2405 = vmatpush1.msra.mxu0 0.0
        %2406 = vmatprep.subr.mxu0 0.0
        %2407 = vmatpush1.msra.mxu0 0.0
        %2408 = vmatprep.subr.mxu0 0.0
        %2409 = vmatpush1.msra.mxu0 0.0
        %2410 = vmatprep.subr.mxu0 0.0
        %2411 = vmatpush1.msra.mxu0 0.0
        %2412 = vmatprep.subr.mxu0 0.0
        %2413 = vmatpush1.msra.mxu0 0.0
        %2414 = vmatprep.subr.mxu0 0.0
        %2415 = vmatpush1.msra.mxu0 0.0
        %2416 = vmatprep.subr.mxu0 0.0
        %2417 = vmatpush1.msra.mxu0 0.0
        %2418 = vmatprep.subr.mxu0 0.0
        %2419 = vmatpush1.msra.mxu0 0.0
        %2420 = vmatprep.subr.mxu0 0.0
        %2421 = vmatpush1.msra.mxu0 0.0
        %2422 = vmatprep.subr.mxu0 0.0
        %2423 = vmatpush1.msra.mxu0 0.0
        %2424 = vmatprep.subr.mxu0 0.0
        %2425 = vmatpush1.msra.mxu0 0.0
        %2426 = vmatprep.subr.mxu0 0.0
        %2427 = vmatpush1.msra.mxu0 0.0
        %2428 = vmatprep.subr.mxu0 0.0
        %2429 = vmatpush1.msra.mxu0 0.0
        %2430 = vmatprep.subr.mxu0 0.0
        %2431 = vmatpush1.msra.mxu0 0.0
        %2432 = vmatprep.subr.mxu0 0.0
        %2433 = vmatpush1.msra.mxu0 0.0
        %2434 = vmatprep.subr.mxu0 0.0
        %2435 = vmatpush1.msra.mxu0 0.0
        %2436 = vmatprep.subr.mxu0 0.0
        %2437 = vmatpush1.msra.mxu0 0.0
        %2438 = vmatprep.subr.mxu0 0.0
        %2439 = vmatpush1.msra.mxu0 0.0
        %2440 = vmatprep.subr.mxu0 0.0
        %2441 = vmatpush1.msra.mxu0 0.0
        %2442 = vmatprep.subr.mxu0 0.0
        %2443 = vmatpush1.msra.mxu0 0.0
        %2444 = vmatprep.subr.mxu0 0.0
        %2445 = vmatpush1.msra.mxu0 0.0
        %2446 = vmatprep.subr.mxu0 0.0
        %2447 = vmatpush1.msra.mxu0 0.0
        %2448 = vmatprep.subr.mxu0 0.0
        %2449 = vmatpush1.msra.mxu0 0.0
        %2450 = vmatprep.subr.mxu0 0.0
        %2451 = vmatpush1.msra.mxu0 0.0
        %2452 = vmatprep.mubr.f32.mxu0 0.0
        %2453 = vmatmul.mubr.f32.gmra.mrb[0].mxu0 %v2386
        %v2454 = vpop.f32.mrb[0].mxu0
        %v2455 = vadd.f32 0.0, %v2454
        %v2456 = vpop.f32.mrb[0].mxu0
        %2457 = vdwg.mxu0
        %v2458 = vadd.f32 %v2219, %v2455
        %v2459 = vadd.f32 %v1347, %v2458
        %v2460 = vsel %vm288, %v2459, 0.0
        %2461 = vadd.xlane.f32.xlu0 %v2460
        %v2462 = vpop.xlane.xlu0 %2461
        %v2463 = vmul.f32 %v2462, %v1325
        %v2464 = vmul.f32 %v2459, %v2459
        %v2465 = vsel %vm288, %v2464, 0.0
        %2466 = vadd.xlane.f32.xlu0 %v2465
        %v2467 = vpop.xlane.xlu0 %2466
        %v2468 = vmul.f32 %v2467, %v1325
        %v2469 = vmul.f32 %v2463, %v2463
        %v2470 = vsub.f32 %v2468, %v2469
        %v2471 = vsub.f32 %v2459, %v2463
        %v2472 = vadd.f32 %v2470, 1e-05
        %v2473 = vrsqrt.pop %v2472
        %v2474 = vmul.f32 %v2471, %v2473
        %v2475 = vlaneseq
        %v2476 = vshrl.u32 %v2475, 7
        %v2477 = vsub.s32 2, %v2476
        %v2478 = vrot.slane %v273, %v2477
        %v2479 = vmul.f32 %v2474, %v2478
        %v2480 = vlaneseq
        %v2481 = vshrl.u32 %v2480, 7
        %v2482 = vsub.s32 3, %v2481
        %v2483 = vrot.slane %v273, %v2482
        %v2484 = vadd.f32 %v2479, %v2483
        %s2485 = scalar_lea.vmem %s5, 96
        %v2486 = vld [vmem:[%s2485] sm:$0xff]
        %v2487 = vld [vmem:[%s2485 + $0x8] sm:$0xff]
        %v2488 = vld [vmem:[%s2485 + $0x10] sm:$0xff]
        %v2489 = vld [vmem:[%s2485 + $0x18] sm:$0xff]
        %v2491 = vsel %vm288, %v2484, 0
        %2493 = vmatprep.subr.mxu0 0.0
        %2494 = vmatpush1.msra.mxu0 %v2486
        %2495 = vmatprep.subr.mxu0 0.0
        %2496 = vmatpush1.msra.mxu0 %v2487
        %2497 = vmatprep.subr.mxu0 0.0
        %2498 = vmatpush1.msra.mxu0 %v2488
        %2499 = vmatprep.subr.mxu0 0.0
        %2500 = vmatpush1.msra.mxu0 %v2489
        %2501 = vmatprep.subr.mxu0 0.0
        %2502 = vmatpush1.msra.mxu0 0.0
        %2503 = vmatprep.subr.mxu0 0.0
        %2504 = vmatpush1.msra.mxu0 0.0
        %2505 = vmatprep.subr.mxu0 0.0
        %2506 = vmatpush1.msra.mxu0 0.0
        %2507 = vmatprep.subr.mxu0 0.0
        %2508 = vmatpush1.msra.mxu0 0.0
        %2509 = vmatprep.subr.mxu0 0.0
        %2510 = vmatpush1.msra.mxu0 0.0
        %2511 = vmatprep.subr.mxu0 0.0
        %2512 = vmatpush1.msra.mxu0 0.0
        %2513 = vmatprep.subr.mxu0 0.0
        %2514 = vmatpush1.msra.mxu0 0.0
        %2515 = vmatprep.subr.mxu0 0.0
        %2516 = vmatpush1.msra.mxu0 0.0
        %2517 = vmatprep.subr.mxu0 0.0
        %2518 = vmatpush1.msra.mxu0 0.0
        %2519 = vmatprep.subr.mxu0 0.0
        %2520 = vmatpush1.msra.mxu0 0.0
        %2521 = vmatprep.subr.mxu0 0.0
        %2522 = vmatpush1.msra.mxu0 0.0
        %2523 = vmatprep.subr.mxu0 0.0
        %2524 = vmatpush1.msra.mxu0 0.0
        %2525 = vmatprep.subr.mxu0 0.0
        %2526 = vmatpush1.msra.mxu0 0.0
        %2527 = vmatprep.subr.mxu0 0.0
        %2528 = vmatpush1.msra.mxu0 0.0
        %2529 = vmatprep.subr.mxu0 0.0
        %2530 = vmatpush1.msra.mxu0 0.0
        %2531 = vmatprep.subr.mxu0 0.0
        %2532 = vmatpush1.msra.mxu0 0.0
        %2533 = vmatprep.subr.mxu0 0.0
        %2534 = vmatpush1.msra.mxu0 0.0
        %2535 = vmatprep.subr.mxu0 0.0
        %2536 = vmatpush1.msra.mxu0 0.0
        %2537 = vmatprep.subr.mxu0 0.0
        %2538 = vmatpush1.msra.mxu0 0.0
        %2539 = vmatprep.subr.mxu0 0.0
        %2540 = vmatpush1.msra.mxu0 0.0
        %2541 = vmatprep.subr.mxu0 0.0
        %2542 = vmatpush1.msra.mxu0 0.0
        %2543 = vmatprep.subr.mxu0 0.0
        %2544 = vmatpush1.msra.mxu0 0.0
        %2545 = vmatprep.subr.mxu0 0.0
        %2546 = vmatpush1.msra.mxu0 0.0
        %2547 = vmatprep.subr.mxu0 0.0
        %2548 = vmatpush1.msra.mxu0 0.0
        %2549 = vmatprep.subr.mxu0 0.0
        %2550 = vmatpush1.msra.mxu0 0.0
        %2551 = vmatprep.subr.mxu0 0.0
        %2552 = vmatpush1.msra.mxu0 0.0
        %2553 = vmatprep.subr.mxu0 0.0
        %2554 = vmatpush1.msra.mxu0 0.0
        %2555 = vmatprep.subr.mxu0 0.0
        %2556 = vmatpush1.msra.mxu0 0.0
        %2557 = vmatprep.mubr.f32.mxu0 0.0
        %2558 = vmatmul.mubr.f32.gmra.mrb[0].mxu0 %v2491
        %v2559 = vpop.f32.mrb[0].mxu0
        %v2560 = vadd.f32 0.0, %v2559
        %v2561 = vpop.f32.mrb[0].mxu0
        %2562 = vdwg.mxu0
        %v2563 = vmax.f32 %v2560, 0.0
        %s2564 = scalar_lea.vmem %s5, 128
        %v2565 = vld [vmem:[%s2564] sm:$0xff]
        %v2566 = vld [vmem:[%s2564 + $0x8] sm:$0xff]
        %v2567 = vld [vmem:[%s2564 + $0x10] sm:$0xff]
        %v2568 = vld [vmem:[%s2564 + $0x18] sm:$0xff]
        %v2570 = vsel %vm288, %v2563, 0
        %2572 = vmatprep.subr.mxu0 0.0
        %2573 = vmatpush1.msra.mxu0 %v2565
        %2574 = vmatprep.subr.mxu0 0.0
        %2575 = vmatpush1.msra.mxu0 %v2566
        %2576 = vmatprep.subr.mxu0 0.0
        %2577 = vmatpush1.msra.mxu0 %v2567
        %2578 = vmatprep.subr.mxu0 0.0
        %2579 = vmatpush1.msra.mxu0 %v2568
        %2580 = vmatprep.subr.mxu0 0.0
        %2581 = vmatpush1.msra.mxu0 0.0
        %2582 = vmatprep.subr.mxu0 0.0
        %2583 = vmatpush1.msra.mxu0 0.0
        %2584 = vmatprep.subr.mxu0 0.0
        %2585 = vmatpush1.msra.mxu0 0.0
        %2586 = vmatprep.subr.mxu0 0.0
        %2587 = vmatpush1.msra.mxu0 0.0
        %2588 = vmatprep.subr.mxu0 0.0
        %2589 = vmatpush1.msra.mxu0 0.0
        %2590 = vmatprep.subr.mxu0 0.0
        %2591 = vmatpush1.msra.mxu0 0.0
        %2592 = vmatprep.subr.mxu0 0.0
        %2593 = vmatpush1.msra.mxu0 0.0
        %2594 = vmatprep.subr.mxu0 0.0
        %2595 = vmatpush1.msra.mxu0 0.0
        %2596 = vmatprep.subr.mxu0 0.0
        %2597 = vmatpush1.msra.mxu0 0.0
        %2598 = vmatprep.subr.mxu0 0.0
        %2599 = vmatpush1.msra.mxu0 0.0
        %2600 = vmatprep.subr.mxu0 0.0
        %2601 = vmatpush1.msra.mxu0 0.0
        %2602 = vmatprep.subr.mxu0 0.0
        %2603 = vmatpush1.msra.mxu0 0.0
        %2604 = vmatprep.subr.mxu0 0.0
        %2605 = vmatpush1.msra.mxu0 0.0
        %2606 = vmatprep.subr.mxu0 0.0
        %2607 = vmatpush1.msra.mxu0 0.0
        %2608 = vmatprep.subr.mxu0 0.0
        %2609 = vmatpush1.msra.mxu0 0.0
        %2610 = vmatprep.subr.mxu0 0.0
        %2611 = vmatpush1.msra.mxu0 0.0
        %2612 = vmatprep.subr.mxu0 0.0
        %2613 = vmatpush1.msra.mxu0 0.0
        %2614 = vmatprep.subr.mxu0 0.0
        %2615 = vmatpush1.msra.mxu0 0.0
        %2616 = vmatprep.subr.mxu0 0.0
        %2617 = vmatpush1.msra.mxu0 0.0
        %2618 = vmatprep.subr.mxu0 0.0
        %2619 = vmatpush1.msra.mxu0 0.0
        %2620 = vmatprep.subr.mxu0 0.0
        %2621 = vmatpush1.msra.mxu0 0.0
        %2622 = vmatprep.subr.mxu0 0.0
        %2623 = vmatpush1.msra.mxu0 0.0
        %2624 = vmatprep.subr.mxu0 0.0
        %2625 = vmatpush1.msra.mxu0 0.0
        %2626 = vmatprep.subr.mxu0 0.0
        %2627 = vmatpush1.msra.mxu0 0.0
        %2628 = vmatprep.subr.mxu0 0.0
        %2629 = vmatpush1.msra.mxu0 0.0
        %2630 = vmatprep.subr.mxu0 0.0
        %2631 = vmatpush1.msra.mxu0 0.0
        %2632 = vmatprep.subr.mxu0 0.0
        %2633 = vmatpush1.msra.mxu0 0.0
        %2634 = vmatprep.subr.mxu0 0.0
        %2635 = vmatpush1.msra.mxu0 0.0
        %2636 = vmatprep.mubr.f32.mxu0 0.0
        %2637 = vmatmul.mubr.f32.gmra.mrb[0].mxu0 %v2570
        %v2638 = vpop.f32.mrb[0].mxu0
        %v2639 = vadd.f32 0.0, %v2638
        %v2640 = vpop.f32.mrb[0].mxu0
        %2641 = vdwg.mxu0
        %v2642 = vadd.f32 %v2484, %v2639
        %v2643 = vsel %vm288, %v2642, 0.0
        %2644 = vadd.xlane.f32.xlu0 %v2643
        %v2645 = vpop.xlane.xlu0 %2644
        %v2646 = vmul.f32 %v2645, %v1325
        %v2647 = vmul.f32 %v2642, %v2642
        %v2648 = vsel %vm288, %v2647, 0.0
        %2649 = vadd.xlane.f32.xlu0 %v2648
        %v2650 = vpop.xlane.xlu0 %2649
        %v2651 = vmul.f32 %v2650, %v1325
        %v2652 = vmul.f32 %v2646, %v2646
        %v2653 = vsub.f32 %v2651, %v2652
        %v2654 = vsub.f32 %v2642, %v2646
        %v2655 = vadd.f32 %v2653, 1e-05
        %v2656 = vrsqrt.pop %v2655
        %v2657 = vmul.f32 %v2654, %v2656
        %v2658 = vlaneseq
        %v2659 = vshrl.u32 %v2658, 7
        %v2660 = vsub.s32 4, %v2659
        %v2661 = vrot.slane %v273, %v2660
        %v2662 = vmul.f32 %v2657, %v2661
        %v2663 = vlaneseq
        %v2664 = vshrl.u32 %v2663, 7
        %v2665 = vsub.s32 5, %v2664
        %v2666 = vrot.slane %v273, %v2665
        %v2667 = vadd.f32 %v2662, %v2666
        %2668 = vst.msk [vmem:[%s262] sm:$0xff] %vm288, %v2667
        %s2669 = sand.u32 %s171, 1
        %s2670 = scalar_lea.sflag [#allocation5], %s2669
        %s2671 = sand.u32 %s171, 1
        %s2672 = smul.addr %s2671, 8
        %s2673 = scalar_lea.vmem [#allocation4], %s2672
        // Predicated region
        $region45: #{decoder_block_pallas.1} parent=43 // pred_check
          %p2674 = pneg %p181
        $region46: #{decoder_block_pallas.1} parent=43 // pred_check_branch
          %2676 = sbr.rel (%p2674) target = $region48
        $region47: #{decoder_block_pallas.1} parent=43 // pred_region
          %s2678 = ssub.s32 128, 128
          %2679 = vsyncadd %s2670, %s2678
          %s2680 = smul.addr %s27, 128
          %s2681 = scalar_lea.hbm %s7, %s2680
          %s2683 = sshll.u32 %s2673, 4
          %s2684 = int_to_ptr.vmem [resolvable:$true] %s2683
          %2686 = dma.vmem_to_hbm [thread:$0]  %s2684, 128, %s2681, %s2670
        $region48: #{decoder_block_pallas.1} parent=43 // pred_fallthru
          _
      $region44: #{decoder_block_pallas.1} parent=5 // pred_fallthru
        _
      %p2687 = scmp.le.s32.totalorder 2, %s22
      // Predicated region
      $region49: #{decoder_block_pallas.1} parent=5 // pred_check
        %p2688 = pneg %p2687
      $region50: #{decoder_block_pallas.1} parent=5 // pred_check_branch
        %2690 = sbr.rel (%p2688) target = $region52
      $region51: #{decoder_block_pallas.1} parent=5 // pred_region
        %s2691 = ssub.s32 %s22, 2
        // Predicated region
        $region53: #{decoder_block_pallas.1} parent=51 // pred_check
          %p2692 = pneg %p187
        $region54: #{decoder_block_pallas.1} parent=51 // pred_check_branch
          %2694 = sbr.rel (%p2692) target = $region56
        $region55: #{decoder_block_pallas.1} parent=51 // pred_region
          %s2695 = sand.u32 %s172, 1
          %s2696 = scalar_lea.sflag [#allocation5], %s2695
          %s2697 = sand.u32 %s172, 1
          %s2698 = smul.addr %s2697, 8
          %s2699 = scalar_lea.vmem [#allocation4], %s2698
          %2700 = dma.done %s2696, 128
        $region56: #{decoder_block_pallas.1} parent=51 // pred_fallthru
          _
      $region52: #{decoder_block_pallas.1} parent=5 // pred_fallthru
        _
    $region6: #{decoder_block_pallas.1} parent=1 // loop_footer
      %s26 = sadd.s32 1, %s22
    $region7: #{decoder_block_pallas.1} parent=1 // loop_footer_branch
      %21 = sbr.rel target = $region3
    $region8: #{decoder_block_pallas.1} parent=1 // loop_exit
      _
    %2701 = vsyncpa [#allocation5], 1
    %s2702 = scalar_lea.sflag [#allocation5], 1
    %2703 = vsyncpa %s2702, 1

</llo_original>
